<compile_context>
chip_gen: v7x
topology: tpu7x:2x2x1
jax: 0.10.0
libtpu: 0.0.40
codegen_flags: <defaults>
</compile_context>

<pallas_src>
import functools

import jax
import jax.numpy as jnp
from jax.experimental import pallas as pl
from jax.experimental.pallas import tpu as pltpu

HID_DEPTH = 16   # hidden width of the synthetic DepthModel MLPs
HID_GEN = 32     # hidden width of the synthetic Generator MLP


# ----------------------------------------------------------------------------
# Tiling / VMEM helpers
# ----------------------------------------------------------------------------
def _rup(x, m):
    return (x + m - 1) // m * m


def _vmem_budget():
    """Scoped VMEM limit to request: ~75% of capacity, >=16 MiB headroom."""
    cap = 64 * 1024 * 1024                      # conservative default (v7x/TC)
    try:
        cap = int(pltpu.get_tpu_info().vmem_capacity_bytes)
    except Exception:  # noqa: BLE001 - fall back to conservative capacity
        pass
    return max(32 * 1024 * 1024,
               min(int(0.75 * cap), cap - 16 * 1024 * 1024))


def _pick_tile(P, max_tile):
    """Largest multiple of 128 that divides P (<= max_tile).

    Falls back to P itself (full-extent block is always legal) when no
    128-multiple divisor exists.
    """
    limit = min(max_tile, P)
    best = 0
    t = 128
    while t <= limit:
        if P % t == 0:
            best = t
        t += 128
    return best if best > 0 else P


def _render_bytes_per_pixel(N, D):
    """Conservative per-pixel VMEM bytes for one render-kernel grid step.

    Includes sublane padding (bf16 tiles pad the D axis to 16 rows, f32 to 8),
    double-buffered pipeline I/O and in-kernel f32 upcast temporaries.
    """
    d16 = _rup(D, 16)   # bf16 padded rows
    d8 = _rup(D, 8)     # f32 padded rows
    io = ((2 * N + 3 * N) * d16 * 2      # sw + mask + warped (bf16)
          + d8 * 4                       # depth logits (f32)
          + (N + 2) * 8 * 4)             # agg / wout / final outputs (f32)
    temps = (5 * N + 1) * d8 * 4 + 4 * 8 * 4   # f32 upcasts + per-n temps
    return 2 * io + temps


def _w_spec(shape):
    # Full-array (weight) block, same block every grid step -> fetched once.
    return pl.BlockSpec(shape, lambda *_: (0,) * len(shape))


# ----------------------------------------------------------------------------
# Pallas kernels
# ----------------------------------------------------------------------------
def mlp2_kernel(x_ref, w1t_ref, b1_ref, w2t_ref, b2_ref, o_ref):
    """Lane-dense pointwise 2-layer MLP on a (Cin, TP) pixel tile.

    o = W2t @ relu(W1t @ x + b1) + b2, with pixels on the lane axis.
    """
    x = x_ref[...]                                                     # (Cin, TP)
    h = jnp.dot(w1t_ref[...], x, preferred_element_type=jnp.float32) + b1_ref[...]
    h = jnp.maximum(h, 0.0)
    o_ref[...] = jnp.dot(w2t_ref[...], h, preferred_element_type=jnp.float32) + b2_ref[...]


def render_kernel(sw_ref, dp_ref, wp_ref, mk_ref,
                  gw1a_ref, gw1w_ref, gb1_ref, gw2_ref, gb2_ref,
                  agg_ref, wout_ref, final_ref, *, N):
    """Fused per-(batch, pixel-tile) render step.

    masked stable softmax over N, stable softmax over D, weighted reductions
    (aggregated image + depth-collapsed per-view warped images), per-view
    Generator MLP (fused img/conf heads) and confidence-normalized blend.
    All reductions are over leading (N, D) dims; pixels stay on lanes.
    sw/mk/wp arrive as bfloat16 (HBM-bandwidth bound) and are upcast here.
    """
    f32 = jnp.float32
    sw = sw_ref[0].astype(f32)                  # (N, D, TP)  src-weight logits
    mk = mk_ref[0].astype(f32)                  # (N, D, TP)  plane-sweep validity
    dp = dp_ref[0]                              # (D, TP)     depth-prob logits (f32)
    D, TP = dp.shape

    # stable softmax over source views (dim N), masked.  The pre-mask
    # normalization of the reference cancels algebraically and is dropped
    # (the 1e-8 epsilon now applies to the unnormalized masked sum).
    m = jnp.max(sw, axis=0, keepdims=True)
    e = jnp.exp(sw - m) * mk                                            # (N, D, TP)
    inv_s = pl.reciprocal(jnp.sum(e, axis=0) + 1e-8, approx=True)       # (D, TP)

    # stable softmax over depth planes (dim D)
    dpe = jnp.exp(dp - jnp.max(dp, axis=0, keepdims=True))
    dps = dpe * pl.reciprocal(jnp.sum(dpe, axis=0, keepdims=True), approx=True)  # (D, TP)

    # Weighted reductions as unrolled accumulation over N (no (N,3,D,TP) temp).
    # agg   = sum_{n,d} wp[n,:,d] * (softmax_N masked)[n,d] * dps[d]
    # wout_n = sum_d   wp[n,:,d] * dps[d]
    # TODO(synk): for generic N*D a sublane-packed (N*D, TP) layout would make
    # these elementwise ops fully dense when D is not a multiple of 8.
    agg = jnp.zeros((3, TP), f32)
    wout_list = []
    for n in range(N):                                                  # N small: unroll
        wp_n = wp_ref[0, pl.ds(3 * n, 3)].astype(f32)                   # (3, D, TP)
        t = wp_n * dps[None]                                            # shared product
        wout_n = jnp.sum(t, axis=1)                                     # (3, TP)
        agg = agg + jnp.sum(t * (e[n] * inv_s)[None], axis=1)           # (3, TP)
        wout_ref[0, n] = wout_n
        wout_list.append(wout_n)
    agg_ref[0] = agg

    # Generator MLP per source view (fused img+conf output head) and
    # confidence-normalized blend.  Aggregated-image first-layer contribution
    # is loop-invariant.
    h_agg = jnp.dot(gw1a_ref[...], agg, preferred_element_type=f32) + gb1_ref[...]
    acc = jnp.zeros((3, TP), f32)
    csum = jnp.zeros((1, TP), f32)
    for n in range(N):
        h = jnp.maximum(
            h_agg + jnp.dot(gw1w_ref[...], wout_list[n], preferred_element_type=f32),
            0.0)
        out4 = jnp.dot(gw2_ref[...], h, preferred_element_type=f32) + gb2_ref[...]  # (4, TP)
        conf = jax.nn.sigmoid(out4[3:4])
        acc = acc + out4[0:3] * conf
        csum = csum + conf
    final_ref[0] = acc * pl.reciprocal(csum + 1e-8, approx=True)


# ----------------------------------------------------------------------------
# Pallas wrappers
# ----------------------------------------------------------------------------
def pallas_mlp2(x_CR, w1t, b1, w2t, b2):
    """x_CR: (Cin, R) with pixels on the lane axis.  Returns (Cout, R)."""
    Cin, R = x_CR.shape
    Cout = w2t.shape[0]
    limit = _vmem_budget()
    # per-pixel footprint is tiny -> use big lane-dense tiles to amortize the
    # ~0.35us/grid-step pipeline overhead.
    bpp = 4 * (3 * (Cin + Cout) + HID_DEPTH)
    max_tile = max(128, min(32768, int(0.5 * limit) // max(bpp, 1) // 128 * 128))
    TP = _pick_tile(R, max_tile)
    grid = (R // TP,)
    return pl.pallas_call(
        mlp2_kernel,
        out_shape=jax.ShapeDtypeStruct((Cout, R), jnp.float32),
        grid=grid,
        in_specs=[pl.BlockSpec((Cin, TP), lambda i: (0, i)),
                  _w_spec(w1t.shape), _w_spec(b1.shape),
                  _w_spec(w2t.shape), _w_spec(b2.shape)],
        out_specs=pl.BlockSpec((Cout, TP), lambda i: (0, i)),
        compiler_params=pltpu.CompilerParams(
            dimension_semantics=("parallel",),
            vmem_limit_bytes=limit),
    )(x_CR, w1t, b1, w2t, b2)


def pallas_render(sw_BNDP, dp_BDP, wp_BN3DP, mk_BNDP,
                  gw1a, gw1w, gb1, gw2, gb2, *, N, D, P):
    """Fused aggregation + generator + blend over a (B, pixel-tile) grid."""
    B = sw_BNDP.shape[0]
    limit = _vmem_budget()
    bpp = _render_bytes_per_pixel(N, D)
    max_tile = max(128, min(32768, int(0.9 * limit) // bpp // 128 * 128))
    TP = _pick_tile(P, max_tile)
    grid = (B, P // TP)

    cparams = pltpu.CompilerParams(
        dimension_semantics=("parallel", "parallel"),
        vmem_limit_bytes=limit)

    kernel = functools.partial(render_kernel, N=N)
    return pl.pallas_call(
        kernel,
        out_shape=(jax.ShapeDtypeStruct((B, 3, P), jnp.float32),       # aggregated
                   jax.ShapeDtypeStruct((B, N, 3, P), jnp.float32),    # warped (D-collapsed)
                   jax.ShapeDtypeStruct((B, 3, P), jnp.float32)),      # final blend
        grid=grid,
        in_specs=[
            pl.BlockSpec((1, N, D, TP), lambda b, p: (b, 0, 0, p)),        # src weights (bf16)
            pl.BlockSpec((1, D, TP), lambda b, p: (b, 0, p)),              # depth logits (f32)
            pl.BlockSpec((1, N * 3, D, TP), lambda b, p: (b, 0, 0, p)),    # warped (bf16)
            pl.BlockSpec((1, N, D, TP), lambda b, p: (b, 0, 0, p)),        # masks (bf16)
            _w_spec(gw1a.shape), _w_spec(gw1w.shape), _w_spec(gb1.shape),
            _w_spec(gw2.shape), _w_spec(gb2.shape),
        ],
        out_specs=(
            pl.BlockSpec((1, 3, TP), lambda b, p: (b, 0, p)),
            pl.BlockSpec((1, N, 3, TP), lambda b, p: (b, 0, 0, p)),
            pl.BlockSpec((1, 3, TP), lambda b, p: (b, 0, p)),
        ),
        compiler_params=cparams,
    )(sw_BNDP, dp_BDP, wp_BN3DP, mk_BNDP, gw1a, gw1w, gb1, gw2, gb2)


# ----------------------------------------------------------------------------
# Plane sweep (plain JAX glue: homography + bilinear grid_sample)
# ----------------------------------------------------------------------------
# TODO(synk): bilinear grid_sample is a data-dependent gather; no clean Pallas
# TPU equivalent, so the warping itself stays in plain JAX.
def plane_sweep_single(src_imgs_N3HW, depths_D, poses_N44, K_src_N33, K_tgt_33, H, W):
    D = depths_D.shape[0]
    HW = H * W
    ys, xs = jnp.meshgrid(jnp.arange(H, dtype=jnp.float32),
                          jnp.arange(W, dtype=jnp.float32), indexing="ij")
    pix = jnp.stack([xs.ravel(), ys.ravel(), jnp.ones((HW,), jnp.float32)], axis=0)  # (3,HW)
    rays = jnp.linalg.inv(K_tgt_33) @ pix                                            # (3,HW)
    pts = depths_D[:, None, None] * rays[None]                                       # (D,3,HW)
    pts_h = jnp.concatenate([pts, jnp.ones((D, 1, HW), jnp.float32)], axis=1)        # (D,4,HW)
    cam = jnp.einsum("nij,djk->ndik", poses_N44, pts_h)                              # (N,D,4,HW)
    proj = jnp.einsum("nij,ndjk->ndik", K_src_N33, cam[:, :, :3, :])                 # (N,D,3,HW)
    z = proj[:, :, 2, :]
    zs = jnp.where(jnp.abs(z) < 1e-6, 1e-6, z)
    u = proj[:, :, 0, :] / zs
    v = proj[:, :, 1, :] / zs

    x0 = jnp.floor(u)
    y0 = jnp.floor(v)
    wx = u - x0
    wy = v - y0

    def gather(img_flat_3HW, yi, xi):
        yi_c = jnp.clip(yi, 0, H - 1).astype(jnp.int32)
        xi_c = jnp.clip(xi, 0, W - 1).astype(jnp.int32)
        idx = yi_c * W + xi_c                  # (D,HW)
        return img_flat_3HW[:, idx]            # (3,D,HW)

    def sample_one(img_3HW, x0_, y0_, wx_, wy_):
        flat = img_3HW.reshape(3, HW)
        v00 = gather(flat, y0_, x0_)
        v01 = gather(flat, y0_, x0_ + 1.0)
        v10 = gather(flat, y0_ + 1.0, x0_)
        v11 = gather(flat, y0_ + 1.0, x0_ + 1.0)
        out = (v00 * ((1 - wx_) * (1 - wy_))[None]
               + v01 * (wx_ * (1 - wy_))[None]
               + v10 * ((1 - wx_) * wy_)[None]
               + v11 * (wx_ * wy_)[None])      # (3,D,HW)
        return out                              # channel-leading: no HBM transpose later

    warped = jax.vmap(sample_one)(src_imgs_N3HW, x0, y0, wx, wy)   # (N,3,D,HW)
    mask = ((u >= 0) & (u <= W - 1) & (v >= 0) & (v <= H - 1) & (z > 0)).astype(jnp.float32)
    warped = warped * mask[:, None, :, :]
    return warped, mask                                            # (N,3,D,HW), (N,D,HW)


def plane_sweep_batch(src_images_BN3HW, depths_BD, src_cams_BN244, tgt_cam_B244, H, W):
    src_intrins = src_cams_BN244[:, :, 0, :3, :3]   # (B,N,3,3)
    tgt_intrins = tgt_cam_B244[:, 0, :3, :3]        # (B,3,3)
    src_w2cs = src_cams_BN244[:, :, 1]              # (B,N,4,4)
    tgt_w2cs = tgt_cam_B244[:, 1]                   # (B,4,4)

    def single(imgs, d, Ks, Kt, sw2c, tw2c):
        poses = jnp.einsum("nij,jk->nik", sw2c, jnp.linalg.inv(tw2c))
        return plane_sweep_single(imgs, d, poses, Ks, Kt, H, W)

    return jax.vmap(single)(src_images_BN3HW, depths_BD, src_intrins, tgt_intrins,
                            src_w2cs, tgt_w2cs)                    # (B,N,3,D,P), (B,N,D,P)


# ----------------------------------------------------------------------------
# RenderModel forward
# ----------------------------------------------------------------------------
def render_model_forward(params, src_images_BN3HW, src_cams_BN244, tgt_cam_B244, depths_BD):
    B, N, _, H, W = src_images_BN3HW.shape
    D = depths_BD.shape[1]
    P = H * W
    h, w = H // 2, W // 2

    # ---- DepthModel (synthetic): 2x avg-pool + lane-dense MLP heads (Pallas) ----
    ds = src_images_BN3HW.reshape(B, N, 3, h, 2, w, 2).mean(axis=(4, 6))      # (B,N,3,h,w)
    x_src = ds.transpose(2, 0, 1, 3, 4).reshape(3, B * N * h * w)             # pixels on lanes
    sw_flat = pallas_mlp2(x_src, params["dw1t"], params["db1"],
                          params["dw2t"], params["db2"])                      # (D, B*N*h*w)
    src_weights_BNDhw = sw_flat.reshape(D, B, N, h, w).transpose(1, 2, 0, 3, 4)

    ds_mean = ds.mean(axis=1)                                                 # (B,3,h,w)
    x_tgt = ds_mean.transpose(1, 0, 2, 3).reshape(3, B * h * w)
    dp_flat = pallas_mlp2(x_tgt, params["pw1t"], params["pb1"],
                          params["pw2t"], params["pb2"])                      # (D, B*h*w)
    depth_probs_BDhw = dp_flat.reshape(D, B, h, w).transpose(1, 0, 2, 3)      # (B,D,h,w)

    # ---- T.Resize((H, W)) equivalent: bilinear upsample (glue) ----
    # TODO(synk): jax.image.resize bilinear differs slightly from torchvision defaults.
    sw_full = jax.image.resize(src_weights_BNDhw.reshape(B * N, D, h, w),
                               (B * N, D, H, W), method="bilinear").reshape(B, N, D, P)
    dp_full = jax.image.resize(depth_probs_BDhw, (B, D, H, W),
                               method="bilinear").reshape(B, D, P)

    # ---- plane sweep warping (glue, data-dependent gather) ----
    warped_BN3DP, masks_BNDP = plane_sweep_batch(
        src_images_BN3HW, depths_BD, src_cams_BN244, tgt_cam_B244, H, W)
    wp = warped_BN3DP.reshape(B, N * 3, D, P)            # free reshape (no transpose)

    # bf16 boundary for the HBM-bound render kernel (casts fuse into producers)
    sw_b = sw_full.astype(jnp.bfloat16)
    mk_b = masks_BNDP.astype(jnp.bfloat16)
    wp_b = wp.astype(jnp.bfloat16)

    # fused generator output head: rows 0:3 image, row 3 confidence logit
    gw2 = jnp.concatenate([params["gw2i"], params["gw2c"]], axis=0)   # (4, HID_GEN)
    gb2 = jnp.concatenate([params["gb2i"], params["gb2c"]], axis=0)   # (4, 1)

    # ---- fused softmax / masking / reductions / Generator / blend (Pallas) ----
    agg, wout, final = pallas_render(
        sw_b, dp_full, wp_b, mk_b,
        params["gw1a"], params["gw1w"], params["gb1"], gw2, gb2,
        N=N, D=D, P=P)

    aggregated_imgs_B3HW = agg.reshape(B, 3, H, W)
    final_out_img_B3HW = final.reshape(B, 3, H, W)
    warped_imgs_BN3HW = wout.reshape(B, N, 3, H, W)
    return aggregated_imgs_B3HW, final_out_img_B3HW, warped_imgs_BN3HW


# ----------------------------------------------------------------------------
# Parameters & example inputs
# ----------------------------------------------------------------------------
def init_params(key, D):
    ks = jax.random.split(key, 8)

    def dense(k, o, i):
        return jax.random.normal(k, (o, i), jnp.float32) * 0.2

    return dict(
        # DepthModel src-weights head (weights stored transposed: (out, in))
        dw1t=dense(ks[0], HID_DEPTH, 3), db1=jnp.zeros((HID_DEPTH, 1), jnp.float32),
        dw2t=dense(ks[1], D, HID_DEPTH), db2=jnp.zeros((D, 1), jnp.float32),
        # DepthModel depth-probs head
        pw1t=dense(ks[2], HID_DEPTH, 3), pb1=jnp.zeros((HID_DEPTH, 1), jnp.float32),
        pw2t=dense(ks[3], D, HID_DEPTH), pb2=jnp.zeros((D, 1), jnp.float32),
        # Generator: first layer split into aggregated / warped halves,
        # second layer split into image (3ch) and confidence (1ch) heads.
        gw1a=dense(ks[4], HID_GEN, 3), gw1w=dense(ks[5], HID_GEN, 3),
        gb1=jnp.zeros((HID_GEN, 1), jnp.float32),
        gw2i=dense(ks[6], 3, HID_GEN), gb2i=jnp.zeros((3, 1), jnp.float32),
        gw2c=dense(ks[7], 1, HID_GEN), gb2c=jnp.zeros((1, 1), jnp.float32),
    )


if __name__ == "__main__":
    B, N, D, H, W = 2, 2, 4, 16, 16

    key = jax.random.PRNGKey(0)
    k_img, k_par = jax.random.split(key)
    src_images = jax.random.uniform(k_img, (B, N, 3, H, W), dtype=jnp.float32)

    # cameras: K embedded in 4x4 at index 0, world-to-camera 4x4 at index 1
    f = float(W)
    K = jnp.array([[f, 0.0, W / 2.0], [0.0, f, H / 2.0], [0.0, 0.0, 1.0]], jnp.float32)
    K44 = jnp.eye(4, dtype=jnp.float32).at[:3, :3].set(K)

    def w2c(tx):
        return jnp.eye(4, dtype=jnp.float32).at[0, 3].set(tx)

    src_cams = jnp.stack(
        [jnp.stack([K44, w2c(0.2 * (n - (N - 1) / 2.0))]) for n in range(N)])       # (N,2,4,4)
    src_cams = jnp.broadcast_to(src_cams, (B, N, 2, 4, 4)).astype(jnp.float32)
    tgt_cam = jnp.broadcast_to(jnp.stack([K44, jnp.eye(4, dtype=jnp.float32)]),
                               (B, 2, 4, 4)).astype(jnp.float32)
    depths = jnp.broadcast_to(jnp.linspace(1.0, 4.0, D, dtype=jnp.float32), (B, D))

    params = init_params(k_par, D)

    fwd = jax.jit(render_model_forward)
    agg, final, warped = fwd(params, src_images, src_cams, tgt_cam, depths)
    jax.tree_util.tree_map(lambda a: a.block_until_ready(), (agg, final, warped))

    assert agg.shape == (B, 3, H, W)
    assert final.shape == (B, 3, H, W)
    assert warped.shape == (B, N, 3, H, W)
    assert jnp.all(jnp.isfinite(agg)) and jnp.all(jnp.isfinite(final))
    assert jnp.all(jnp.isfinite(warped))
    print("KERNEL_OK")
</pallas_src>

<mosaic_0001>
module attributes {stable_mosaic.version = 11 : i64} {
  func.func @mlp2_kernel(%arg0: i32, %arg1: memref<3x256xf32, #tpu.memory_space<vmem>>, %arg2: memref<16x3xf32, #tpu.memory_space<vmem>>, %arg3: memref<16x1xf32, #tpu.memory_space<vmem>>, %arg4: memref<4x16xf32, #tpu.memory_space<vmem>>, %arg5: memref<4x1xf32, #tpu.memory_space<vmem>>, %arg6: memref<4x256xf32, #tpu.memory_space<vmem>>) attributes {dimension_semantics = [#tpu.dimension_semantics<parallel>], iteration_bounds = array<i64: 1>, scalar_prefetch = 0 : i64, scratch_operands = 0 : i64, tpu.core_type = #tpu.core_type<tc>, window_params = [{transform_indices = @transform_0, window_bounds = array<i64: 3, 256>}, {pipeline_mode = #tpu.pipeline_mode<synchronous>, transform_indices = @transform_1, window_bounds = array<i64: 16, 3>}, {pipeline_mode = #tpu.pipeline_mode<synchronous>, transform_indices = @transform_2, window_bounds = array<i64: 16, 1>}, {pipeline_mode = #tpu.pipeline_mode<synchronous>, transform_indices = @transform_3, window_bounds = array<i64: 4, 16>}, {pipeline_mode = #tpu.pipeline_mode<synchronous>, transform_indices = @transform_4, window_bounds = array<i64: 4, 1>}, {transform_indices = @transform_5, window_bounds = array<i64: 4, 256>}]} {
    %c0 = arith.constant 0 : index
    %c0_0 = arith.constant 0 : index
    %0 = vector.load %arg1[%c0, %c0_0] : memref<3x256xf32, #tpu.memory_space<vmem>>, vector<3x256xf32>
    %c0_1 = arith.constant 0 : index
    %c0_2 = arith.constant 0 : index
    %1 = vector.load %arg2[%c0_1, %c0_2] : memref<16x3xf32, #tpu.memory_space<vmem>>, vector<16x3xf32>
    %cst = arith.constant dense<0.000000e+00> : vector<16x256xf32>
    %2 = tpu.matmul %1, %0, %cst {dimension_numbers = #tpu.dot_dimension_numbers<[1], [0], [0], [1], [0, 0, 1, 1], [], []>} : vector<16x3xf32>, vector<3x256xf32>, vector<16x256xf32> -> vector<16x256xf32>
    %c0_3 = arith.constant 0 : index
    %c0_4 = arith.constant 0 : index
    %3 = vector.load %arg3[%c0_3, %c0_4] : memref<16x1xf32, #tpu.memory_space<vmem>>, vector<16x1xf32>
    %4 = vector.broadcast %3 : vector<16x1xf32> to vector<16x256xf32>
    %5 = arith.addf %2, %4 : vector<16x256xf32>
    %cst_5 = arith.constant 0.000000e+00 : f32
    %6 = vector.broadcast %cst_5 : f32 to vector<16x256xf32>
    %7 = arith.maximumf %5, %6 : vector<16x256xf32>
    %c0_6 = arith.constant 0 : index
    %c0_7 = arith.constant 0 : index
    %8 = vector.load %arg4[%c0_6, %c0_7] : memref<4x16xf32, #tpu.memory_space<vmem>>, vector<4x16xf32>
    %cst_8 = arith.constant dense<0.000000e+00> : vector<4x256xf32>
    %9 = tpu.matmul %8, %7, %cst_8 {dimension_numbers = #tpu.dot_dimension_numbers<[1], [0], [0], [1], [0, 0, 1, 1], [], []>} : vector<4x16xf32>, vector<16x256xf32>, vector<4x256xf32> -> vector<4x256xf32>
    %c0_9 = arith.constant 0 : index
    %c0_10 = arith.constant 0 : index
    %10 = vector.load %arg5[%c0_9, %c0_10] : memref<4x1xf32, #tpu.memory_space<vmem>>, vector<4x1xf32>
    %11 = vector.broadcast %10 : vector<4x1xf32> to vector<4x256xf32>
    %12 = arith.addf %9, %11 : vector<4x256xf32>
    %c0_11 = arith.constant 0 : index
    %c0_12 = arith.constant 0 : index
    %13 = vector.load %arg6[%c0_11, %c0_12] : memref<4x256xf32, #tpu.memory_space<vmem>>, vector<4x256xf32>
    tpu.vector_store %arg6[%c0_11, %c0_12], %12 {strides = array<i32>} : memref<4x256xf32, #tpu.memory_space<vmem>>, vector<4x256xf32>,
    return
  }
  func.func @transform_0(%arg0: i32) -> (i32, i32) {
    %c0_i32 = arith.constant 0 : i32
    %c0_i32_0 = arith.constant 0 : i32
    return %c0_i32, %arg0 : i32, i32
  }
  func.func @transform_1(%arg0: i32) -> (i32, i32) {
    %c0_i32 = arith.constant 0 : i32
    %c0_i32_0 = arith.constant 0 : i32
    %c0_i32_1 = arith.constant 0 : i32
    return %c0_i32, %c0_i32_0 : i32, i32
  }
  func.func @transform_2(%arg0: i32) -> (i32, i32) {
    %c0_i32 = arith.constant 0 : i32
    %c0_i32_0 = arith.constant 0 : i32
    %c0_i32_1 = arith.constant 0 : i32
    return %c0_i32, %c0_i32_0 : i32, i32
  }
  func.func @transform_3(%arg0: i32) -> (i32, i32) {
    %c0_i32 = arith.constant 0 : i32
    %c0_i32_0 = arith.constant 0 : i32
    %c0_i32_1 = arith.constant 0 : i32
    return %c0_i32, %c0_i32_0 : i32, i32
  }
  func.func @transform_4(%arg0: i32) -> (i32, i32) {
    %c0_i32 = arith.constant 0 : i32
    %c0_i32_0 = arith.constant 0 : i32
    %c0_i32_1 = arith.constant 0 : i32
    return %c0_i32, %c0_i32_0 : i32, i32
  }
  func.func @transform_5(%arg0: i32) -> (i32, i32) {
    %c0_i32 = arith.constant 0 : i32
    %c0_i32_0 = arith.constant 0 : i32
    return %c0_i32, %arg0 : i32, i32
  }
}

module attributes {stable_mosaic.version = 11 : i64} {
  func.func @mlp2_kernel(%arg0: i32, %arg1: memref<3x128xf32, #tpu.memory_space<vmem>>, %arg2: memref<16x3xf32, #tpu.memory_space<vmem>>, %arg3: memref<16x1xf32, #tpu.memory_space<vmem>>, %arg4: memref<4x16xf32, #tpu.memory_space<vmem>>, %arg5: memref<4x1xf32, #tpu.memory_space<vmem>>, %arg6: memref<4x128xf32, #tpu.memory_space<vmem>>) attributes {dimension_semantics = [#tpu.dimension_semantics<parallel>], iteration_bounds = array<i64: 1>, scalar_prefetch = 0 : i64, scratch_operands = 0 : i64, tpu.core_type = #tpu.core_type<tc>, window_params = [{transform_indices = @transform_0, window_bounds = array<i64: 3, 128>}, {pipeline_mode = #tpu.pipeline_mode<synchronous>, transform_indices = @transform_1, window_bounds = array<i64: 16, 3>}, {pipeline_mode = #tpu.pipeline_mode<synchronous>, transform_indices = @transform_2, window_bounds = array<i64: 16, 1>}, {pipeline_mode = #tpu.pipeline_mode<synchronous>, transform_indices = @transform_3, window_bounds = array<i64: 4, 16>}, {pipeline_mode = #tpu.pipeline_mode<synchronous>, transform_indices = @transform_4, window_bounds = array<i64: 4, 1>}, {transform_indices = @transform_5, window_bounds = array<i64: 4, 128>}]} {
    %c0 = arith.constant 0 : index
    %c0_0 = arith.constant 0 : index
    %0 = vector.load %arg1[%c0, %c0_0] : memref<3x128xf32, #tpu.memory_space<vmem>>, vector<3x128xf32>
    %c0_1 = arith.constant 0 : index
    %c0_2 = arith.constant 0 : index
    %1 = vector.load %arg2[%c0_1, %c0_2] : memref<16x3xf32, #tpu.memory_space<vmem>>, vector<16x3xf32>
    %cst = arith.constant dense<0.000000e+00> : vector<16x128xf32>
    %2 = tpu.matmul %1, %0, %cst {dimension_numbers = #tpu.dot_dimension_numbers<[1], [0], [0], [1], [0, 0, 1, 1], [], []>} : vector<16x3xf32>, vector<3x128xf32>, vector<16x128xf32> -> vector<16x128xf32>
    %c0_3 = arith.constant 0 : index
    %c0_4 = arith.constant 0 : index
    %3 = vector.load %arg3[%c0_3, %c0_4] : memref<16x1xf32, #tpu.memory_space<vmem>>, vector<16x1xf32>
    %4 = vector.broadcast %3 : vector<16x1xf32> to vector<16x128xf32>
    %5 = arith.addf %2, %4 : vector<16x128xf32>
    %cst_5 = arith.constant 0.000000e+00 : f32
    %6 = vector.broadcast %cst_5 : f32 to vector<16x128xf32>
    %7 = arith.maximumf %5, %6 : vector<16x128xf32>
    %c0_6 = arith.constant 0 : index
    %c0_7 = arith.constant 0 : index
    %8 = vector.load %arg4[%c0_6, %c0_7] : memref<4x16xf32, #tpu.memory_space<vmem>>, vector<4x16xf32>
    %cst_8 = arith.constant dense<0.000000e+00> : vector<4x128xf32>
    %9 = tpu.matmul %8, %7, %cst_8 {dimension_numbers = #tpu.dot_dimension_numbers<[1], [0], [0], [1], [0, 0, 1, 1], [], []>} : vector<4x16xf32>, vector<16x128xf32>, vector<4x128xf32> -> vector<4x128xf32>
    %c0_9 = arith.constant 0 : index
    %c0_10 = arith.constant 0 : index
    %10 = vector.load %arg5[%c0_9, %c0_10] : memref<4x1xf32, #tpu.memory_space<vmem>>, vector<4x1xf32>
    %11 = vector.broadcast %10 : vector<4x1xf32> to vector<4x128xf32>
    %12 = arith.addf %9, %11 : vector<4x128xf32>
    %c0_11 = arith.constant 0 : index
    %c0_12 = arith.constant 0 : index
    %13 = vector.load %arg6[%c0_11, %c0_12] : memref<4x128xf32, #tpu.memory_space<vmem>>, vector<4x128xf32>
    tpu.vector_store %arg6[%c0_11, %c0_12], %12 {strides = array<i32>} : memref<4x128xf32, #tpu.memory_space<vmem>>, vector<4x128xf32>,
    return
  }
  func.func @transform_0(%arg0: i32) -> (i32, i32) {
    %c0_i32 = arith.constant 0 : i32
    %c0_i32_0 = arith.constant 0 : i32
    return %c0_i32, %arg0 : i32, i32
  }
  func.func @transform_1(%arg0: i32) -> (i32, i32) {
    %c0_i32 = arith.constant 0 : i32
    %c0_i32_0 = arith.constant 0 : i32
    %c0_i32_1 = arith.constant 0 : i32
    return %c0_i32, %c0_i32_0 : i32, i32
  }
  func.func @transform_2(%arg0: i32) -> (i32, i32) {
    %c0_i32 = arith.constant 0 : i32
    %c0_i32_0 = arith.constant 0 : i32
    %c0_i32_1 = arith.constant 0 : i32
    return %c0_i32, %c0_i32_0 : i32, i32
  }
  func.func @transform_3(%arg0: i32) -> (i32, i32) {
    %c0_i32 = arith.constant 0 : i32
    %c0_i32_0 = arith.constant 0 : i32
    %c0_i32_1 = arith.constant 0 : i32
    return %c0_i32, %c0_i32_0 : i32, i32
  }
  func.func @transform_4(%arg0: i32) -> (i32, i32) {
    %c0_i32 = arith.constant 0 : i32
    %c0_i32_0 = arith.constant 0 : i32
    %c0_i32_1 = arith.constant 0 : i32
    return %c0_i32, %c0_i32_0 : i32, i32
  }
  func.func @transform_5(%arg0: i32) -> (i32, i32) {
    %c0_i32 = arith.constant 0 : i32
    %c0_i32_0 = arith.constant 0 : i32
    return %c0_i32, %arg0 : i32, i32
  }
}

module attributes {stable_mosaic.version = 11 : i64} {
  func.func @render_kernel(%arg0: i32, %arg1: i32, %arg2: memref<1x2x4x256xbf16, #tpu.memory_space<vmem>>, %arg3: memref<1x4x256xf32, #tpu.memory_space<vmem>>, %arg4: memref<1x6x4x256xbf16, #tpu.memory_space<vmem>>, %arg5: memref<1x2x4x256xbf16, #tpu.memory_space<vmem>>, %arg6: memref<32x3xf32, #tpu.memory_space<vmem>>, %arg7: memref<32x3xf32, #tpu.memory_space<vmem>>, %arg8: memref<32x1xf32, #tpu.memory_space<vmem>>, %arg9: memref<4x32xf32, #tpu.memory_space<vmem>>, %arg10: memref<4x1xf32, #tpu.memory_space<vmem>>, %arg11: memref<1x3x256xf32, #tpu.memory_space<vmem>>, %arg12: memref<1x2x3x256xf32, #tpu.memory_space<vmem>>, %arg13: memref<1x3x256xf32, #tpu.memory_space<vmem>>) attributes {dimension_semantics = [#tpu.dimension_semantics<parallel>, #tpu.dimension_semantics<parallel>], iteration_bounds = array<i64: 2, 1>, scalar_prefetch = 0 : i64, scratch_operands = 0 : i64, tpu.core_type = #tpu.core_type<tc>, window_params = [{transform_indices = @transform_0, window_bounds = array<i64: 1, 2, 4, 256>}, {transform_indices = @transform_1, window_bounds = array<i64: 1, 4, 256>}, {transform_indices = @transform_2, window_bounds = array<i64: 1, 6, 4, 256>}, {transform_indices = @transform_3, window_bounds = array<i64: 1, 2, 4, 256>}, {pipeline_mode = #tpu.pipeline_mode<synchronous>, transform_indices = @transform_4, window_bounds = array<i64: 32, 3>}, {pipeline_mode = #tpu.pipeline_mode<synchronous>, transform_indices = @transform_5, window_bounds = array<i64: 32, 3>}, {pipeline_mode = #tpu.pipeline_mode<synchronous>, transform_indices = @transform_6, window_bounds = array<i64: 32, 1>}, {pipeline_mode = #tpu.pipeline_mode<synchronous>, transform_indices = @transform_7, window_bounds = array<i64: 4, 32>}, {pipeline_mode = #tpu.pipeline_mode<synchronous>, transform_indices = @transform_8, window_bounds = array<i64: 4, 1>}, {transform_indices = @transform_9, window_bounds = array<i64: 1, 3, 256>}, {transform_indices = @transform_10, window_bounds = array<i64: 1, 2, 3, 256>}, {transform_indices = @transform_11, window_bounds = array<i64: 1, 3, 256>}]} {
    %c0 = arith.constant 0 : index
    %c0_0 = arith.constant 0 : index
    %c0_1 = arith.constant 0 : index
    %c0_2 = arith.constant 0 : index
    %0 = vector.load %arg2[%c0, %c0_0, %c0_1, %c0_2] : memref<1x2x4x256xbf16, #tpu.memory_space<vmem>>, vector<1x2x4x256xbf16>
    %1 = vector.shape_cast %0 : vector<1x2x4x256xbf16> to vector<2x4x256xbf16>
    %2 = arith.extf %1 : vector<2x4x256xbf16> to vector<2x4x256xf32>
    %c0_3 = arith.constant 0 : index
    %c0_4 = arith.constant 0 : index
    %c0_5 = arith.constant 0 : index
    %c0_6 = arith.constant 0 : index
    %3 = vector.load %arg5[%c0_3, %c0_4, %c0_5, %c0_6] : memref<1x2x4x256xbf16, #tpu.memory_space<vmem>>, vector<1x2x4x256xbf16>
    %4 = vector.shape_cast %3 : vector<1x2x4x256xbf16> to vector<2x4x256xbf16>
    %5 = arith.extf %4 : vector<2x4x256xbf16> to vector<2x4x256xf32>
    %c0_7 = arith.constant 0 : index
    %c0_8 = arith.constant 0 : index
    %c0_9 = arith.constant 0 : index
    %6 = vector.load %arg3[%c0_7, %c0_8, %c0_9] : memref<1x4x256xf32, #tpu.memory_space<vmem>>, vector<1x4x256xf32>
    %7 = vector.shape_cast %6 : vector<1x4x256xf32> to vector<4x256xf32>
    %cst = arith.constant dense<0xFF800000> : vector<4x256xf32>
    %8 = vector.multi_reduction <maximumf>, %2, %cst [0] : vector<2x4x256xf32> to vector<4x256xf32>
    %9 = vector.shape_cast %8 : vector<4x256xf32> to vector<1x4x256xf32>
    %10 = vector.broadcast %9 : vector<1x4x256xf32> to vector<2x4x256xf32>
    %11 = arith.subf %2, %10 : vector<2x4x256xf32>
    %12 = math.exp %11 : vector<2x4x256xf32>
    %13 = arith.mulf %12, %5 : vector<2x4x256xf32>
    %cst_10 = arith.constant dense<0.000000e+00> : vector<4x256xf32>
    %14 = vector.multi_reduction <add>, %13, %cst_10 [0] : vector<2x4x256xf32> to vector<4x256xf32>
    %cst_11 = arith.constant 9.99999993E-9 : f32
    %15 = vector.broadcast %cst_11 : f32 to vector<4x256xf32>
    %16 = arith.addf %14, %15 : vector<4x256xf32>
    %17 = tpu.reciprocal %16 {approx = true} : vector<4x256xf32> -> vector<4x256xf32>
    %cst_12 = arith.constant dense<0xFF800000> : vector<256xf32>
    %18 = vector.multi_reduction <maximumf>, %7, %cst_12 [0] : vector<4x256xf32> to vector<256xf32>
    %19 = vector.shape_cast %18 : vector<256xf32> to vector<1x256xf32>
    %20 = vector.broadcast %19 : vector<1x256xf32> to vector<4x256xf32>
    %21 = arith.subf %7, %20 : vector<4x256xf32>
    %22 = math.exp %21 : vector<4x256xf32>
    %cst_13 = arith.constant dense<0.000000e+00> : vector<256xf32>
    %23 = vector.multi_reduction <add>, %22, %cst_13 [0] : vector<4x256xf32> to vector<256xf32>
    %24 = vector.shape_cast %23 : vector<256xf32> to vector<1x256xf32>
    %25 = tpu.reciprocal %24 {approx = true} : vector<1x256xf32> -> vector<1x256xf32>
    %26 = vector.broadcast %25 : vector<1x256xf32> to vector<4x256xf32>
    %27 = arith.mulf %22, %26 : vector<4x256xf32>
    %cst_14 = arith.constant 0.000000e+00 : f32
    %28 = vector.broadcast %cst_14 : f32 to vector<3x256xf32>
    %c0_15 = arith.constant 0 : index
    %c0_16 = arith.constant 0 : index
    %c0_17 = arith.constant 0 : index
    %c0_18 = arith.constant 0 : index
    %29 = vector.load %arg4[%c0_15, %c0_16, %c0_17, %c0_18] : memref<1x6x4x256xbf16, #tpu.memory_space<vmem>>, vector<1x3x4x256xbf16>
    %30 = vector.shape_cast %29 : vector<1x3x4x256xbf16> to vector<3x4x256xbf16>
    %31 = arith.extf %30 : vector<3x4x256xbf16> to vector<3x4x256xf32>
    %32 = vector.shape_cast %27 : vector<4x256xf32> to vector<1x4x256xf32>
    %33 = vector.broadcast %32 : vector<1x4x256xf32> to vector<3x4x256xf32>
    %34 = arith.mulf %31, %33 : vector<3x4x256xf32>
    %cst_19 = arith.constant dense<0.000000e+00> : vector<3x256xf32>
    %35 = vector.multi_reduction <add>, %34, %cst_19 [1] : vector<3x4x256xf32> to vector<3x256xf32>
    %36 = vector.extract_strided_slice %13 {offsets = [0, 0, 0], sizes = [1, 4, 256], strides = [1, 1, 1]} : vector<2x4x256xf32> to vector<1x4x256xf32>
    %37 = vector.shape_cast %36 : vector<1x4x256xf32> to vector<4x256xf32>
    %38 = arith.mulf %37, %17 : vector<4x256xf32>
    %39 = vector.shape_cast %38 : vector<4x256xf32> to vector<1x4x256xf32>
    %40 = vector.broadcast %39 : vector<1x4x256xf32> to vector<3x4x256xf32>
    %41 = arith.mulf %34, %40 : vector<3x4x256xf32>
    %cst_20 = arith.constant dense<0.000000e+00> : vector<3x256xf32>
    %42 = vector.multi_reduction <add>, %41, %cst_20 [1] : vector<3x4x256xf32> to vector<3x256xf32>
    %43 = arith.addf %28, %42 : vector<3x256xf32>
    %c0_21 = arith.constant 0 : index
    %c0_22 = arith.constant 0 : index
    %c0_23 = arith.constant 0 : index
    %c0_24 = arith.constant 0 : index
    %44 = vector.load %arg12[%c0_21, %c0_22, %c0_23, %c0_24] : memref<1x2x3x256xf32, #tpu.memory_space<vmem>>, vector<1x1x3x256xf32>
    %45 = vector.shape_cast %44 : vector<1x1x3x256xf32> to vector<3x256xf32>
    %46 = vector.shape_cast %35 : vector<3x256xf32> to vector<1x1x3x256xf32>
    tpu.vector_store %arg12[%c0_21, %c0_22, %c0_23, %c0_24], %46 {strides = array<i32>} : memref<1x2x3x256xf32, #tpu.memory_space<vmem>>, vector<1x1x3x256xf32>,
    %c0_25 = arith.constant 0 : index
    %c3 = arith.constant 3 : index
    %c0_26 = arith.constant 0 : index
    %c0_27 = arith.constant 0 : index
    %47 = vector.load %arg4[%c0_25, %c3, %c0_26, %c0_27] : memref<1x6x4x256xbf16, #tpu.memory_space<vmem>>, vector<1x3x4x256xbf16>
    %48 = vector.shape_cast %47 : vector<1x3x4x256xbf16> to vector<3x4x256xbf16>
    %49 = arith.extf %48 : vector<3x4x256xbf16> to vector<3x4x256xf32>
    %50 = vector.shape_cast %27 : vector<4x256xf32> to vector<1x4x256xf32>
    %51 = vector.broadcast %50 : vector<1x4x256xf32> to vector<3x4x256xf32>
    %52 = arith.mulf %49, %51 : vector<3x4x256xf32>
    %cst_28 = arith.constant dense<0.000000e+00> : vector<3x256xf32>
    %53 = vector.multi_reduction <add>, %52, %cst_28 [1] : vector<3x4x256xf32> to vector<3x256xf32>
    %54 = vector.extract_strided_slice %13 {offsets = [1, 0, 0], sizes = [1, 4, 256], strides = [1, 1, 1]} : vector<2x4x256xf32> to vector<1x4x256xf32>
    %55 = vector.shape_cast %54 : vector<1x4x256xf32> to vector<4x256xf32>
    %56 = arith.mulf %55, %17 : vector<4x256xf32>
    %57 = vector.shape_cast %56 : vector<4x256xf32> to vector<1x4x256xf32>
    %58 = vector.broadcast %57 : vector<1x4x256xf32> to vector<3x4x256xf32>
    %59 = arith.mulf %52, %58 : vector<3x4x256xf32>
    %cst_29 = arith.constant dense<0.000000e+00> : vector<3x256xf32>
    %60 = vector.multi_reduction <add>, %59, %cst_29 [1] : vector<3x4x256xf32> to vector<3x256xf32>
    %61 = arith.addf %43, %60 : vector<3x256xf32>
    %c0_30 = arith.constant 0 : index
    %c1 = arith.constant 1 : index
    %c0_31 = arith.constant 0 : index
    %c0_32 = arith.constant 0 : index
    %62 = vector.load %arg12[%c0_30, %c1, %c0_31, %c0_32] : memref<1x2x3x256xf32, #tpu.memory_space<vmem>>, vector<1x1x3x256xf32>
    %63 = vector.shape_cast %62 : vector<1x1x3x256xf32> to vector<3x256xf32>
    %64 = vector.shape_cast %53 : vector<3x256xf32> to vector<1x1x3x256xf32>
    tpu.vector_store %arg12[%c0_30, %c1, %c0_31, %c0_32], %64 {strides = array<i32>} : memref<1x2x3x256xf32, #tpu.memory_space<vmem>>, vector<1x1x3x256xf32>,
    %c0_33 = arith.constant 0 : index
    %c0_34 = arith.constant 0 : index
    %c0_35 = arith.constant 0 : index
    %65 = vector.load %arg11[%c0_33, %c0_34, %c0_35] : memref<1x3x256xf32, #tpu.memory_space<vmem>>, vector<1x3x256xf32>
    %66 = vector.shape_cast %65 : vector<1x3x256xf32> to vector<3x256xf32>
    %67 = vector.shape_cast %61 : vector<3x256xf32> to vector<1x3x256xf32>
    tpu.vector_store %arg11[%c0_33, %c0_34, %c0_35], %67 {strides = array<i32>} : memref<1x3x256xf32, #tpu.memory_space<vmem>>, vector<1x3x256xf32>,
    %c0_36 = arith.constant 0 : index
    %c0_37 = arith.constant 0 : index
    %68 = vector.load %arg6[%c0_36, %c0_37] : memref<32x3xf32, #tpu.memory_space<vmem>>, vector<32x3xf32>
    %cst_38 = arith.constant dense<0.000000e+00> : vector<32x256xf32>
    %69 = tpu.matmul %68, %61, %cst_38 {dimension_numbers = #tpu.dot_dimension_numbers<[1], [0], [0], [1], [0, 0, 1, 1], [], []>} : vector<32x3xf32>, vector<3x256xf32>, vector<32x256xf32> -> vector<32x256xf32>
    %c0_39 = arith.constant 0 : index
    %c0_40 = arith.constant 0 : index
    %70 = vector.load %arg8[%c0_39, %c0_40] : memref<32x1xf32, #tpu.memory_space<vmem>>, vector<32x1xf32>
    %71 = vector.broadcast %70 : vector<32x1xf32> to vector<32x256xf32>
    %72 = arith.addf %69, %71 : vector<32x256xf32>
    %cst_41 = arith.constant 0.000000e+00 : f32
    %73 = vector.broadcast %cst_41 : f32 to vector<3x256xf32>
    %cst_42 = arith.constant 0.000000e+00 : f32
    %74 = vector.broadcast %cst_42 : f32 to vector<1x256xf32>
    %c0_43 = arith.constant 0 : index
    %c0_44 = arith.constant 0 : index
    %75 = vector.load %arg7[%c0_43, %c0_44] : memref<32x3xf32, #tpu.memory_space<vmem>>, vector<32x3xf32>
    %cst_45 = arith.constant dense<0.000000e+00> : vector<32x256xf32>
    %76 = tpu.matmul %75, %35, %cst_45 {dimension_numbers = #tpu.dot_dimension_numbers<[1], [0], [0], [1], [0, 0, 1, 1], [], []>} : vector<32x3xf32>, vector<3x256xf32>, vector<32x256xf32> -> vector<32x256xf32>
    %77 = arith.addf %72, %76 : vector<32x256xf32>
    %cst_46 = arith.constant 0.000000e+00 : f32
    %78 = vector.broadcast %cst_46 : f32 to vector<32x256xf32>
    %79 = arith.maximumf %77, %78 : vector<32x256xf32>
    %c0_47 = arith.constant 0 : index
    %c0_48 = arith.constant 0 : index
    %80 = vector.load %arg9[%c0_47, %c0_48] : memref<4x32xf32, #tpu.memory_space<vmem>>, vector<4x32xf32>
    %cst_49 = arith.constant dense<0.000000e+00> : vector<4x256xf32>
    %81 = tpu.matmul %80, %79, %cst_49 {dimension_numbers = #tpu.dot_dimension_numbers<[1], [0], [0], [1], [0, 0, 1, 1], [], []>} : vector<4x32xf32>, vector<32x256xf32>, vector<4x256xf32> -> vector<4x256xf32>
    %c0_50 = arith.constant 0 : index
    %c0_51 = arith.constant 0 : index
    %82 = vector.load %arg10[%c0_50, %c0_51] : memref<4x1xf32, #tpu.memory_space<vmem>>, vector<4x1xf32>
    %83 = vector.broadcast %82 : vector<4x1xf32> to vector<4x256xf32>
    %84 = arith.addf %81, %83 : vector<4x256xf32>
    %85 = vector.extract_strided_slice %84 {offsets = [3, 0], sizes = [1, 256], strides = [1, 1]} : vector<4x256xf32> to vector<1x256xf32>
    %86 = arith.negf %85 : vector<1x256xf32>
    %87 = math.exp %86 : vector<1x256xf32>
    %cst_52 = arith.constant 1.000000e+00 : f32
    %88 = vector.broadcast %cst_52 : f32 to vector<1x256xf32>
    %89 = arith.addf %88, %87 : vector<1x256xf32>
    %90 = arith.divf %88, %89 : vector<1x256xf32>
    %91 = vector.extract_strided_slice %84 {offsets = [0, 0], sizes = [3, 256], strides = [1, 1]} : vector<4x256xf32> to vector<3x256xf32>
    %92 = vector.broadcast %90 : vector<1x256xf32> to vector<3x256xf32>
    %93 = arith.mulf %91, %92 : vector<3x256xf32>
    %94 = arith.addf %73, %93 : vector<3x256xf32>
    %95 = arith.addf %74, %90 : vector<1x256xf32>
    %c0_53 = arith.constant 0 : index
    %c0_54 = arith.constant 0 : index
    %96 = vector.load %arg7[%c0_53, %c0_54] : memref<32x3xf32, #tpu.memory_space<vmem>>, vector<32x3xf32>
    %cst_55 = arith.constant dense<0.000000e+00> : vector<32x256xf32>
    %97 = tpu.matmul %96, %53, %cst_55 {dimension_numbers = #tpu.dot_dimension_numbers<[1], [0], [0], [1], [0, 0, 1, 1], [], []>} : vector<32x3xf32>, vector<3x256xf32>, vector<32x256xf32> -> vector<32x256xf32>
    %98 = arith.addf %72, %97 : vector<32x256xf32>
    %cst_56 = arith.constant 0.000000e+00 : f32
    %99 = vector.broadcast %cst_56 : f32 to vector<32x256xf32>
    %100 = arith.maximumf %98, %99 : vector<32x256xf32>
    %c0_57 = arith.constant 0 : index
    %c0_58 = arith.constant 0 : index
    %101 = vector.load %arg9[%c0_57, %c0_58] : memref<4x32xf32, #tpu.memory_space<vmem>>, vector<4x32xf32>
    %cst_59 = arith.constant dense<0.000000e+00> : vector<4x256xf32>
    %102 = tpu.matmul %101, %100, %cst_59 {dimension_numbers = #tpu.dot_dimension_numbers<[1], [0], [0], [1], [0, 0, 1, 1], [], []>} : vector<4x32xf32>, vector<32x256xf32>, vector<4x256xf32> -> vector<4x256xf32>
    %c0_60 = arith.constant 0 : index
    %c0_61 = arith.constant 0 : index
    %103 = vector.load %arg10[%c0_60, %c0_61] : memref<4x1xf32, #tpu.memory_space<vmem>>, vector<4x1xf32>
    %104 = vector.broadcast %103 : vector<4x1xf32> to vector<4x256xf32>
    %105 = arith.addf %102, %104 : vector<4x256xf32>
    %106 = vector.extract_strided_slice %105 {offsets = [3, 0], sizes = [1, 256], strides = [1, 1]} : vector<4x256xf32> to vector<1x256xf32>
    %107 = arith.negf %106 : vector<1x256xf32>
    %108 = math.exp %107 : vector<1x256xf32>
    %cst_62 = arith.constant 1.000000e+00 : f32
    %109 = vector.broadcast %cst_62 : f32 to vector<1x256xf32>
    %110 = arith.addf %109, %108 : vector<1x256xf32>
    %111 = arith.divf %109, %110 : vector<1x256xf32>
    %112 = vector.extract_strided_slice %105 {offsets = [0, 0], sizes = [3, 256], strides = [1, 1]} : vector<4x256xf32> to vector<3x256xf32>
    %113 = vector.broadcast %111 : vector<1x256xf32> to vector<3x256xf32>
    %114 = arith.mulf %112, %113 : vector<3x256xf32>
    %115 = arith.addf %94, %114 : vector<3x256xf32>
    %116 = arith.addf %95, %111 : vector<1x256xf32>
    %cst_63 = arith.constant 9.99999993E-9 : f32
    %117 = vector.broadcast %cst_63 : f32 to vector<1x256xf32>
    %118 = arith.addf %116, %117 : vector<1x256xf32>
    %119 = tpu.reciprocal %118 {approx = true} : vector<1x256xf32> -> vector<1x256xf32>
    %120 = vector.broadcast %119 : vector<1x256xf32> to vector<3x256xf32>
    %121 = arith.mulf %115, %120 : vector<3x256xf32>
    %c0_64 = arith.constant 0 : index
    %c0_65 = arith.constant 0 : index
    %c0_66 = arith.constant 0 : index
    %122 = vector.load %arg13[%c0_64, %c0_65, %c0_66] : memref<1x3x256xf32, #tpu.memory_space<vmem>>, vector<1x3x256xf32>
    %123 = vector.shape_cast %122 : vector<1x3x256xf32> to vector<3x256xf32>
    %124 = vector.shape_cast %121 : vector<3x256xf32> to vector<1x3x256xf32>
    tpu.vector_store %arg13[%c0_64, %c0_65, %c0_66], %124 {strides = array<i32>} : memref<1x3x256xf32, #tpu.memory_space<vmem>>, vector<1x3x256xf32>,
    return
  }
  func.func @transform_0(%arg0: i32, %arg1: i32) -> (i32, i32, i32, i32) {
    %c0_i32 = arith.constant 0 : i32
    %c0_i32_0 = arith.constant 0 : i32
    %c0_i32_1 = arith.constant 0 : i32
    return %arg0, %c0_i32, %c0_i32_0, %arg1 : i32, i32, i32, i32
  }
  func.func @transform_1(%arg0: i32, %arg1: i32) -> (i32, i32, i32) {
    %c0_i32 = arith.constant 0 : i32
    %c0_i32_0 = arith.constant 0 : i32
    return %arg0, %c0_i32, %arg1 : i32, i32, i32
  }
  func.func @transform_2(%arg0: i32, %arg1: i32) -> (i32, i32, i32, i32) {
    %c0_i32 = arith.constant 0 : i32
    %c0_i32_0 = arith.constant 0 : i32
    %c0_i32_1 = arith.constant 0 : i32
    return %arg0, %c0_i32, %c0_i32_0, %arg1 : i32, i32, i32, i32
  }
  func.func @transform_3(%arg0: i32, %arg1: i32) -> (i32, i32, i32, i32) {
    %c0_i32 = arith.constant 0 : i32
    %c0_i32_0 = arith.constant 0 : i32
    %c0_i32_1 = arith.constant 0 : i32
    return %arg0, %c0_i32, %c0_i32_0, %arg1 : i32, i32, i32, i32
  }
  func.func @transform_4(%arg0: i32, %arg1: i32) -> (i32, i32) {
    %c0_i32 = arith.constant 0 : i32
    %c0_i32_0 = arith.constant 0 : i32
    %c0_i32_1 = arith.constant 0 : i32
    return %c0_i32, %c0_i32_0 : i32, i32
  }
  func.func @transform_5(%arg0: i32, %arg1: i32) -> (i32, i32) {
    %c0_i32 = arith.constant 0 : i32
    %c0_i32_0 = arith.constant 0 : i32
    %c0_i32_1 = arith.constant 0 : i32
    return %c0_i32, %c0_i32_0 : i32, i32
  }
  func.func @transform_6(%arg0: i32, %arg1: i32) -> (i32, i32) {
    %c0_i32 = arith.constant 0 : i32
    %c0_i32_0 = arith.constant 0 : i32
    %c0_i32_1 = arith.constant 0 : i32
    return %c0_i32, %c0_i32_0 : i32, i32
  }
  func.func @transform_7(%arg0: i32, %arg1: i32) -> (i32, i32) {
    %c0_i32 = arith.constant 0 : i32
    %c0_i32_0 = arith.constant 0 : i32
    %c0_i32_1 = arith.constant 0 : i32
    return %c0_i32, %c0_i32_0 : i32, i32
  }
  func.func @transform_8(%arg0: i32, %arg1: i32) -> (i32, i32) {
    %c0_i32 = arith.constant 0 : i32
    %c0_i32_0 = arith.constant 0 : i32
    %c0_i32_1 = arith.constant 0 : i32
    return %c0_i32, %c0_i32_0 : i32, i32
  }
  func.func @transform_9(%arg0: i32, %arg1: i32) -> (i32, i32, i32) {
    %c0_i32 = arith.constant 0 : i32
    %c0_i32_0 = arith.constant 0 : i32
    return %arg0, %c0_i32, %arg1 : i32, i32, i32
  }
  func.func @transform_10(%arg0: i32, %arg1: i32) -> (i32, i32, i32, i32) {
    %c0_i32 = arith.constant 0 : i32
    %c0_i32_0 = arith.constant 0 : i32
    %c0_i32_1 = arith.constant 0 : i32
    return %arg0, %c0_i32, %c0_i32_0, %arg1 : i32, i32, i32, i32
  }
  func.func @transform_11(%arg0: i32, %arg1: i32) -> (i32, i32, i32) {
    %c0_i32 = arith.constant 0 : i32
    %c0_i32_0 = arith.constant 0 : i32
    return %arg0, %c0_i32, %arg1 : i32, i32, i32
  }
}

</mosaic_0001>

<llo_original>
// kernel: render_model_forward.3
$region0: #{render_model_forward.3}
  #allocation0 [shape = 'u32[]', space=smem, size = 0x4, offset = 0x4, fixed_abs, tag = 'smem constant byte address 0x4 - core index']
  #allocation1 [shape = 'u32[144,128]{1,0:T(1,128)}', space=vmem, size = 0x12000, scoped, tag = 'internal scratch']
  %s0 = inlined_call_operand.vmem [shape: f32[3,256], index: 0, kind: input, shape index: {}]
  %s1 = inlined_call_operand.vmem [shape: f32[16,3], index: 1, kind: input, shape index: {}]
  %s2 = inlined_call_operand.vmem [shape: f32[16,1], index: 2, kind: input, shape index: {}]
  %s3 = inlined_call_operand.hbm [shape: f32[4,16], index: 3, kind: input, shape index: {}]
  %s4 = inlined_call_operand.vmem [shape: f32[4,1], index: 4, kind: input, shape index: {}]
  %s5 = inlined_call_operand.vmem [shape: f32[4,256], index: 5, kind: output, shape index: {}]
  %s6 = sld [smem:[#allocation0]]
  $region34: #{render_model_forward.3} parent=0
    _
  %s8 = ssub.s32 1, %s6
  %s9 = scalar_select 0, %s8, %s6
  $region1: #{render_model_forward.3} parent=0
    #allocation2 [shape = 'u8[2048]{0}', space=vmem, size = 0x800, scoped, tag = 'input window, operand 3, single buffered']
    #allocation3 [shape = 's32[1]{0}', space=sflag, size = 0x4, scoped, tag = 'scoped memory for render_model_forward.3']
    %10 = vsyncpa [#allocation3], 0
    // Predicated region
    $region2: #{render_model_forward.3} parent=1 // pred_check
      _
    $region3: #{render_model_forward.3} parent=1 // pred_check_branch
      %12 = sbr.rel (0) target = $region5
    $region4: #{render_model_forward.3} parent=1 // pred_region
      _
    $region5: #{render_model_forward.3} parent=1 // pred_fallthru
      _
    // Predicated region
    $region6: #{render_model_forward.3} parent=1 // pred_check
      _
    $region7: #{render_model_forward.3} parent=1 // pred_check_branch
      %14 = sbr.rel (0) target = $region9
    $region8: #{render_model_forward.3} parent=1 // pred_region
      _
    $region9: #{render_model_forward.3} parent=1 // pred_fallthru
      _
    // Predicated region
    $region10: #{render_model_forward.3} parent=1 // pred_check
      _
    $region11: #{render_model_forward.3} parent=1 // pred_check_branch
      %16 = sbr.rel (0) target = $region13
    $region12: #{render_model_forward.3} parent=1 // pred_region
      _
    $region13: #{render_model_forward.3} parent=1 // pred_fallthru
      _
    // Predicated region
    $region14: #{render_model_forward.3} parent=1 // pred_check
      _
    $region15: #{render_model_forward.3} parent=1 // pred_check_branch
      %18 = sbr.rel (0) target = $region17
    $region16: #{render_model_forward.3} parent=1 // pred_region
      %s20 = ssub.s32 64, 64
      %21 = vsyncadd [#allocation3], %s20
      %s23 = sshll.u32 [#allocation2], 4
      %s24 = int_to_ptr.vmem [resolvable:$true] %s23
      %26 = dma.hbm_to_vmem [thread:$0]  %s3, 64, %s24, [#allocation3]
    $region17: #{render_model_forward.3} parent=1 // pred_fallthru
      _
    // Predicated region
    $region18: #{render_model_forward.3} parent=1 // pred_check
      _
    $region19: #{render_model_forward.3} parent=1 // pred_check_branch
      %28 = sbr.rel (0) target = $region21
    $region20: #{render_model_forward.3} parent=1 // pred_region
      _
    $region21: #{render_model_forward.3} parent=1 // pred_fallthru
      _
    // Predicated region
    $region22: #{render_model_forward.3} parent=1 // pred_check
      _
    $region23: #{render_model_forward.3} parent=1 // pred_check_branch
      %30 = sbr.rel (0) target = $region25
    $region24: #{render_model_forward.3} parent=1 // pred_region
      %31 = dma.done [#allocation3], 64
    $region25: #{render_model_forward.3} parent=1 // pred_fallthru
      _
    %v32 = vld [vmem:[%s0] sm:$0x77]
    %v33 = vld [vmem:[%s1] sm:$0xff]
    %v34 = vld [vmem:[%s1 + $0x8] sm:$0xff]
    %v35 = vld [vmem:[%s2] sm:$0xff]
    %v36 = vld [vmem:[%s2 + $0x8] sm:$0xff]
    %38 = vset.pattern.permute.xlu0 0
    %39 = vperm.xlu0 %38, %v35
    %v40 = vpop.permute.xlu0 %39
    %43 = vset.pattern.permute.xlu0 0
    %44 = vperm.xlu0 %43, %v36
    %v45 = vpop.permute.xlu0 %44
    %v48 = vcombine.high %v32, %v32
    %vm49 = vcmask 23552
    %v51 = vsel %vm49, %v33, 0
    %v54 = vsel %vm49, %v34, 0
    %vm56 = vcmask 1042432
    %v57 = vsel %vm56, %v32, 0
    %v59 = vsel %vm56, %v48, 0
    %61 = vmatprep.subr.mxu0 %v59
    %62 = vmatpush1.msra.mxu0 %v57
    %63 = vmatprep.subr.mxu0 0.0
    %64 = vmatpush1.msra.mxu0 0.0
    %65 = vmatprep.subr.mxu0 0.0
    %66 = vmatpush1.msra.mxu0 0.0
    %67 = vmatprep.subr.mxu0 0.0
    %68 = vmatpush1.msra.mxu0 0.0
    %69 = vmatprep.subr.mxu0 0.0
    %70 = vmatpush1.msra.mxu0 0.0
    %71 = vmatprep.subr.mxu0 0.0
    %72 = vmatpush1.msra.mxu0 0.0
    %73 = vmatprep.subr.mxu0 0.0
    %74 = vmatpush1.msra.mxu0 0.0
    %75 = vmatprep.subr.mxu0 0.0
    %76 = vmatpush1.msra.mxu0 0.0
    %77 = vmatprep.subr.mxu0 0.0
    %78 = vmatpush1.msra.mxu0 0.0
    %79 = vmatprep.subr.mxu0 0.0
    %80 = vmatpush1.msra.mxu0 0.0
    %81 = vmatprep.subr.mxu0 0.0
    %82 = vmatpush1.msra.mxu0 0.0
    %83 = vmatprep.subr.mxu0 0.0
    %84 = vmatpush1.msra.mxu0 0.0
    %85 = vmatprep.subr.mxu0 0.0
    %86 = vmatpush1.msra.mxu0 0.0
    %87 = vmatprep.subr.mxu0 0.0
    %88 = vmatpush1.msra.mxu0 0.0
    %89 = vmatprep.subr.mxu0 0.0
    %90 = vmatpush1.msra.mxu0 0.0
    %91 = vmatprep.subr.mxu0 0.0
    %92 = vmatpush1.msra.mxu0 0.0
    %93 = vmatprep.subr.mxu0 0.0
    %94 = vmatpush1.msra.mxu0 0.0
    %95 = vmatprep.subr.mxu0 0.0
    %96 = vmatpush1.msra.mxu0 0.0
    %97 = vmatprep.subr.mxu0 0.0
    %98 = vmatpush1.msra.mxu0 0.0
    %99 = vmatprep.subr.mxu0 0.0
    %100 = vmatpush1.msra.mxu0 0.0
    %101 = vmatprep.subr.mxu0 0.0
    %102 = vmatpush1.msra.mxu0 0.0
    %103 = vmatprep.subr.mxu0 0.0
    %104 = vmatpush1.msra.mxu0 0.0
    %105 = vmatprep.subr.mxu0 0.0
    %106 = vmatpush1.msra.mxu0 0.0
    %107 = vmatprep.subr.mxu0 0.0
    %108 = vmatpush1.msra.mxu0 0.0
    %109 = vmatprep.subr.mxu0 0.0
    %110 = vmatpush1.msra.mxu0 0.0
    %111 = vmatprep.subr.mxu0 0.0
    %112 = vmatpush1.msra.mxu0 0.0
    %113 = vmatprep.subr.mxu0 0.0
    %114 = vmatpush1.msra.mxu0 0.0
    %115 = vmatprep.subr.mxu0 0.0
    %116 = vmatpush1.msra.mxu0 0.0
    %117 = vmatprep.subr.mxu0 0.0
    %118 = vmatpush1.msra.mxu0 0.0
    %119 = vmatprep.subr.mxu0 0.0
    %120 = vmatpush1.msra.mxu0 0.0
    %121 = vmatprep.subr.mxu0 0.0
    %122 = vmatpush1.msra.mxu0 0.0
    %123 = vmatprep.subr.mxu0 0.0
    %124 = vmatpush1.msra.mxu0 0.0
    %125 = vmatprep.mubr.f32.mxu0 0.0
    %126 = vmatmul.mubr.f32.gmra.mrb[0].mxu0 %v51
    %v127 = vpop.f32.mrb[0].mxu0
    %v128 = vadd.f32 %v40, %v127
    %v129 = vpop.f32.mrb[0].mxu0
    %v130 = vadd.f32 %v40, %v129
    %131 = vmatprep.mubr.f32.mxu0 0.0
    %132 = vmatmul.mubr.f32.gmra.mrb[0].mxu0 %v54
    %v133 = vpop.f32.mrb[0].mxu0
    %v134 = vadd.f32 %v45, %v133
    %v135 = vpop.f32.mrb[0].mxu0
    %v136 = vadd.f32 %v45, %v135
    %137 = vdwg.mxu0
    %v138 = vmax.f32 %v128, 0.0
    %v139 = vmax.f32 %v130, 0.0
    %v140 = vmax.f32 %v134, 0.0
    %v141 = vmax.f32 %v136, 0.0
    %v142 = vld [vmem:[#allocation2] sm:$0xf]
    %v143 = vld [vmem:[%s4] sm:$0xf]
    %145 = vset.pattern.permute.xlu0 0
    %146 = vperm.xlu0 %145, %v143
    %v147 = vpop.permute.xlu0 %146
    %vm149 = vcmask 130048
    %v151 = vsel %vm149, %v142, 0
    %153 = vmatprep.subr.mxu0 %v139
    %154 = vmatpush1.msra.mxu0 %v138
    %155 = vmatprep.subr.mxu0 %v141
    %156 = vmatpush1.msra.mxu0 %v140
    %157 = vmatprep.subr.mxu0 0.0
    %158 = vmatpush1.msra.mxu0 0.0
    %159 = vmatprep.subr.mxu0 0.0
    %160 = vmatpush1.msra.mxu0 0.0
    %161 = vmatprep.subr.mxu0 0.0
    %162 = vmatpush1.msra.mxu0 0.0
    %163 = vmatprep.subr.mxu0 0.0
    %164 = vmatpush1.msra.mxu0 0.0
    %165 = vmatprep.subr.mxu0 0.0
    %166 = vmatpush1.msra.mxu0 0.0
    %167 = vmatprep.subr.mxu0 0.0
    %168 = vmatpush1.msra.mxu0 0.0
    %169 = vmatprep.subr.mxu0 0.0
    %170 = vmatpush1.msra.mxu0 0.0
    %171 = vmatprep.subr.mxu0 0.0
    %172 = vmatpush1.msra.mxu0 0.0
    %173 = vmatprep.subr.mxu0 0.0
    %174 = vmatpush1.msra.mxu0 0.0
    %175 = vmatprep.subr.mxu0 0.0
    %176 = vmatpush1.msra.mxu0 0.0
    %177 = vmatprep.subr.mxu0 0.0
    %178 = vmatpush1.msra.mxu0 0.0
    %179 = vmatprep.subr.mxu0 0.0
    %180 = vmatpush1.msra.mxu0 0.0
    %181 = vmatprep.subr.mxu0 0.0
    %182 = vmatpush1.msra.mxu0 0.0
    %183 = vmatprep.subr.mxu0 0.0
    %184 = vmatpush1.msra.mxu0 0.0
    %185 = vmatprep.subr.mxu0 0.0
    %186 = vmatpush1.msra.mxu0 0.0
    %187 = vmatprep.subr.mxu0 0.0
    %188 = vmatpush1.msra.mxu0 0.0
    %189 = vmatprep.subr.mxu0 0.0
    %190 = vmatpush1.msra.mxu0 0.0
    %191 = vmatprep.subr.mxu0 0.0
    %192 = vmatpush1.msra.mxu0 0.0
    %193 = vmatprep.subr.mxu0 0.0
    %194 = vmatpush1.msra.mxu0 0.0
    %195 = vmatprep.subr.mxu0 0.0
    %196 = vmatpush1.msra.mxu0 0.0
    %197 = vmatprep.subr.mxu0 0.0
    %198 = vmatpush1.msra.mxu0 0.0
    %199 = vmatprep.subr.mxu0 0.0
    %200 = vmatpush1.msra.mxu0 0.0
    %201 = vmatprep.subr.mxu0 0.0
    %202 = vmatpush1.msra.mxu0 0.0
    %203 = vmatprep.subr.mxu0 0.0
    %204 = vmatpush1.msra.mxu0 0.0
    %205 = vmatprep.subr.mxu0 0.0
    %206 = vmatpush1.msra.mxu0 0.0
    %207 = vmatprep.subr.mxu0 0.0
    %208 = vmatpush1.msra.mxu0 0.0
    %209 = vmatprep.subr.mxu0 0.0
    %210 = vmatpush1.msra.mxu0 0.0
    %211 = vmatprep.subr.mxu0 0.0
    %212 = vmatpush1.msra.mxu0 0.0
    %213 = vmatprep.subr.mxu0 0.0
    %214 = vmatpush1.msra.mxu0 0.0
    %215 = vmatprep.subr.mxu0 0.0
    %216 = vmatpush1.msra.mxu0 0.0
    %217 = vmatprep.mubr.f32.mxu0 0.0
    %218 = vmatmul.mubr.f32.gmra.mrb[0].mxu0 %v151
    %v219 = vpop.f32.mrb[0].mxu0
    %v220 = vadd.f32 %v147, %v219
    %v221 = vpop.f32.mrb[0].mxu0
    %v222 = vadd.f32 %v147, %v221
    %223 = vdwg.mxu0
    %v226 = vcombine.low %v220, %v222
    %228 = vst [vmem:[%s5] sm:$0xff] %v226
    // Predicated region
    $region26: #{render_model_forward.3} parent=1 // pred_check
      _
    $region27: #{render_model_forward.3} parent=1 // pred_check_branch
      %230 = sbr.rel (0) target = $region29
    $region28: #{render_model_forward.3} parent=1 // pred_region
      _
    $region29: #{render_model_forward.3} parent=1 // pred_fallthru
      _
    // Predicated region
    $region30: #{render_model_forward.3} parent=1 // pred_check
      _
    $region31: #{render_model_forward.3} parent=1 // pred_check_branch
      %232 = sbr.rel (0) target = $region33
    $region32: #{render_model_forward.3} parent=1 // pred_region
      _
    $region33: #{render_model_forward.3} parent=1 // pred_fallthru
      _
    %233 = vsyncpa [#allocation3], 1

// kernel: custom-call.25
$region0: #{custom-call.25}
  %s0 = inlined_call_operand.vmem [shape: f32[2,4,4], index: 0, kind: input, shape index: {}]
  %s1 = inlined_call_operand.vmem [shape: f32[2,4,4], index: 1, kind: output, shape index: {0}]
  %s2 = inlined_call_operand.hbm [shape: s32[2,4], index: 2, kind: output, shape index: {1}]
  %s3 = inlined_call_operand.vmem [shape: s32[2,4], index: 3, kind: output, shape index: {2}]
  %4 = xla_tuple %s1, %s2, %s3
  $region1: #{custom-call.25} parent=0
    #allocation0 [shape = 'u8[4096]{0}', space=vmem, size = 0x1000, scoped, tag = 'operand span for operand 0']
    #allocation1 [shape = 'u8[4096]{0}', space=vmem, size = 0x1000, scoped, tag = 'packed  for operand 0']
    #allocation2 [shape = 'u8[4096]{0}', space=vmem, size = 0x1000, scoped, tag = 'operand span for operand 1']
    #allocation3 [shape = 'u8[4096]{0}', space=vmem, size = 0x1000, scoped, tag = 'packed  for operand 1']
    #allocation4 [shape = 'u8[4096]{0}', space=vmem, size = 0x1000, scoped, tag = 'operand span for operand 2']
    #allocation5 [shape = 'u8[2048]{0}', space=vmem, size = 0x800, scoped, tag = 'packed  for operand 2']
    #allocation6 [shape = 's32[2]{0}', space=sflag, size = 0x8, scoped, tag = 'scoped memory for custom-call.25']
    #allocation7 [shape = 'u8[4096]{0}', space=vmem, size = 0x1000, scoped, tag = 'operand span for operand 3']
    #allocation8 [shape = 'u8[2048]{0}', space=vmem, size = 0x800, scoped, tag = 'packed  for operand 3']
    %5 = vsyncpa [#allocation6], 0
    %s6 = scalar_lea.sflag [#allocation6], 1
    %7 = vsyncpa %s6, 0
    loop: start=0, step=1, limit=4
    $region2: #{custom-call.25} parent=1 // loop_pre_header
      _
    $region3: #{custom-call.25} parent=1 // loop_header
      %s9 = sphi 0, %s13
      %p10 = scmp.ge.s32.totalorder %s9, 4
      %s21 = sphi 0, %s23
      %s24 = sphi 0, %s21
      %s25 = sphi 0, %s24
      %s41 = sphi 0, %s25
      %s49 = sphi 0, %s51
      %s52 = sphi 0, %s49
      %s53 = sphi 0, %s52
      %s69 = sphi 0, %s53
    $region4: #{custom-call.25} parent=1 // loop_header_branch
      %12 = sbr.rel (%p10) target = $region8
    $region5: #{custom-call.25} parent=1 // loop_body
      %s14 = ssub.s32 %s9, 1
      %s15 = ssub.s32 %s9, 2
      %s16 = sadd.s32 %s9, 1
      %s17 = sshrl.u32 %s9, 3
      %s18 = sshrl.u32 %s16, 3
      %s19 = ssub.s32 %s17, %s18
      %p20 = scmp.eq.s32.totalorder %s19, 0
      %s22 = sadd.s32 %s21, 1
      %s23 = scalar_select %p20, %s21, %s22
      %p26 = pneg %p20
      %p27 = scmp.eq.s32.totalorder %s9, 1
      %p28 = por %p26, %p27
      %p29 = scmp.ne.s32.totalorder %s21, %s24
      %p30 = scmp.eq.s32.totalorder %s9, 0
      %p31 = por %p29, %p30
      %p32 = scmp.ne.s32.totalorder %s21, %s24
      %p33 = scmp.eq.s32.totalorder %s14, 1
      %p34 = por %p32, %p33
      %p35 = scmp.ne.s32.totalorder %s24, %s25
      %p36 = scmp.eq.s32.totalorder %s14, 0
      %p37 = por %p35, %p36
      %p38 = scmp.ne.s32.totalorder %s24, %s25
      %p39 = scmp.eq.s32.totalorder %s15, 1
      %p40 = por %p38, %p39
      %p42 = scmp.ne.s32.totalorder %s25, %s41
      %p43 = scmp.eq.s32.totalorder %s15, 0
      %p44 = por %p42, %p43
      %s45 = sshrl.u32 %s9, 3
      %s46 = sshrl.u32 %s16, 3
      %s47 = ssub.s32 %s45, %s46
      %p48 = scmp.eq.s32.totalorder %s47, 0
      %s50 = sadd.s32 %s49, 1
      %s51 = scalar_select %p48, %s49, %s50
      %p54 = pneg %p48
      %p55 = scmp.eq.s32.totalorder %s9, 1
      %p56 = por %p54, %p55
      %p57 = scmp.ne.s32.totalorder %s49, %s52
      %p58 = scmp.eq.s32.totalorder %s9, 0
      %p59 = por %p57, %p58
      %p60 = scmp.ne.s32.totalorder %s49, %s52
      %p61 = scmp.eq.s32.totalorder %s14, 1
      %p62 = por %p60, %p61
      %p63 = scmp.ne.s32.totalorder %s52, %s53
      %p64 = scmp.eq.s32.totalorder %s14, 0
      %p65 = por %p63, %p64
      %p66 = scmp.ne.s32.totalorder %s52, %s53
      %p67 = scmp.eq.s32.totalorder %s15, 1
      %p68 = por %p66, %p67
      %p70 = scmp.ne.s32.totalorder %s53, %s69
      %p71 = scmp.eq.s32.totalorder %s15, 0
      %p72 = por %p70, %p71
      %p73 = scmp.le.s32.totalorder 1, %s9
      %p74 = scmp.lt.s32.totalorder %s9, 3
      %p75 = pnand %p73, %p74
      %p76 = pneg %p75
      // Predicated region
      $region9: #{custom-call.25} parent=5 // pred_check
        _
      $region10: #{custom-call.25} parent=5 // pred_check_branch
        %78 = sbr.rel (%p75) target = $region12
      $region11: #{custom-call.25} parent=5 // pred_region
        %s79 = ssub.s32 %s9, 1
      $region12: #{custom-call.25} parent=5 // pred_fallthru
        _
      %p80 = scmp.lt.s32.totalorder %s9, 2
      // Predicated region
      $region13: #{custom-call.25} parent=5 // pred_check
        %p81 = pneg %p80
      $region14: #{custom-call.25} parent=5 // pred_check_branch
        %83 = sbr.rel (%p81) target = $region16
      $region15: #{custom-call.25} parent=5 // pred_region
        %s84 = sand.u32 %s9, 1
        %s85 = sand.u32 %s9, 1
        %s86 = smul.addr %s85, 4
        %s87 = scalar_lea.vmem [#allocation1], %s86
        %s88 = smul.addr %s9, 4
        %s89 = scalar_lea.vmem %s0, %s88
        // Predicated region
        $region17: #{custom-call.25} parent=15 // pred_check
          _
        $region18: #{custom-call.25} parent=15 // pred_check_branch
          %91 = sbr.rel (0) target = $region20
        $region19: #{custom-call.25} parent=15 // pred_region
          // Predicated region
          $region21: #{custom-call.25} parent=19 // pred_check
            _
          $region22: #{custom-call.25} parent=19 // pred_check_branch
            %93 = sbr.rel target = $region24
          $region23: #{custom-call.25} parent=19 // pred_region
            // Predicated region
            $region36: #{custom-call.25} parent=23 // pred_check
              _
            $region37: #{custom-call.25} parent=23 // pred_check_branch
              %108 = sbr.rel (0) target = $region39
            $region38: #{custom-call.25} parent=23 // pred_region
              loop: start=0, step=1, limit=1
              $region40: #{custom-call.25} parent=38 // loop_pre_header
                _
              $region41: #{custom-call.25} parent=38 // loop_header
                %s111 = sphi 0, %s115
                %p112 = scmp.ge.s32.totalorder %s111, 1
                %s116 = sphi %s89, %s89
                %s117 = sphi %s87, %s87
              $region42: #{custom-call.25} parent=38 // loop_header_branch
                %114 = sbr.rel (%p112) target = $region46
              $region43: #{custom-call.25} parent=38 // loop_body
                %v118 = vld [vmem:[%s116] sm:$0xf]
                %119 = vst [vmem:[%s117] sm:$0xf] %v118
              $region44: #{custom-call.25} parent=38 // loop_footer
                %s115 = sadd.s32 1, %s111
              $region45: #{custom-call.25} parent=38 // loop_footer_branch
                %110 = sbr.rel target = $region41
              $region46: #{custom-call.25} parent=38 // loop_exit
                _
            $region39: #{custom-call.25} parent=23 // pred_fallthru
              _
          $region24: #{custom-call.25} parent=19 // pred_fallthru
            _
          // Predicated region
          $region25: #{custom-call.25} parent=19 // pred_check
            _
          $region26: #{custom-call.25} parent=19 // pred_check_branch
            %95 = sbr.rel (0) target = $region28
          $region27: #{custom-call.25} parent=19 // pred_region
            loop: start=0, step=1, limit=1
            $region29: #{custom-call.25} parent=27 // loop_pre_header
              _
            $region30: #{custom-call.25} parent=27 // loop_header
              %s98 = sphi 0, %s102
              %p99 = scmp.ge.s32.totalorder %s98, 1
              %s103 = sphi %s89, %s89
              %s104 = sphi %s87, %s87
            $region31: #{custom-call.25} parent=27 // loop_header_branch
              %101 = sbr.rel (%p99) target = $region35
            $region32: #{custom-call.25} parent=27 // loop_body
              %v105 = vld [vmem:[%s103] sm:$0xf]
              %106 = vst [vmem:[%s104] sm:$0xf] %v105
            $region33: #{custom-call.25} parent=27 // loop_footer
              %s102 = sadd.s32 1, %s98
            $region34: #{custom-call.25} parent=27 // loop_footer_branch
              %97 = sbr.rel target = $region30
            $region35: #{custom-call.25} parent=27 // loop_exit
              _
          $region28: #{custom-call.25} parent=19 // pred_fallthru
            _
        $region20: #{custom-call.25} parent=15 // pred_fallthru
          _
        %120 = vnop
      $region16: #{custom-call.25} parent=5 // pred_fallthru
        _
      %p121 = scmp.le.s32.totalorder 1, %s9
      %p122 = scmp.lt.s32.totalorder %s9, 3
      %p123 = pnand %p121, %p122
      %p124 = pneg %p123
      // Predicated region
      $region47: #{custom-call.25} parent=5 // pred_check
        _
      $region48: #{custom-call.25} parent=5 // pred_check_branch
        %126 = sbr.rel (%p123) target = $region50
      $region49: #{custom-call.25} parent=5 // pred_region
        #allocation9 [shape = 's32[4,128]{1,0}', space=vmem, size = 0x1000, scoped, tag = 'scratch for permutations']
        %s127 = ssub.s32 %s9, 1
        %s128 = sand.u32 %s14, 1
        %s129 = sand.u32 %s14, 1
        %s130 = smul.addr %s129, 4
        %s131 = scalar_lea.vmem [#allocation1], %s130
        %s132 = sand.u32 %s14, 1
        %s133 = sand.u32 %s14, 1
        %s134 = smul.addr %s133, 4
        %s135 = scalar_lea.vmem [#allocation1], %s134
        %s136 = sand.u32 %s14, 1
        %s137 = sand.u32 %s14, 1
        %s138 = smul.addr %s137, 4
        %s139 = scalar_lea.vmem [#allocation3], %s138
        %p140 = pneg %p37
        %p141 = pneg %p34
        %s142 = sand.u32 %s24, 1
        %s143 = scalar_lea.sflag [#allocation6], %s142
        %s144 = sand.u32 %s24, 1
        %s145 = smul.addr %s144, 2
        %s146 = scalar_lea.vmem [#allocation5], %s145
        %p147 = pneg %p65
        %p148 = pneg %p62
        %s149 = sand.u32 %s52, 1
        %s150 = sand.u32 %s52, 1
        %s151 = smul.addr %s150, 2
        %s152 = scalar_lea.vmem [#allocation8], %s151
        %s154 = sshllo.u32 0, 4
        %v155 = vld [vmem:[%s135] sm:%s154]
        %156 = vst [vmem:[#allocation0] sm:%s154] %v155
        %s157 = sshrl.u32 %s14, 3
        %s158 = sshrl.u32 %s14, 3
        %v159 = vld [vmem:[#allocation0] sm:$0xff]
        %160 = vst [vmem:[#allocation2] sm:$0xff] %v159
        %s161 = sand.u32 %s14, 7
        %s162 = scalar_lea.vmem [#allocation4], %s161
        %s163 = sand.u32 %s14, 7
        %s164 = scalar_lea.vmem [#allocation7], %s163
        %165 = vst [vmem:[%s162] sm:$0x1] 0
        %v166 = vlaneseq
        %v167 = vshrl.u32 %v166, 7
        %v168 = vmov %v167
        %170 = vst [vmem:[#allocation9] sm:$0xff] %v168
        loop: start=0, step=1, limit=4
        $region52: #{custom-call.25} parent=49 // loop_pre_header
          _
        $region53: #{custom-call.25} parent=49 // loop_header
          %s172 = sphi 0, %s176
          %p173 = scmp.ge.s32.totalorder %s172, 4
        $region54: #{custom-call.25} parent=49 // loop_header_branch
          %175 = sbr.rel (%p173) target = $region58
        $region55: #{custom-call.25} parent=49 // loop_body
          %v177 = vstv %s172
          %v178 = vlaneseq
          %v179 = vshrl.u32 %v178, 7
          %v180 = vmov %v179
          %v181 = vld [vmem:[#allocation2] sm:$0xff]
          %v182 = vand.u32 2147483647, %v181
          %v184 = vstv %s172
          %vm185 = vcmp.ge.s32.totalorder %v180, %v184
          %vm186 = vcmp.lt.s32.totalorder %v180, 4
          %vm187 = vmand %vm185, %vm186
          %vm188 = vcmp.lt.f32.partialorder -inf, %v182
          %vm189 = vmand %vm187, %vm188
          %v190 = vsel %vm189, %v180, %v177
          %v191 = vsel %vm189, %v182, -inf
          %v192 = vrot.slane %v191, 1
          %v193 = vrot.slane %v190, 1
          %vm194 = vcmp.ge.f32.partialorder %v192, %v191
          %v195 = vsel %vm194, %v192, %v191
          %v196 = vsel %vm194, %v193, %v190
          %v197 = vrot.slane %v192, 1
          %v198 = vrot.slane %v193, 1
          %vm199 = vcmp.ge.f32.partialorder %v197, %v195
          %v200 = vsel %vm199, %v197, %v195
          %v201 = vsel %vm199, %v198, %v196
          %v202 = vrot.slane %v197, 1
          %v203 = vrot.slane %v198, 1
          %vm204 = vcmp.ge.f32.partialorder %v202, %v200
          %v205 = vsel %vm204, %v202, %v200
          %v206 = vsel %vm204, %v203, %v201
          %v207 = vrot.slane %v202, 1
          %v208 = vrot.slane %v203, 1
          %vm209 = vcmp.ge.f32.partialorder %v207, %v205
          %v210 = vsel %vm209, %v207, %v205
          %v211 = vsel %vm209, %v208, %v206
          %v212 = vrot.slane %v207, 1
          %v213 = vrot.slane %v208, 1
          %vm214 = vcmp.ge.f32.partialorder %v212, %v210
          %v215 = vsel %vm214, %v212, %v210
          %v216 = vsel %vm214, %v213, %v211
          %v217 = vrot.slane %v212, 1
          %v218 = vrot.slane %v213, 1
          %vm219 = vcmp.ge.f32.partialorder %v217, %v215
          %v220 = vsel %vm219, %v217, %v215
          %v221 = vsel %vm219, %v218, %v216
          %v222 = vrot.slane %v217, 1
          %v223 = vrot.slane %v218, 1
          %vm224 = vcmp.ge.f32.partialorder %v222, %v220
          %v225 = vsel %vm224, %v222, %v220
          %v226 = vsel %vm224, %v223, %v221
          %s227 = ssub.s32 128, %s172
          %228 = vrot.lane.b32.xlu0 %v226, %s227
          %v229 = vpop.permute.xlu0 %228
          %s230 = vtos %v229
          %v231 = vstv %s172
          %v232 = vlaneseq
          %v233 = vand.u32 %v232, 127
          %vm234 = vcmp.eq.s32.totalorder %v233, %v231
          %v235 = vstv %s230
          %v236 = vld [vmem:[%s162] ss:$0 sm:$0xff]
          %v237 = vsel %vm234, %v235, %v236
          %238 = vst [vmem:[%s162] sm:$0x1] %v237
          %s239 = scalar_lea.vmem [#allocation2], %s172
          %s240 = scalar_lea.vmem [#allocation2], %s230
          %v241 = vld [vmem:[%s239] ss:$0 sm:$0xff]
          %v242 = vld [vmem:[%s240] ss:$0 sm:$0xff]
          %243 = vst [vmem:[%s240] sm:$0x1] %v241
          %244 = vst [vmem:[%s239] sm:$0x1] %v242
          %s245 = scalar_lea.vmem [#allocation9], %s172
          %s246 = scalar_lea.vmem [#allocation9], %s230
          %v247 = vld [vmem:[%s245] ss:$0 sm:$0xff]
          %v248 = vld [vmem:[%s246] ss:$0 sm:$0xff]
          %249 = vst [vmem:[%s246] sm:$0x1] %v247
          %250 = vst [vmem:[%s245] sm:$0x1] %v248
          %vm251 = vcmp.ne.f32.partialorder %v242, 0.0
          %vm252 = vmand %vm234, %vm251
          %v253 = vsel %vm252, %v242, 1.0
          %v254 = vlaneseq
          %v255 = vand.u32 %v254, 127
          %v256 = vstv %s172
          %vm257 = vcmp.gt.s32.totalorder %v255, %v256
          %v258 = vsel %vm257, %v242, 0.0
          %v259 = vlaneseq
          %v260 = vshrl.u32 %v259, 7
          %v261 = vmov %v260
          %v262 = vld [vmem:[#allocation2] sm:$0xff]
          %v264 = vstv %s172
          %vm265 = vcmp.gt.s32.totalorder %v261, %v264
          %v266 = vsel %vm265, %v253, 1.0
          %v267 = vrcp.pop %v266
          %v268 = vmul.f32 %v262, %v267
          %vm269 = vmand %vm265, %vm234
          %v270 = vsel %vm269, %v268, 0.0
          %271 = vadd.xlane.f32.xlu0 %v270
          %v272 = vpop.xlane.xlu0 %271
          %v273 = vmul.f32 %v272, %v258
          %v274 = vsub.f32 %v268, %v273
          %275 = vst [vmem:[#allocation2] sm:$0xff] %v274
        $region56: #{custom-call.25} parent=49 // loop_footer
          %s176 = sadd.s32 1, %s172
        $region57: #{custom-call.25} parent=49 // loop_footer_branch
          %171 = sbr.rel target = $region53
        $region58: #{custom-call.25} parent=49 // loop_exit
          _
        %v276 = vld [vmem:[#allocation9] sm:$0xff]
        %s277 = scalar_lea.vmem [#allocation9], 8
        %s278 = scalar_lea.vmem [#allocation9], 16
        %s279 = scalar_lea.vmem [#allocation9], 24
        %s280 = scalar_lea.vmem [#allocation9], 32
        %s281 = scalar_lea.vmem [#allocation9], 40
        %s282 = scalar_lea.vmem [#allocation9], 48
        %s283 = scalar_lea.vmem [#allocation9], 56
        %s284 = scalar_lea.vmem [#allocation9], 64
        %s285 = scalar_lea.vmem [#allocation9], 72
        %s286 = scalar_lea.vmem [#allocation9], 80
        %s287 = scalar_lea.vmem [#allocation9], 88
        %s288 = scalar_lea.vmem [#allocation9], 96
        %s289 = scalar_lea.vmem [#allocation9], 104
        %s290 = scalar_lea.vmem [#allocation9], 112
        %s291 = scalar_lea.vmem [#allocation9], 120
        %292 = vxpose.xlu0.b32.start [1/16] %v276, 128
        %293 = vxpose.xlu0.b32.cont [2/16] 0, 128
        %294 = vxpose.xlu0.b32.cont [3/16] 0, 128
        %295 = vxpose.xlu0.b32.cont [4/16] 0, 128
        %296 = vxpose.xlu0.b32.cont [5/16] 0, 128
        %297 = vxpose.xlu0.b32.cont [6/16] 0, 128
        %298 = vxpose.xlu0.b32.cont [7/16] 0, 128
        %299 = vxpose.xlu0.b32.cont [8/16] 0, 128
        %300 = vxpose.xlu0.b32.cont [9/16] 0, 128
        %301 = vxpose.xlu0.b32.cont [10/16] 0, 128
        %302 = vxpose.xlu0.b32.cont [11/16] 0, 128
        %303 = vxpose.xlu0.b32.cont [12/16] 0, 128
        %304 = vxpose.xlu0.b32.cont [13/16] 0, 128
        %305 = vxpose.xlu0.b32.cont [14/16] 0, 128
        %306 = vxpose.xlu0.b32.cont [15/16] 0, 128
        %307 = vxpose.xlu0.b32.end [16/16] 0, 128
        %v308 = vpop.trf.xlu0
        %v309 = vpop.trf.xlu0
        %v310 = vpop.trf.xlu0
        %v311 = vpop.trf.xlu0
        %v312 = vpop.trf.xlu0
        %v313 = vpop.trf.xlu0
        %v314 = vpop.trf.xlu0
        %v315 = vpop.trf.xlu0
        %v316 = vpop.trf.xlu0
        %v317 = vpop.trf.xlu0
        %v318 = vpop.trf.xlu0
        %v319 = vpop.trf.xlu0
        %v320 = vpop.trf.xlu0
        %v321 = vpop.trf.xlu0
        %v322 = vpop.trf.xlu0
        %v323 = vpop.trf.xlu0
        %324 = vst [vmem:[%s164] sm:$0x1] %v308
        %s326 = sshllo.u32 0, 4
        %v328 = vld [vmem:[#allocation2] sm:%s326]
        %s329 = sshllo.u32 0, 4
        %330 = vst [vmem:[%s139] sm:%s329] %v328
        %s332 = sshllo.u32 0, 2
        %v334 = vld [vmem:[#allocation4] sm:%s332]
        %s335 = sshllo.u32 0, 2
        %336 = vst [vmem:[%s146] sm:%s335] %v334
        %s338 = sshllo.u32 0, 2
        %v340 = vld [vmem:[#allocation7] sm:%s338]
        %s341 = sshllo.u32 0, 2
        %342 = vst [vmem:[%s152] sm:%s341] %v340
        %s343 = sand.u32 %s14, 1
        %s344 = sand.u32 %s14, 1
        %s345 = smul.addr %s344, 4
        %s346 = scalar_lea.vmem [#allocation3], %s345
        %s347 = sand.u32 %s24, 1
        %s348 = scalar_lea.sflag [#allocation6], %s347
        %s349 = sand.u32 %s24, 1
        %s350 = smul.addr %s349, 2
        %s351 = scalar_lea.vmem [#allocation5], %s350
        %s352 = sand.u32 %s52, 1
        %s353 = sand.u32 %s52, 1
        %s354 = smul.addr %s353, 2
        %s355 = scalar_lea.vmem [#allocation8], %s354
        %s356 = smul.addr %s14, 4
        %s357 = scalar_lea.vmem %s1, %s356
        // Predicated region
        $region59: #{custom-call.25} parent=49 // pred_check
          _
        $region60: #{custom-call.25} parent=49 // pred_check_branch
          %359 = sbr.rel (0) target = $region62
        $region61: #{custom-call.25} parent=49 // pred_region
          // Predicated region
          $region63: #{custom-call.25} parent=61 // pred_check
            _
          $region64: #{custom-call.25} parent=61 // pred_check_branch
            %361 = sbr.rel target = $region66
          $region65: #{custom-call.25} parent=61 // pred_region
            // Predicated region
            $region78: #{custom-call.25} parent=65 // pred_check
              _
            $region79: #{custom-call.25} parent=65 // pred_check_branch
              %376 = sbr.rel (0) target = $region81
            $region80: #{custom-call.25} parent=65 // pred_region
              loop: start=0, step=1, limit=1
              $region82: #{custom-call.25} parent=80 // loop_pre_header
                _
              $region83: #{custom-call.25} parent=80 // loop_header
                %s379 = sphi 0, %s383
                %p380 = scmp.ge.s32.totalorder %s379, 1
                %s384 = sphi %s346, %s346
                %s385 = sphi %s357, %s357
              $region84: #{custom-call.25} parent=80 // loop_header_branch
                %382 = sbr.rel (%p380) target = $region88
              $region85: #{custom-call.25} parent=80 // loop_body
                %v386 = vld [vmem:[%s384] sm:$0xf]
                %387 = vst [vmem:[%s385] sm:$0xf] %v386
              $region86: #{custom-call.25} parent=80 // loop_footer
                %s383 = sadd.s32 1, %s379
              $region87: #{custom-call.25} parent=80 // loop_footer_branch
                %378 = sbr.rel target = $region83
              $region88: #{custom-call.25} parent=80 // loop_exit
                _
            $region81: #{custom-call.25} parent=65 // pred_fallthru
              _
          $region66: #{custom-call.25} parent=61 // pred_fallthru
            _
          // Predicated region
          $region67: #{custom-call.25} parent=61 // pred_check
            _
          $region68: #{custom-call.25} parent=61 // pred_check_branch
            %363 = sbr.rel (0) target = $region70
          $region69: #{custom-call.25} parent=61 // pred_region
            loop: start=0, step=1, limit=1
            $region71: #{custom-call.25} parent=69 // loop_pre_header
              _
            $region72: #{custom-call.25} parent=69 // loop_header
              %s366 = sphi 0, %s370
              %p367 = scmp.ge.s32.totalorder %s366, 1
              %s371 = sphi %s346, %s346
              %s372 = sphi %s357, %s357
            $region73: #{custom-call.25} parent=69 // loop_header_branch
              %369 = sbr.rel (%p367) target = $region77
            $region74: #{custom-call.25} parent=69 // loop_body
              %v373 = vld [vmem:[%s371] sm:$0xf]
              %374 = vst [vmem:[%s372] sm:$0xf] %v373
            $region75: #{custom-call.25} parent=69 // loop_footer
              %s370 = sadd.s32 1, %s366
            $region76: #{custom-call.25} parent=69 // loop_footer_branch
              %365 = sbr.rel target = $region72
            $region77: #{custom-call.25} parent=69 // loop_exit
              _
          $region70: #{custom-call.25} parent=61 // pred_fallthru
            _
        $region62: #{custom-call.25} parent=49 // pred_fallthru
          _
        %388 = vnop
        // Predicated region
        $region89: #{custom-call.25} parent=49 // pred_check
          %p389 = pneg %p34
        $region90: #{custom-call.25} parent=49 // pred_check_branch
          %391 = sbr.rel (%p389) target = $region92
        $region91: #{custom-call.25} parent=49 // pred_region
          %s392 = sshrl.u32 %s14, 3
          %s394 = ssub.s32 32, 32
          %395 = vsyncadd %s348, %s394
          %s396 = smul.addr %s392, 32
          %s397 = scalar_lea.hbm %s2, %s396
          %s399 = sshll.u32 %s351, 4
          %s400 = int_to_ptr.vmem [resolvable:$true] %s399
          %402 = dma.vmem_to_hbm [thread:$0]  %s400, 32, %s397, %s348
        $region92: #{custom-call.25} parent=49 // pred_fallthru
          _
        // Predicated region
        $region93: #{custom-call.25} parent=49 // pred_check
          %p403 = pneg %p62
        $region94: #{custom-call.25} parent=49 // pred_check_branch
          %405 = sbr.rel (%p403) target = $region96
        $region95: #{custom-call.25} parent=49 // pred_region
          %s406 = sshrl.u32 %s14, 3
          %s407 = smul.addr %s406, 2
          %s408 = scalar_lea.vmem %s3, %s407
          // Predicated region
          $region97: #{custom-call.25} parent=95 // pred_check
            _
          $region98: #{custom-call.25} parent=95 // pred_check_branch
            %410 = sbr.rel (0) target = $region100
          $region99: #{custom-call.25} parent=95 // pred_region
            // Predicated region
            $region101: #{custom-call.25} parent=99 // pred_check
              _
            $region102: #{custom-call.25} parent=99 // pred_check_branch
              %412 = sbr.rel target = $region104
            $region103: #{custom-call.25} parent=99 // pred_region
              // Predicated region
              $region116: #{custom-call.25} parent=103 // pred_check
                _
              $region117: #{custom-call.25} parent=103 // pred_check_branch
                %427 = sbr.rel (0) target = $region119
              $region118: #{custom-call.25} parent=103 // pred_region
                loop: start=0, step=1, limit=1
                $region120: #{custom-call.25} parent=118 // loop_pre_header
                  _
                $region121: #{custom-call.25} parent=118 // loop_header
                  %s430 = sphi 0, %s434
                  %p431 = scmp.ge.s32.totalorder %s430, 1
                  %s435 = sphi %s355, %s355
                  %s436 = sphi %s408, %s408
                $region122: #{custom-call.25} parent=118 // loop_header_branch
                  %433 = sbr.rel (%p431) target = $region126
                $region123: #{custom-call.25} parent=118 // loop_body
                  %v437 = vld [vmem:[%s435] sm:$0x3]
                  %438 = vst [vmem:[%s436] sm:$0x3] %v437
                $region124: #{custom-call.25} parent=118 // loop_footer
                  %s434 = sadd.s32 1, %s430
                $region125: #{custom-call.25} parent=118 // loop_footer_branch
                  %429 = sbr.rel target = $region121
                $region126: #{custom-call.25} parent=118 // loop_exit
                  _
              $region119: #{custom-call.25} parent=103 // pred_fallthru
                _
            $region104: #{custom-call.25} parent=99 // pred_fallthru
              _
            // Predicated region
            $region105: #{custom-call.25} parent=99 // pred_check
              _
            $region106: #{custom-call.25} parent=99 // pred_check_branch
              %414 = sbr.rel (0) target = $region108
            $region107: #{custom-call.25} parent=99 // pred_region
              loop: start=0, step=1, limit=1
              $region109: #{custom-call.25} parent=107 // loop_pre_header
                _
              $region110: #{custom-call.25} parent=107 // loop_header
                %s417 = sphi 0, %s421
                %p418 = scmp.ge.s32.totalorder %s417, 1
                %s422 = sphi %s355, %s355
                %s423 = sphi %s408, %s408
              $region111: #{custom-call.25} parent=107 // loop_header_branch
                %420 = sbr.rel (%p418) target = $region115
              $region112: #{custom-call.25} parent=107 // loop_body
                %v424 = vld [vmem:[%s422] sm:$0x3]
                %425 = vst [vmem:[%s423] sm:$0x3] %v424
              $region113: #{custom-call.25} parent=107 // loop_footer
                %s421 = sadd.s32 1, %s417
              $region114: #{custom-call.25} parent=107 // loop_footer_branch
                %416 = sbr.rel target = $region110
              $region115: #{custom-call.25} parent=107 // loop_exit
                _
            $region108: #{custom-call.25} parent=99 // pred_fallthru
              _
          $region100: #{custom-call.25} parent=95 // pred_fallthru
            _
          %439 = vnop
        $region96: #{custom-call.25} parent=49 // pred_fallthru
          _
      $region50: #{custom-call.25} parent=5 // pred_fallthru
        _
      %p440 = scmp.le.s32.totalorder 2, %s9
      // Predicated region
      $region127: #{custom-call.25} parent=5 // pred_check
        %p441 = pneg %p440
      $region128: #{custom-call.25} parent=5 // pred_check_branch
        %443 = sbr.rel (%p441) target = $region130
      $region129: #{custom-call.25} parent=5 // pred_region
        %s444 = ssub.s32 %s9, 2
        %s445 = sand.u32 %s15, 1
        %s446 = sand.u32 %s15, 1
        %s447 = smul.addr %s446, 4
        %s448 = scalar_lea.vmem [#allocation3], %s447
        // Predicated region
        $region131: #{custom-call.25} parent=129 // pred_check
          %p449 = pneg %p40
        $region132: #{custom-call.25} parent=129 // pred_check_branch
          %451 = sbr.rel (%p449) target = $region134
        $region133: #{custom-call.25} parent=129 // pred_region
          %s452 = sand.u32 %s25, 1
          %s453 = scalar_lea.sflag [#allocation6], %s452
          %s454 = sand.u32 %s25, 1
          %s455 = smul.addr %s454, 2
          %s456 = scalar_lea.vmem [#allocation5], %s455
          %457 = dma.done %s453, 32
        $region134: #{custom-call.25} parent=129 // pred_fallthru
          _
        // Predicated region
        $region135: #{custom-call.25} parent=129 // pred_check
          %p458 = pneg %p68
        $region136: #{custom-call.25} parent=129 // pred_check_branch
          %460 = sbr.rel (%p458) target = $region138
        $region137: #{custom-call.25} parent=129 // pred_region
          %s461 = sand.u32 %s53, 1
          %s462 = sand.u32 %s53, 1
          %s463 = smul.addr %s462, 2
          %s464 = scalar_lea.vmem [#allocation8], %s463
        $region138: #{custom-call.25} parent=129 // pred_fallthru
          _
      $region130: #{custom-call.25} parent=5 // pred_fallthru
        _
    $region6: #{custom-call.25} parent=1 // loop_footer
      %s13 = sadd.s32 1, %s9
    $region7: #{custom-call.25} parent=1 // loop_footer_branch
      %8 = sbr.rel target = $region3
    $region8: #{custom-call.25} parent=1 // loop_exit
      _
    %465 = vsyncpa [#allocation6], 1
    %s466 = scalar_lea.sflag [#allocation6], 1
    %467 = vsyncpa %s466, 1

// kernel: custom-call.27
$region0: #{custom-call.27}
  %s0 = inlined_call_operand.vmem [shape: f32[2,1,4,4], index: 0, kind: input, shape index: {}]
  %s1 = inlined_call_operand.vmem [shape: f32[2,1,4,4], index: 1, kind: output, shape index: {}]
  $region1: #{custom-call.27} parent=0
    #allocation0 [shape = 'u8[4096]{0}', space=vmem, size = 0x1000, scoped, tag = 'operand span for operand 0']
    #allocation1 [shape = 'u8[4096]{0}', space=vmem, size = 0x1000, scoped, tag = 'packed  for operand 0']
    #allocation2 [shape = 'u8[4096]{0}', space=vmem, size = 0x1000, scoped, tag = 'operand span for operand 1']
    #allocation3 [shape = 'u8[4096]{0}', space=vmem, size = 0x1000, scoped, tag = 'packed  for operand 1']
    loop: start=0, step=1, limit=4
    $region2: #{custom-call.27} parent=1 // loop_pre_header
      _
    $region3: #{custom-call.27} parent=1 // loop_header
      %s3 = sphi 0, %s7
      %p4 = scmp.ge.s32.totalorder %s3, 4
      %s10 = sphi 0, %s36
      %s11 = sphi 0, %s32
      %s12 = sphi 0, %s28
      %s13 = sphi 0, %s24
      %s14 = sphi 0, %s10
      %s15 = sphi 0, %s11
      %s16 = sphi 0, %s12
      %s17 = sphi 0, %s13
      %s18 = sphi 0, %s14
      %s19 = sphi 0, %s15
      %s20 = sphi 0, %s16
      %s21 = sphi 0, %s17
    $region4: #{custom-call.27} parent=1 // loop_header_branch
      %6 = sbr.rel (%p4) target = $region8
    $region5: #{custom-call.27} parent=1 // loop_body
      %s8 = ssub.s32 %s3, 1
      %s9 = ssub.s32 %s3, 2
      %s22 = sadd.s32 1, %s13
      %p23 = scmp.ge.s32.totalorder %s22, 1
      %s24 = scalar_select %p23, 0, %s22
      %s25 = sadd.s32 1, %s12
      %s26 = scalar_select %p23, %s25, %s12
      %p27 = scmp.ge.s32.totalorder %s26, 1
      %s28 = scalar_select %p27, 0, %s26
      %s29 = sadd.s32 1, %s11
      %s30 = scalar_select %p27, %s29, %s11
      %p31 = scmp.ge.s32.totalorder %s30, 1
      %s32 = scalar_select %p31, 0, %s30
      %s33 = sadd.s32 1, %s10
      %s34 = scalar_select %p31, %s33, %s10
      %p35 = scmp.ge.s32.totalorder %s34, 2
      %s36 = scalar_select %p35, 0, %s34
      %p37 = scmp.le.s32.totalorder 1, %s3
      %p38 = scmp.lt.s32.totalorder %s3, 3
      %p39 = pnand %p37, %p38
      %p40 = pneg %p39
      // Predicated region
      $region9: #{custom-call.27} parent=5 // pred_check
        _
      $region10: #{custom-call.27} parent=5 // pred_check_branch
        %42 = sbr.rel (%p39) target = $region12
      $region11: #{custom-call.27} parent=5 // pred_region
        %s43 = ssub.s32 %s3, 1
      $region12: #{custom-call.27} parent=5 // pred_fallthru
        _
      %p44 = scmp.lt.s32.totalorder %s3, 2
      // Predicated region
      $region13: #{custom-call.27} parent=5 // pred_check
        %p45 = pneg %p44
      $region14: #{custom-call.27} parent=5 // pred_check_branch
        %47 = sbr.rel (%p45) target = $region16
      $region15: #{custom-call.27} parent=5 // pred_region
        %s48 = sand.u32 %s3, 1
        %s49 = sand.u32 %s3, 1
        %s50 = smul.addr %s49, 4
        %s51 = scalar_lea.vmem [#allocation1], %s50
        %s52 = sadd.s32 %s13, %s12
        %s53 = sadd.s32 %s52, %s11
        %s54 = sadd.s32 %s53, %s10
        %s55 = smul.addr %s54, 4
        %s56 = scalar_lea.vmem %s0, %s55
        // Predicated region
        $region17: #{custom-call.27} parent=15 // pred_check
          _
        $region18: #{custom-call.27} parent=15 // pred_check_branch
          %58 = sbr.rel (0) target = $region20
        $region19: #{custom-call.27} parent=15 // pred_region
          // Predicated region
          $region21: #{custom-call.27} parent=19 // pred_check
            _
          $region22: #{custom-call.27} parent=19 // pred_check_branch
            %60 = sbr.rel target = $region24
          $region23: #{custom-call.27} parent=19 // pred_region
            // Predicated region
            $region36: #{custom-call.27} parent=23 // pred_check
              _
            $region37: #{custom-call.27} parent=23 // pred_check_branch
              %75 = sbr.rel (0) target = $region39
            $region38: #{custom-call.27} parent=23 // pred_region
              loop: start=0, step=1, limit=1
              $region40: #{custom-call.27} parent=38 // loop_pre_header
                _
              $region41: #{custom-call.27} parent=38 // loop_header
                %s78 = sphi 0, %s82
                %p79 = scmp.ge.s32.totalorder %s78, 1
                %s83 = sphi %s56, %s56
                %s84 = sphi %s51, %s51
              $region42: #{custom-call.27} parent=38 // loop_header_branch
                %81 = sbr.rel (%p79) target = $region46
              $region43: #{custom-call.27} parent=38 // loop_body
                %v85 = vld [vmem:[%s83] sm:$0xf]
                %86 = vst [vmem:[%s84] sm:$0xf] %v85
              $region44: #{custom-call.27} parent=38 // loop_footer
                %s82 = sadd.s32 1, %s78
              $region45: #{custom-call.27} parent=38 // loop_footer_branch
                %77 = sbr.rel target = $region41
              $region46: #{custom-call.27} parent=38 // loop_exit
                _
            $region39: #{custom-call.27} parent=23 // pred_fallthru
              _
          $region24: #{custom-call.27} parent=19 // pred_fallthru
            _
          // Predicated region
          $region25: #{custom-call.27} parent=19 // pred_check
            _
          $region26: #{custom-call.27} parent=19 // pred_check_branch
            %62 = sbr.rel (0) target = $region28
          $region27: #{custom-call.27} parent=19 // pred_region
            loop: start=0, step=1, limit=1
            $region29: #{custom-call.27} parent=27 // loop_pre_header
              _
            $region30: #{custom-call.27} parent=27 // loop_header
              %s65 = sphi 0, %s69
              %p66 = scmp.ge.s32.totalorder %s65, 1
              %s70 = sphi %s56, %s56
              %s71 = sphi %s51, %s51
            $region31: #{custom-call.27} parent=27 // loop_header_branch
              %68 = sbr.rel (%p66) target = $region35
            $region32: #{custom-call.27} parent=27 // loop_body
              %v72 = vld [vmem:[%s70] sm:$0xf]
              %73 = vst [vmem:[%s71] sm:$0xf] %v72
            $region33: #{custom-call.27} parent=27 // loop_footer
              %s69 = sadd.s32 1, %s65
            $region34: #{custom-call.27} parent=27 // loop_footer_branch
              %64 = sbr.rel target = $region30
            $region35: #{custom-call.27} parent=27 // loop_exit
              _
          $region28: #{custom-call.27} parent=19 // pred_fallthru
            _
        $region20: #{custom-call.27} parent=15 // pred_fallthru
          _
        %87 = vnop
      $region16: #{custom-call.27} parent=5 // pred_fallthru
        _
      %p88 = scmp.le.s32.totalorder 1, %s3
      %p89 = scmp.lt.s32.totalorder %s3, 3
      %p90 = pnand %p88, %p89
      %p91 = pneg %p90
      // Predicated region
      $region47: #{custom-call.27} parent=5 // pred_check
        _
      $region48: #{custom-call.27} parent=5 // pred_check_branch
        %93 = sbr.rel (%p90) target = $region50
      $region49: #{custom-call.27} parent=5 // pred_region
        #allocation4 [shape = 'f32[4,4]{1,0}', space=vmem, size = 0x1000, scoped, tag = 'rescaled input a']
        %s94 = ssub.s32 %s3, 1
        %s95 = sand.u32 %s8, 1
        %s96 = sand.u32 %s8, 1
        %s97 = smul.addr %s96, 4
        %s98 = scalar_lea.vmem [#allocation1], %s97
        %s99 = sand.u32 %s8, 1
        %s100 = sand.u32 %s8, 1
        %s101 = smul.addr %s100, 4
        %s102 = scalar_lea.vmem [#allocation1], %s101
        %s103 = sand.u32 %s8, 1
        %s104 = sand.u32 %s8, 1
        %s105 = smul.addr %s104, 4
        %s106 = scalar_lea.vmem [#allocation3], %s105
        %s108 = sshllo.u32 0, 4
        %v109 = vld [vmem:[%s102] sm:%s108]
        %110 = vst [vmem:[#allocation0] sm:%s108] %v109
        %v111 = vlaneseq
        %v112 = vand.u32 %v111, 127
        %vm113 = vcmp.lt.s32.totalorder %v112, 4
        %v114 = vlaneseq
        %v115 = vshrl.u32 %v114, 7
        %vm117 = vcmp.eq.s32.totalorder %v115, %v112
        %v118 = vld [vmem:[#allocation0] sm:$0xff]
        %v119 = vsel %vm117, %v118, 0.0
        %120 = vadd.xlane.f32.xlu0 %v119
        %v121 = vpop.xlane.xlu0 %120
        %vm122 = vcmp.ge.s32.totalorder %v115, %v112
        %vm123 = vmand %vm122, %vm113
        %v124 = vsel %vm123, %v118, 0.0
        %v125 = vrcp.pop %v121
        %v126 = vmul.f32 %v124, %v125
        %127 = vst [vmem:[#allocation4] sm:$0xff] %v126
        %v128 = vlaneseq
        %v129 = vand.u32 %v128, 127
        %v130 = vlaneseq
        %v131 = vshrl.u32 %v130, 7
        %vm133 = vcmp.eq.s32.totalorder %v129, %v131
        %v134 = vlaneseq
        %v135 = vand.u32 %v134, 127
        %vm136 = vcmp.eq.s32.totalorder %v135, 0
        %v137 = vsel %vm136, 1.0, -1.0
        %v138 = vsel %vm133, %v137, 0.0
        %s139 = scalar_lea.vmem [#allocation4], 1
        %v140 = vld [vmem:[%s139] ss:$0 sm:$0xff]
        %v141 = vxor.u32 %v140, 2147483648
        %v142 = vlaneseq
        %v143 = vand.u32 %v142, 127
        %vm144 = vcmp.eq.s32.totalorder %v143, 1
        %v145 = vmul.f32 %v141, %v138
        %146 = vadd.xlane.f32.xlu0 %v145
        %v147 = vpop.xlane.xlu0 %146
        %v148 = vsel %vm144, %v147, %v138
        %s149 = scalar_lea.vmem [#allocation4], 2
        %v150 = vld [vmem:[%s149] ss:$0 sm:$0xff]
        %v151 = vxor.u32 %v150, 2147483648
        %v152 = vlaneseq
        %v153 = vand.u32 %v152, 127
        %vm154 = vcmp.eq.s32.totalorder %v153, 2
        %v155 = vmul.f32 %v151, %v148
        %156 = vadd.xlane.f32.xlu0 %v155
        %v157 = vpop.xlane.xlu0 %156
        %v158 = vsel %vm154, %v157, %v148
        %s159 = scalar_lea.vmem [#allocation4], 3
        %v160 = vld [vmem:[%s159] ss:$0 sm:$0xff]
        %v161 = vxor.u32 %v160, 2147483648
        %v162 = vlaneseq
        %v163 = vand.u32 %v162, 127
        %vm164 = vcmp.eq.s32.totalorder %v163, 3
        %v165 = vmul.f32 %v161, %v158
        %166 = vadd.xlane.f32.xlu0 %v165
        %v167 = vpop.xlane.xlu0 %166
        %v168 = vsel %vm164, %v167, %v158
        %v169 = vrcp.pop %v121
        %v170 = vmul.f32 %v168, %v169
        %vm171 = vweird.f32 %v121
        %v172 = vsel %vm171, %v168, %v170
        %173 = vst [vmem:[#allocation2] sm:$0xff] %v172
        %s175 = sshllo.u32 0, 4
        %v177 = vld [vmem:[#allocation2] sm:%s175]
        %s178 = sshllo.u32 0, 4
        %179 = vst [vmem:[%s106] sm:%s178] %v177
        %s180 = sand.u32 %s8, 1
        %s181 = sand.u32 %s8, 1
        %s182 = smul.addr %s181, 4
        %s183 = scalar_lea.vmem [#allocation3], %s182
        %s184 = sadd.s32 %s17, %s16
        %s185 = sadd.s32 %s184, %s15
        %s186 = sadd.s32 %s185, %s14
        %s187 = smul.addr %s186, 4
        %s188 = scalar_lea.vmem %s1, %s187
        // Predicated region
        $region51: #{custom-call.27} parent=49 // pred_check
          _
        $region52: #{custom-call.27} parent=49 // pred_check_branch
          %190 = sbr.rel (0) target = $region54
        $region53: #{custom-call.27} parent=49 // pred_region
          // Predicated region
          $region55: #{custom-call.27} parent=53 // pred_check
            _
          $region56: #{custom-call.27} parent=53 // pred_check_branch
            %192 = sbr.rel target = $region58
          $region57: #{custom-call.27} parent=53 // pred_region
            // Predicated region
            $region70: #{custom-call.27} parent=57 // pred_check
              _
            $region71: #{custom-call.27} parent=57 // pred_check_branch
              %207 = sbr.rel (0) target = $region73
            $region72: #{custom-call.27} parent=57 // pred_region
              loop: start=0, step=1, limit=1
              $region74: #{custom-call.27} parent=72 // loop_pre_header
                _
              $region75: #{custom-call.27} parent=72 // loop_header
                %s210 = sphi 0, %s214
                %p211 = scmp.ge.s32.totalorder %s210, 1
                %s215 = sphi %s183, %s183
                %s216 = sphi %s188, %s188
              $region76: #{custom-call.27} parent=72 // loop_header_branch
                %213 = sbr.rel (%p211) target = $region80
              $region77: #{custom-call.27} parent=72 // loop_body
                %v217 = vld [vmem:[%s215] sm:$0xf]
                %218 = vst [vmem:[%s216] sm:$0xf] %v217
              $region78: #{custom-call.27} parent=72 // loop_footer
                %s214 = sadd.s32 1, %s210
              $region79: #{custom-call.27} parent=72 // loop_footer_branch
                %209 = sbr.rel target = $region75
              $region80: #{custom-call.27} parent=72 // loop_exit
                _
            $region73: #{custom-call.27} parent=57 // pred_fallthru
              _
          $region58: #{custom-call.27} parent=53 // pred_fallthru
            _
          // Predicated region
          $region59: #{custom-call.27} parent=53 // pred_check
            _
          $region60: #{custom-call.27} parent=53 // pred_check_branch
            %194 = sbr.rel (0) target = $region62
          $region61: #{custom-call.27} parent=53 // pred_region
            loop: start=0, step=1, limit=1
            $region63: #{custom-call.27} parent=61 // loop_pre_header
              _
            $region64: #{custom-call.27} parent=61 // loop_header
              %s197 = sphi 0, %s201
              %p198 = scmp.ge.s32.totalorder %s197, 1
              %s202 = sphi %s183, %s183
              %s203 = sphi %s188, %s188
            $region65: #{custom-call.27} parent=61 // loop_header_branch
              %200 = sbr.rel (%p198) target = $region69
            $region66: #{custom-call.27} parent=61 // loop_body
              %v204 = vld [vmem:[%s202] sm:$0xf]
              %205 = vst [vmem:[%s203] sm:$0xf] %v204
            $region67: #{custom-call.27} parent=61 // loop_footer
              %s201 = sadd.s32 1, %s197
            $region68: #{custom-call.27} parent=61 // loop_footer_branch
              %196 = sbr.rel target = $region64
            $region69: #{custom-call.27} parent=61 // loop_exit
              _
          $region62: #{custom-call.27} parent=53 // pred_fallthru
            _
        $region54: #{custom-call.27} parent=49 // pred_fallthru
          _
        %219 = vnop
      $region50: #{custom-call.27} parent=5 // pred_fallthru
        _
      %p220 = scmp.le.s32.totalorder 2, %s3
      // Predicated region
      $region81: #{custom-call.27} parent=5 // pred_check
        %p221 = pneg %p220
      $region82: #{custom-call.27} parent=5 // pred_check_branch
        %223 = sbr.rel (%p221) target = $region84
      $region83: #{custom-call.27} parent=5 // pred_region
        %s224 = ssub.s32 %s3, 2
        %s225 = sand.u32 %s9, 1
        %s226 = sand.u32 %s9, 1
        %s227 = smul.addr %s226, 4
        %s228 = scalar_lea.vmem [#allocation3], %s227
      $region84: #{custom-call.27} parent=5 // pred_fallthru
        _
    $region6: #{custom-call.27} parent=1 // loop_footer
      %s7 = sadd.s32 1, %s3
    $region7: #{custom-call.27} parent=1 // loop_footer_branch
      %2 = sbr.rel target = $region3
    $region8: #{custom-call.27} parent=1 // loop_exit
      _

// kernel: custom-call.26
$region0: #{custom-call.26}
  %s0 = inlined_call_operand.vmem [shape: f32[2,1,4,4], index: 0, kind: input, shape index: {}]
  %s1 = inlined_call_operand.vmem [shape: f32[2,1,4,4], index: 1, kind: output, shape index: {}]
  $region1: #{custom-call.26} parent=0
    #allocation0 [shape = 'u8[4096]{0}', space=vmem, size = 0x1000, scoped, tag = 'operand span for operand 0']
    #allocation1 [shape = 'u8[4096]{0}', space=vmem, size = 0x1000, scoped, tag = 'packed  for operand 0']
    #allocation2 [shape = 'u8[4096]{0}', space=vmem, size = 0x1000, scoped, tag = 'operand span for operand 1']
    #allocation3 [shape = 'u8[4096]{0}', space=vmem, size = 0x1000, scoped, tag = 'packed  for operand 1']
    loop: start=0, step=1, limit=4
    $region2: #{custom-call.26} parent=1 // loop_pre_header
      _
    $region3: #{custom-call.26} parent=1 // loop_header
      %s3 = sphi 0, %s7
      %p4 = scmp.ge.s32.totalorder %s3, 4
      %s10 = sphi 0, %s36
      %s11 = sphi 0, %s32
      %s12 = sphi 0, %s28
      %s13 = sphi 0, %s24
      %s14 = sphi 0, %s10
      %s15 = sphi 0, %s11
      %s16 = sphi 0, %s12
      %s17 = sphi 0, %s13
      %s18 = sphi 0, %s14
      %s19 = sphi 0, %s15
      %s20 = sphi 0, %s16
      %s21 = sphi 0, %s17
    $region4: #{custom-call.26} parent=1 // loop_header_branch
      %6 = sbr.rel (%p4) target = $region8
    $region5: #{custom-call.26} parent=1 // loop_body
      %s8 = ssub.s32 %s3, 1
      %s9 = ssub.s32 %s3, 2
      %s22 = sadd.s32 1, %s13
      %p23 = scmp.ge.s32.totalorder %s22, 1
      %s24 = scalar_select %p23, 0, %s22
      %s25 = sadd.s32 1, %s12
      %s26 = scalar_select %p23, %s25, %s12
      %p27 = scmp.ge.s32.totalorder %s26, 1
      %s28 = scalar_select %p27, 0, %s26
      %s29 = sadd.s32 1, %s11
      %s30 = scalar_select %p27, %s29, %s11
      %p31 = scmp.ge.s32.totalorder %s30, 1
      %s32 = scalar_select %p31, 0, %s30
      %s33 = sadd.s32 1, %s10
      %s34 = scalar_select %p31, %s33, %s10
      %p35 = scmp.ge.s32.totalorder %s34, 2
      %s36 = scalar_select %p35, 0, %s34
      %p37 = scmp.le.s32.totalorder 1, %s3
      %p38 = scmp.lt.s32.totalorder %s3, 3
      %p39 = pnand %p37, %p38
      %p40 = pneg %p39
      // Predicated region
      $region9: #{custom-call.26} parent=5 // pred_check
        _
      $region10: #{custom-call.26} parent=5 // pred_check_branch
        %42 = sbr.rel (%p39) target = $region12
      $region11: #{custom-call.26} parent=5 // pred_region
        %s43 = ssub.s32 %s3, 1
      $region12: #{custom-call.26} parent=5 // pred_fallthru
        _
      %p44 = scmp.lt.s32.totalorder %s3, 2
      // Predicated region
      $region13: #{custom-call.26} parent=5 // pred_check
        %p45 = pneg %p44
      $region14: #{custom-call.26} parent=5 // pred_check_branch
        %47 = sbr.rel (%p45) target = $region16
      $region15: #{custom-call.26} parent=5 // pred_region
        %s48 = sand.u32 %s3, 1
        %s49 = sand.u32 %s3, 1
        %s50 = smul.addr %s49, 4
        %s51 = scalar_lea.vmem [#allocation1], %s50
        %s52 = sadd.s32 %s13, %s12
        %s53 = sadd.s32 %s52, %s11
        %s54 = sadd.s32 %s53, %s10
        %s55 = smul.addr %s54, 4
        %s56 = scalar_lea.vmem %s0, %s55
        // Predicated region
        $region17: #{custom-call.26} parent=15 // pred_check
          _
        $region18: #{custom-call.26} parent=15 // pred_check_branch
          %58 = sbr.rel (0) target = $region20
        $region19: #{custom-call.26} parent=15 // pred_region
          // Predicated region
          $region21: #{custom-call.26} parent=19 // pred_check
            _
          $region22: #{custom-call.26} parent=19 // pred_check_branch
            %60 = sbr.rel target = $region24
          $region23: #{custom-call.26} parent=19 // pred_region
            // Predicated region
            $region36: #{custom-call.26} parent=23 // pred_check
              _
            $region37: #{custom-call.26} parent=23 // pred_check_branch
              %75 = sbr.rel (0) target = $region39
            $region38: #{custom-call.26} parent=23 // pred_region
              loop: start=0, step=1, limit=1
              $region40: #{custom-call.26} parent=38 // loop_pre_header
                _
              $region41: #{custom-call.26} parent=38 // loop_header
                %s78 = sphi 0, %s82
                %p79 = scmp.ge.s32.totalorder %s78, 1
                %s83 = sphi %s56, %s56
                %s84 = sphi %s51, %s51
              $region42: #{custom-call.26} parent=38 // loop_header_branch
                %81 = sbr.rel (%p79) target = $region46
              $region43: #{custom-call.26} parent=38 // loop_body
                %v85 = vld [vmem:[%s83] sm:$0xf]
                %86 = vst [vmem:[%s84] sm:$0xf] %v85
              $region44: #{custom-call.26} parent=38 // loop_footer
                %s82 = sadd.s32 1, %s78
              $region45: #{custom-call.26} parent=38 // loop_footer_branch
                %77 = sbr.rel target = $region41
              $region46: #{custom-call.26} parent=38 // loop_exit
                _
            $region39: #{custom-call.26} parent=23 // pred_fallthru
              _
          $region24: #{custom-call.26} parent=19 // pred_fallthru
            _
          // Predicated region
          $region25: #{custom-call.26} parent=19 // pred_check
            _
          $region26: #{custom-call.26} parent=19 // pred_check_branch
            %62 = sbr.rel (0) target = $region28
          $region27: #{custom-call.26} parent=19 // pred_region
            loop: start=0, step=1, limit=1
            $region29: #{custom-call.26} parent=27 // loop_pre_header
              _
            $region30: #{custom-call.26} parent=27 // loop_header
              %s65 = sphi 0, %s69
              %p66 = scmp.ge.s32.totalorder %s65, 1
              %s70 = sphi %s56, %s56
              %s71 = sphi %s51, %s51
            $region31: #{custom-call.26} parent=27 // loop_header_branch
              %68 = sbr.rel (%p66) target = $region35
            $region32: #{custom-call.26} parent=27 // loop_body
              %v72 = vld [vmem:[%s70] sm:$0xf]
              %73 = vst [vmem:[%s71] sm:$0xf] %v72
            $region33: #{custom-call.26} parent=27 // loop_footer
              %s69 = sadd.s32 1, %s65
            $region34: #{custom-call.26} parent=27 // loop_footer_branch
              %64 = sbr.rel target = $region30
            $region35: #{custom-call.26} parent=27 // loop_exit
              _
          $region28: #{custom-call.26} parent=19 // pred_fallthru
            _
        $region20: #{custom-call.26} parent=15 // pred_fallthru
          _
        %87 = vnop
      $region16: #{custom-call.26} parent=5 // pred_fallthru
        _
      %p88 = scmp.le.s32.totalorder 1, %s3
      %p89 = scmp.lt.s32.totalorder %s3, 3
      %p90 = pnand %p88, %p89
      %p91 = pneg %p90
      // Predicated region
      $region47: #{custom-call.26} parent=5 // pred_check
        _
      $region48: #{custom-call.26} parent=5 // pred_check_branch
        %93 = sbr.rel (%p90) target = $region50
      $region49: #{custom-call.26} parent=5 // pred_region
        #allocation4 [shape = 'f32[4,4]{1,0}', space=vmem, size = 0x1000, scoped, tag = 'rescaled input a']
        %s94 = ssub.s32 %s3, 1
        %s95 = sand.u32 %s8, 1
        %s96 = sand.u32 %s8, 1
        %s97 = smul.addr %s96, 4
        %s98 = scalar_lea.vmem [#allocation1], %s97
        %s99 = sand.u32 %s8, 1
        %s100 = sand.u32 %s8, 1
        %s101 = smul.addr %s100, 4
        %s102 = scalar_lea.vmem [#allocation1], %s101
        %s103 = sand.u32 %s8, 1
        %s104 = sand.u32 %s8, 1
        %s105 = smul.addr %s104, 4
        %s106 = scalar_lea.vmem [#allocation3], %s105
        %s108 = sshllo.u32 0, 4
        %v109 = vld [vmem:[%s102] sm:%s108]
        %110 = vst [vmem:[#allocation0] sm:%s108] %v109
        %v111 = vlaneseq
        %v112 = vand.u32 %v111, 127
        %vm113 = vcmp.lt.s32.totalorder %v112, 4
        %v114 = vlaneseq
        %v115 = vshrl.u32 %v114, 7
        %vm117 = vcmp.eq.s32.totalorder %v115, %v112
        %v118 = vld [vmem:[#allocation0] sm:$0xff]
        %v119 = vsel %vm117, %v118, 0.0
        %120 = vadd.xlane.f32.xlu0 %v119
        %v121 = vpop.xlane.xlu0 %120
        %vm122 = vcmp.le.s32.totalorder %v115, %v112
        %vm123 = vmand %vm122, %vm113
        %v124 = vsel %vm123, %v118, 0.0
        %v125 = vrcp.pop %v121
        %v126 = vmul.f32 %v124, %v125
        %127 = vst [vmem:[#allocation4] sm:$0xff] %v126
        %v128 = vlaneseq
        %v129 = vand.u32 %v128, 127
        %v130 = vlaneseq
        %v131 = vshrl.u32 %v130, 7
        %vm133 = vcmp.eq.s32.totalorder %v129, %v131
        %v134 = vlaneseq
        %v135 = vand.u32 %v134, 127
        %vm136 = vcmp.eq.s32.totalorder %v135, 3
        %v137 = vsel %vm136, 1.0, -1.0
        %v138 = vsel %vm133, %v137, 0.0
        %s139 = scalar_lea.vmem [#allocation4], 2
        %v140 = vld [vmem:[%s139] ss:$0 sm:$0xff]
        %v141 = vxor.u32 %v140, 2147483648
        %v142 = vlaneseq
        %v143 = vand.u32 %v142, 127
        %vm144 = vcmp.eq.s32.totalorder %v143, 2
        %v145 = vmul.f32 %v141, %v138
        %146 = vadd.xlane.f32.xlu0 %v145
        %v147 = vpop.xlane.xlu0 %146
        %v148 = vsel %vm144, %v147, %v138
        %s149 = scalar_lea.vmem [#allocation4], 1
        %v150 = vld [vmem:[%s149] ss:$0 sm:$0xff]
        %v151 = vxor.u32 %v150, 2147483648
        %v152 = vlaneseq
        %v153 = vand.u32 %v152, 127
        %vm154 = vcmp.eq.s32.totalorder %v153, 1
        %v155 = vmul.f32 %v151, %v148
        %156 = vadd.xlane.f32.xlu0 %v155
        %v157 = vpop.xlane.xlu0 %156
        %v158 = vsel %vm154, %v157, %v148
        %v159 = vld [vmem:[#allocation4] ss:$0 sm:$0xff]
        %v160 = vxor.u32 %v159, 2147483648
        %v161 = vlaneseq
        %v162 = vand.u32 %v161, 127
        %vm163 = vcmp.eq.s32.totalorder %v162, 0
        %v164 = vmul.f32 %v160, %v158
        %165 = vadd.xlane.f32.xlu0 %v164
        %v166 = vpop.xlane.xlu0 %165
        %v167 = vsel %vm163, %v166, %v158
        %v168 = vrcp.pop %v121
        %v169 = vmul.f32 %v167, %v168
        %vm170 = vweird.f32 %v121
        %v171 = vsel %vm170, %v167, %v169
        %172 = vst [vmem:[#allocation2] sm:$0xff] %v171
        %s174 = sshllo.u32 0, 4
        %v176 = vld [vmem:[#allocation2] sm:%s174]
        %s177 = sshllo.u32 0, 4
        %178 = vst [vmem:[%s106] sm:%s177] %v176
        %s179 = sand.u32 %s8, 1
        %s180 = sand.u32 %s8, 1
        %s181 = smul.addr %s180, 4
        %s182 = scalar_lea.vmem [#allocation3], %s181
        %s183 = sadd.s32 %s17, %s16
        %s184 = sadd.s32 %s183, %s15
        %s185 = sadd.s32 %s184, %s14
        %s186 = smul.addr %s185, 4
        %s187 = scalar_lea.vmem %s1, %s186
        // Predicated region
        $region51: #{custom-call.26} parent=49 // pred_check
          _
        $region52: #{custom-call.26} parent=49 // pred_check_branch
          %189 = sbr.rel (0) target = $region54
        $region53: #{custom-call.26} parent=49 // pred_region
          // Predicated region
          $region55: #{custom-call.26} parent=53 // pred_check
            _
          $region56: #{custom-call.26} parent=53 // pred_check_branch
            %191 = sbr.rel target = $region58
          $region57: #{custom-call.26} parent=53 // pred_region
            // Predicated region
            $region70: #{custom-call.26} parent=57 // pred_check
              _
            $region71: #{custom-call.26} parent=57 // pred_check_branch
              %206 = sbr.rel (0) target = $region73
            $region72: #{custom-call.26} parent=57 // pred_region
              loop: start=0, step=1, limit=1
              $region74: #{custom-call.26} parent=72 // loop_pre_header
                _
              $region75: #{custom-call.26} parent=72 // loop_header
                %s209 = sphi 0, %s213
                %p210 = scmp.ge.s32.totalorder %s209, 1
                %s214 = sphi %s182, %s182
                %s215 = sphi %s187, %s187
              $region76: #{custom-call.26} parent=72 // loop_header_branch
                %212 = sbr.rel (%p210) target = $region80
              $region77: #{custom-call.26} parent=72 // loop_body
                %v216 = vld [vmem:[%s214] sm:$0xf]
                %217 = vst [vmem:[%s215] sm:$0xf] %v216
              $region78: #{custom-call.26} parent=72 // loop_footer
                %s213 = sadd.s32 1, %s209
              $region79: #{custom-call.26} parent=72 // loop_footer_branch
                %208 = sbr.rel target = $region75
              $region80: #{custom-call.26} parent=72 // loop_exit
                _
            $region73: #{custom-call.26} parent=57 // pred_fallthru
              _
          $region58: #{custom-call.26} parent=53 // pred_fallthru
            _
          // Predicated region
          $region59: #{custom-call.26} parent=53 // pred_check
            _
          $region60: #{custom-call.26} parent=53 // pred_check_branch
            %193 = sbr.rel (0) target = $region62
          $region61: #{custom-call.26} parent=53 // pred_region
            loop: start=0, step=1, limit=1
            $region63: #{custom-call.26} parent=61 // loop_pre_header
              _
            $region64: #{custom-call.26} parent=61 // loop_header
              %s196 = sphi 0, %s200
              %p197 = scmp.ge.s32.totalorder %s196, 1
              %s201 = sphi %s182, %s182
              %s202 = sphi %s187, %s187
            $region65: #{custom-call.26} parent=61 // loop_header_branch
              %199 = sbr.rel (%p197) target = $region69
            $region66: #{custom-call.26} parent=61 // loop_body
              %v203 = vld [vmem:[%s201] sm:$0xf]
              %204 = vst [vmem:[%s202] sm:$0xf] %v203
            $region67: #{custom-call.26} parent=61 // loop_footer
              %s200 = sadd.s32 1, %s196
            $region68: #{custom-call.26} parent=61 // loop_footer_branch
              %195 = sbr.rel target = $region64
            $region69: #{custom-call.26} parent=61 // loop_exit
              _
          $region62: #{custom-call.26} parent=53 // pred_fallthru
            _
        $region54: #{custom-call.26} parent=49 // pred_fallthru
          _
        %218 = vnop
      $region50: #{custom-call.26} parent=5 // pred_fallthru
        _
      %p219 = scmp.le.s32.totalorder 2, %s3
      // Predicated region
      $region81: #{custom-call.26} parent=5 // pred_check
        %p220 = pneg %p219
      $region82: #{custom-call.26} parent=5 // pred_check_branch
        %222 = sbr.rel (%p220) target = $region84
      $region83: #{custom-call.26} parent=5 // pred_region
        %s223 = ssub.s32 %s3, 2
        %s224 = sand.u32 %s9, 1
        %s225 = sand.u32 %s9, 1
        %s226 = smul.addr %s225, 4
        %s227 = scalar_lea.vmem [#allocation3], %s226
      $region84: #{custom-call.26} parent=5 // pred_fallthru
        _
    $region6: #{custom-call.26} parent=1 // loop_footer
      %s7 = sadd.s32 1, %s3
    $region7: #{custom-call.26} parent=1 // loop_footer_branch
      %2 = sbr.rel target = $region3
    $region8: #{custom-call.26} parent=1 // loop_exit
      _

// kernel: render_model_forward.4
$region0: #{render_model_forward.4}
  #allocation0 [shape = 'u32[]', space=smem, size = 0x4, offset = 0x4, fixed_abs, tag = 'smem constant byte address 0x4 - core index']
  #allocation1 [shape = 'u32[144,128]{1,0:T(1,128)}', space=vmem, size = 0x12000, scoped, tag = 'internal scratch']
  %s0 = inlined_call_operand.vmem [shape: f32[3,128], index: 0, kind: input, shape index: {}]
  %s1 = inlined_call_operand.vmem [shape: f32[16,3], index: 1, kind: input, shape index: {}]
  %s2 = inlined_call_operand.vmem [shape: f32[16,1], index: 2, kind: input, shape index: {}]
  %s3 = inlined_call_operand.vmem [shape: f32[4,16], index: 3, kind: input, shape index: {}]
  %s4 = inlined_call_operand.vmem [shape: f32[4,1], index: 4, kind: input, shape index: {}]
  %s5 = inlined_call_operand.vmem [shape: f32[4,128], index: 5, kind: output, shape index: {}]
  %s6 = sld [smem:[#allocation0]]
  $region30: #{render_model_forward.4} parent=0
    _
  %s8 = ssub.s32 1, %s6
  %s9 = scalar_select 0, %s8, %s6
  // Predicated region
  $region2: #{render_model_forward.4} parent=0 // pred_check
    _
  $region3: #{render_model_forward.4} parent=0 // pred_check_branch
    %11 = sbr.rel (0) target = $region5
  $region4: #{render_model_forward.4} parent=0 // pred_region
    _
  $region5: #{render_model_forward.4} parent=0 // pred_fallthru
    _
  // Predicated region
  $region6: #{render_model_forward.4} parent=0 // pred_check
    _
  $region7: #{render_model_forward.4} parent=0 // pred_check_branch
    %13 = sbr.rel (0) target = $region9
  $region8: #{render_model_forward.4} parent=0 // pred_region
    _
  $region9: #{render_model_forward.4} parent=0 // pred_fallthru
    _
  // Predicated region
  $region10: #{render_model_forward.4} parent=0 // pred_check
    _
  $region11: #{render_model_forward.4} parent=0 // pred_check_branch
    %15 = sbr.rel (0) target = $region13
  $region12: #{render_model_forward.4} parent=0 // pred_region
    _
  $region13: #{render_model_forward.4} parent=0 // pred_fallthru
    _
  // Predicated region
  $region14: #{render_model_forward.4} parent=0 // pred_check
    _
  $region15: #{render_model_forward.4} parent=0 // pred_check_branch
    %17 = sbr.rel (0) target = $region17
  $region16: #{render_model_forward.4} parent=0 // pred_region
    _
  $region17: #{render_model_forward.4} parent=0 // pred_fallthru
    _
  // Predicated region
  $region18: #{render_model_forward.4} parent=0 // pred_check
    _
  $region19: #{render_model_forward.4} parent=0 // pred_check_branch
    %19 = sbr.rel (0) target = $region21
  $region20: #{render_model_forward.4} parent=0 // pred_region
    _
  $region21: #{render_model_forward.4} parent=0 // pred_fallthru
    _
  %v20 = vld [vmem:[%s0] sm:$0x7]
  %v21 = vld [vmem:[%s1] sm:$0xff]
  %v22 = vld [vmem:[%s1 + $0x8] sm:$0xff]
  %v23 = vld [vmem:[%s2] sm:$0xff]
  %v24 = vld [vmem:[%s2 + $0x8] sm:$0xff]
  %26 = vset.pattern.permute.xlu0 0
  %27 = vperm.xlu0 %26, %v23
  %v28 = vpop.permute.xlu0 %27
  %31 = vset.pattern.permute.xlu0 0
  %32 = vperm.xlu0 %31, %v24
  %v33 = vpop.permute.xlu0 %32
  %vm35 = vcmask 23552
  %v37 = vsel %vm35, %v21, 0
  %v40 = vsel %vm35, %v22, 0
  %vm42 = vcmask 1042432
  %v44 = vsel %vm42, %v20, 0
  %46 = vmatprep.subr.mxu0 0.0
  %47 = vmatpush1.msra.mxu0 %v44
  %48 = vmatprep.subr.mxu0 0.0
  %49 = vmatpush1.msra.mxu0 0.0
  %50 = vmatprep.subr.mxu0 0.0
  %51 = vmatpush1.msra.mxu0 0.0
  %52 = vmatprep.subr.mxu0 0.0
  %53 = vmatpush1.msra.mxu0 0.0
  %54 = vmatprep.subr.mxu0 0.0
  %55 = vmatpush1.msra.mxu0 0.0
  %56 = vmatprep.subr.mxu0 0.0
  %57 = vmatpush1.msra.mxu0 0.0
  %58 = vmatprep.subr.mxu0 0.0
  %59 = vmatpush1.msra.mxu0 0.0
  %60 = vmatprep.subr.mxu0 0.0
  %61 = vmatpush1.msra.mxu0 0.0
  %62 = vmatprep.subr.mxu0 0.0
  %63 = vmatpush1.msra.mxu0 0.0
  %64 = vmatprep.subr.mxu0 0.0
  %65 = vmatpush1.msra.mxu0 0.0
  %66 = vmatprep.subr.mxu0 0.0
  %67 = vmatpush1.msra.mxu0 0.0
  %68 = vmatprep.subr.mxu0 0.0
  %69 = vmatpush1.msra.mxu0 0.0
  %70 = vmatprep.subr.mxu0 0.0
  %71 = vmatpush1.msra.mxu0 0.0
  %72 = vmatprep.subr.mxu0 0.0
  %73 = vmatpush1.msra.mxu0 0.0
  %74 = vmatprep.subr.mxu0 0.0
  %75 = vmatpush1.msra.mxu0 0.0
  %76 = vmatprep.subr.mxu0 0.0
  %77 = vmatpush1.msra.mxu0 0.0
  %78 = vmatprep.subr.mxu0 0.0
  %79 = vmatpush1.msra.mxu0 0.0
  %80 = vmatprep.subr.mxu0 0.0
  %81 = vmatpush1.msra.mxu0 0.0
  %82 = vmatprep.subr.mxu0 0.0
  %83 = vmatpush1.msra.mxu0 0.0
  %84 = vmatprep.subr.mxu0 0.0
  %85 = vmatpush1.msra.mxu0 0.0
  %86 = vmatprep.subr.mxu0 0.0
  %87 = vmatpush1.msra.mxu0 0.0
  %88 = vmatprep.subr.mxu0 0.0
  %89 = vmatpush1.msra.mxu0 0.0
  %90 = vmatprep.subr.mxu0 0.0
  %91 = vmatpush1.msra.mxu0 0.0
  %92 = vmatprep.subr.mxu0 0.0
  %93 = vmatpush1.msra.mxu0 0.0
  %94 = vmatprep.subr.mxu0 0.0
  %95 = vmatpush1.msra.mxu0 0.0
  %96 = vmatprep.subr.mxu0 0.0
  %97 = vmatpush1.msra.mxu0 0.0
  %98 = vmatprep.subr.mxu0 0.0
  %99 = vmatpush1.msra.mxu0 0.0
  %100 = vmatprep.subr.mxu0 0.0
  %101 = vmatpush1.msra.mxu0 0.0
  %102 = vmatprep.subr.mxu0 0.0
  %103 = vmatpush1.msra.mxu0 0.0
  %104 = vmatprep.subr.mxu0 0.0
  %105 = vmatpush1.msra.mxu0 0.0
  %106 = vmatprep.subr.mxu0 0.0
  %107 = vmatpush1.msra.mxu0 0.0
  %108 = vmatprep.subr.mxu0 0.0
  %109 = vmatpush1.msra.mxu0 0.0
  %110 = vmatprep.mubr.f32.mxu0 0.0
  %111 = vmatmul.mubr.f32.gmra.mrb[0].mxu0 %v37
  %v112 = vpop.f32.mrb[0].mxu0
  %v113 = vadd.f32 %v28, %v112
  %v114 = vpop.f32.mrb[0].mxu0
  %115 = vmatprep.mubr.f32.mxu0 0.0
  %116 = vmatmul.mubr.f32.gmra.mrb[0].mxu0 %v40
  %v117 = vpop.f32.mrb[0].mxu0
  %v118 = vadd.f32 %v33, %v117
  %v119 = vpop.f32.mrb[0].mxu0
  %120 = vdwg.mxu0
  %v121 = vmax.f32 %v113, 0.0
  %v122 = vmax.f32 %v118, 0.0
  %v123 = vld [vmem:[%s3] sm:$0xf]
  %v124 = vld [vmem:[%s4] sm:$0xf]
  %126 = vset.pattern.permute.xlu0 0
  %127 = vperm.xlu0 %126, %v124
  %v128 = vpop.permute.xlu0 %127
  %vm130 = vcmask 130048
  %v132 = vsel %vm130, %v123, 0
  %134 = vmatprep.subr.mxu0 0.0
  %135 = vmatpush1.msra.mxu0 %v121
  %136 = vmatprep.subr.mxu0 0.0
  %137 = vmatpush1.msra.mxu0 %v122
  %138 = vmatprep.subr.mxu0 0.0
  %139 = vmatpush1.msra.mxu0 0.0
  %140 = vmatprep.subr.mxu0 0.0
  %141 = vmatpush1.msra.mxu0 0.0
  %142 = vmatprep.subr.mxu0 0.0
  %143 = vmatpush1.msra.mxu0 0.0
  %144 = vmatprep.subr.mxu0 0.0
  %145 = vmatpush1.msra.mxu0 0.0
  %146 = vmatprep.subr.mxu0 0.0
  %147 = vmatpush1.msra.mxu0 0.0
  %148 = vmatprep.subr.mxu0 0.0
  %149 = vmatpush1.msra.mxu0 0.0
  %150 = vmatprep.subr.mxu0 0.0
  %151 = vmatpush1.msra.mxu0 0.0
  %152 = vmatprep.subr.mxu0 0.0
  %153 = vmatpush1.msra.mxu0 0.0
  %154 = vmatprep.subr.mxu0 0.0
  %155 = vmatpush1.msra.mxu0 0.0
  %156 = vmatprep.subr.mxu0 0.0
  %157 = vmatpush1.msra.mxu0 0.0
  %158 = vmatprep.subr.mxu0 0.0
  %159 = vmatpush1.msra.mxu0 0.0
  %160 = vmatprep.subr.mxu0 0.0
  %161 = vmatpush1.msra.mxu0 0.0
  %162 = vmatprep.subr.mxu0 0.0
  %163 = vmatpush1.msra.mxu0 0.0
  %164 = vmatprep.subr.mxu0 0.0
  %165 = vmatpush1.msra.mxu0 0.0
  %166 = vmatprep.subr.mxu0 0.0
  %167 = vmatpush1.msra.mxu0 0.0
  %168 = vmatprep.subr.mxu0 0.0
  %169 = vmatpush1.msra.mxu0 0.0
  %170 = vmatprep.subr.mxu0 0.0
  %171 = vmatpush1.msra.mxu0 0.0
  %172 = vmatprep.subr.mxu0 0.0
  %173 = vmatpush1.msra.mxu0 0.0
  %174 = vmatprep.subr.mxu0 0.0
  %175 = vmatpush1.msra.mxu0 0.0
  %176 = vmatprep.subr.mxu0 0.0
  %177 = vmatpush1.msra.mxu0 0.0
  %178 = vmatprep.subr.mxu0 0.0
  %179 = vmatpush1.msra.mxu0 0.0
  %180 = vmatprep.subr.mxu0 0.0
  %181 = vmatpush1.msra.mxu0 0.0
  %182 = vmatprep.subr.mxu0 0.0
  %183 = vmatpush1.msra.mxu0 0.0
  %184 = vmatprep.subr.mxu0 0.0
  %185 = vmatpush1.msra.mxu0 0.0
  %186 = vmatprep.subr.mxu0 0.0
  %187 = vmatpush1.msra.mxu0 0.0
  %188 = vmatprep.subr.mxu0 0.0
  %189 = vmatpush1.msra.mxu0 0.0
  %190 = vmatprep.subr.mxu0 0.0
  %191 = vmatpush1.msra.mxu0 0.0
  %192 = vmatprep.subr.mxu0 0.0
  %193 = vmatpush1.msra.mxu0 0.0
  %194 = vmatprep.subr.mxu0 0.0
  %195 = vmatpush1.msra.mxu0 0.0
  %196 = vmatprep.subr.mxu0 0.0
  %197 = vmatpush1.msra.mxu0 0.0
  %198 = vmatprep.mubr.f32.mxu0 0.0
  %199 = vmatmul.mubr.f32.gmra.mrb[0].mxu0 %v132
  %v200 = vpop.f32.mrb[0].mxu0
  %v201 = vadd.f32 %v128, %v200
  %v202 = vpop.f32.mrb[0].mxu0
  %203 = vdwg.mxu0
  %204 = vst [vmem:[%s5] sm:$0xf] %v201
  // Predicated region
  $region22: #{render_model_forward.4} parent=0 // pred_check
    _
  $region23: #{render_model_forward.4} parent=0 // pred_check_branch
    %206 = sbr.rel (0) target = $region25
  $region24: #{render_model_forward.4} parent=0 // pred_region
    _
  $region25: #{render_model_forward.4} parent=0 // pred_fallthru
    _
  // Predicated region
  $region26: #{render_model_forward.4} parent=0 // pred_check
    _
  $region27: #{render_model_forward.4} parent=0 // pred_check_branch
    %208 = sbr.rel (0) target = $region29
  $region28: #{render_model_forward.4} parent=0 // pred_region
    _
  $region29: #{render_model_forward.4} parent=0 // pred_fallthru
    _

// kernel: custom-call.22
$region0: #{custom-call.22}
  %s0 = inlined_call_operand.vmem [shape: f32[2,3,3], index: 0, kind: input, shape index: {}]
  %s1 = inlined_call_operand.vmem [shape: f32[2,3,3], index: 1, kind: output, shape index: {0}]
  %s2 = inlined_call_operand.hbm [shape: s32[2,3], index: 2, kind: output, shape index: {1}]
  %s3 = inlined_call_operand.vmem [shape: s32[2,3], index: 3, kind: output, shape index: {2}]
  %4 = xla_tuple %s1, %s2, %s3
  $region1: #{custom-call.22} parent=0
    #allocation0 [shape = 'u8[4096]{0}', space=vmem, size = 0x1000, scoped, tag = 'operand span for operand 0']
    #allocation1 [shape = 'u8[4096]{0}', space=vmem, size = 0x1000, scoped, tag = 'packed  for operand 0']
    #allocation2 [shape = 'u8[4096]{0}', space=vmem, size = 0x1000, scoped, tag = 'operand span for operand 1']
    #allocation3 [shape = 'u8[4096]{0}', space=vmem, size = 0x1000, scoped, tag = 'packed  for operand 1']
    #allocation4 [shape = 'u8[4096]{0}', space=vmem, size = 0x1000, scoped, tag = 'operand span for operand 2']
    #allocation5 [shape = 'u8[2048]{0}', space=vmem, size = 0x800, scoped, tag = 'packed  for operand 2']
    #allocation6 [shape = 's32[2]{0}', space=sflag, size = 0x8, scoped, tag = 'scoped memory for custom-call.22']
    #allocation7 [shape = 'u8[4096]{0}', space=vmem, size = 0x1000, scoped, tag = 'operand span for operand 3']
    #allocation8 [shape = 'u8[2048]{0}', space=vmem, size = 0x800, scoped, tag = 'packed  for operand 3']
    %5 = vsyncpa [#allocation6], 0
    %s6 = scalar_lea.sflag [#allocation6], 1
    %7 = vsyncpa %s6, 0
    loop: start=0, step=1, limit=4
    $region2: #{custom-call.22} parent=1 // loop_pre_header
      _
    $region3: #{custom-call.22} parent=1 // loop_header
      %s9 = sphi 0, %s13
      %p10 = scmp.ge.s32.totalorder %s9, 4
      %s21 = sphi 0, %s23
      %s24 = sphi 0, %s21
      %s25 = sphi 0, %s24
      %s41 = sphi 0, %s25
      %s49 = sphi 0, %s51
      %s52 = sphi 0, %s49
      %s53 = sphi 0, %s52
      %s69 = sphi 0, %s53
    $region4: #{custom-call.22} parent=1 // loop_header_branch
      %12 = sbr.rel (%p10) target = $region8
    $region5: #{custom-call.22} parent=1 // loop_body
      %s14 = ssub.s32 %s9, 1
      %s15 = ssub.s32 %s9, 2
      %s16 = sadd.s32 %s9, 1
      %s17 = sshrl.u32 %s9, 3
      %s18 = sshrl.u32 %s16, 3
      %s19 = ssub.s32 %s17, %s18
      %p20 = scmp.eq.s32.totalorder %s19, 0
      %s22 = sadd.s32 %s21, 1
      %s23 = scalar_select %p20, %s21, %s22
      %p26 = pneg %p20
      %p27 = scmp.eq.s32.totalorder %s9, 1
      %p28 = por %p26, %p27
      %p29 = scmp.ne.s32.totalorder %s21, %s24
      %p30 = scmp.eq.s32.totalorder %s9, 0
      %p31 = por %p29, %p30
      %p32 = scmp.ne.s32.totalorder %s21, %s24
      %p33 = scmp.eq.s32.totalorder %s14, 1
      %p34 = por %p32, %p33
      %p35 = scmp.ne.s32.totalorder %s24, %s25
      %p36 = scmp.eq.s32.totalorder %s14, 0
      %p37 = por %p35, %p36
      %p38 = scmp.ne.s32.totalorder %s24, %s25
      %p39 = scmp.eq.s32.totalorder %s15, 1
      %p40 = por %p38, %p39
      %p42 = scmp.ne.s32.totalorder %s25, %s41
      %p43 = scmp.eq.s32.totalorder %s15, 0
      %p44 = por %p42, %p43
      %s45 = sshrl.u32 %s9, 3
      %s46 = sshrl.u32 %s16, 3
      %s47 = ssub.s32 %s45, %s46
      %p48 = scmp.eq.s32.totalorder %s47, 0
      %s50 = sadd.s32 %s49, 1
      %s51 = scalar_select %p48, %s49, %s50
      %p54 = pneg %p48
      %p55 = scmp.eq.s32.totalorder %s9, 1
      %p56 = por %p54, %p55
      %p57 = scmp.ne.s32.totalorder %s49, %s52
      %p58 = scmp.eq.s32.totalorder %s9, 0
      %p59 = por %p57, %p58
      %p60 = scmp.ne.s32.totalorder %s49, %s52
      %p61 = scmp.eq.s32.totalorder %s14, 1
      %p62 = por %p60, %p61
      %p63 = scmp.ne.s32.totalorder %s52, %s53
      %p64 = scmp.eq.s32.totalorder %s14, 0
      %p65 = por %p63, %p64
      %p66 = scmp.ne.s32.totalorder %s52, %s53
      %p67 = scmp.eq.s32.totalorder %s15, 1
      %p68 = por %p66, %p67
      %p70 = scmp.ne.s32.totalorder %s53, %s69
      %p71 = scmp.eq.s32.totalorder %s15, 0
      %p72 = por %p70, %p71
      %p73 = scmp.le.s32.totalorder 1, %s9
      %p74 = scmp.lt.s32.totalorder %s9, 3
      %p75 = pnand %p73, %p74
      %p76 = pneg %p75
      // Predicated region
      $region9: #{custom-call.22} parent=5 // pred_check
        _
      $region10: #{custom-call.22} parent=5 // pred_check_branch
        %78 = sbr.rel (%p75) target = $region12
      $region11: #{custom-call.22} parent=5 // pred_region
        %s79 = ssub.s32 %s9, 1
      $region12: #{custom-call.22} parent=5 // pred_fallthru
        _
      %p80 = scmp.lt.s32.totalorder %s9, 2
      // Predicated region
      $region13: #{custom-call.22} parent=5 // pred_check
        %p81 = pneg %p80
      $region14: #{custom-call.22} parent=5 // pred_check_branch
        %83 = sbr.rel (%p81) target = $region16
      $region15: #{custom-call.22} parent=5 // pred_region
        %s84 = sand.u32 %s9, 1
        %s85 = sand.u32 %s9, 1
        %s86 = smul.addr %s85, 4
        %s87 = scalar_lea.vmem [#allocation1], %s86
        %s88 = smul.addr %s9, 4
        %s89 = scalar_lea.vmem %s0, %s88
        // Predicated region
        $region17: #{custom-call.22} parent=15 // pred_check
          _
        $region18: #{custom-call.22} parent=15 // pred_check_branch
          %91 = sbr.rel (0) target = $region20
        $region19: #{custom-call.22} parent=15 // pred_region
          // Predicated region
          $region21: #{custom-call.22} parent=19 // pred_check
            _
          $region22: #{custom-call.22} parent=19 // pred_check_branch
            %93 = sbr.rel target = $region24
          $region23: #{custom-call.22} parent=19 // pred_region
            // Predicated region
            $region36: #{custom-call.22} parent=23 // pred_check
              _
            $region37: #{custom-call.22} parent=23 // pred_check_branch
              %108 = sbr.rel (0) target = $region39
            $region38: #{custom-call.22} parent=23 // pred_region
              loop: start=0, step=1, limit=1
              $region40: #{custom-call.22} parent=38 // loop_pre_header
                _
              $region41: #{custom-call.22} parent=38 // loop_header
                %s111 = sphi 0, %s115
                %p112 = scmp.ge.s32.totalorder %s111, 1
                %s116 = sphi %s89, %s89
                %s117 = sphi %s87, %s87
              $region42: #{custom-call.22} parent=38 // loop_header_branch
                %114 = sbr.rel (%p112) target = $region46
              $region43: #{custom-call.22} parent=38 // loop_body
                %v118 = vld [vmem:[%s116] sm:$0xf]
                %119 = vst [vmem:[%s117] sm:$0xf] %v118
              $region44: #{custom-call.22} parent=38 // loop_footer
                %s115 = sadd.s32 1, %s111
              $region45: #{custom-call.22} parent=38 // loop_footer_branch
                %110 = sbr.rel target = $region41
              $region46: #{custom-call.22} parent=38 // loop_exit
                _
            $region39: #{custom-call.22} parent=23 // pred_fallthru
              _
          $region24: #{custom-call.22} parent=19 // pred_fallthru
            _
          // Predicated region
          $region25: #{custom-call.22} parent=19 // pred_check
            _
          $region26: #{custom-call.22} parent=19 // pred_check_branch
            %95 = sbr.rel (0) target = $region28
          $region27: #{custom-call.22} parent=19 // pred_region
            loop: start=0, step=1, limit=1
            $region29: #{custom-call.22} parent=27 // loop_pre_header
              _
            $region30: #{custom-call.22} parent=27 // loop_header
              %s98 = sphi 0, %s102
              %p99 = scmp.ge.s32.totalorder %s98, 1
              %s103 = sphi %s89, %s89
              %s104 = sphi %s87, %s87
            $region31: #{custom-call.22} parent=27 // loop_header_branch
              %101 = sbr.rel (%p99) target = $region35
            $region32: #{custom-call.22} parent=27 // loop_body
              %v105 = vld [vmem:[%s103] sm:$0xf]
              %106 = vst [vmem:[%s104] sm:$0xf] %v105
            $region33: #{custom-call.22} parent=27 // loop_footer
              %s102 = sadd.s32 1, %s98
            $region34: #{custom-call.22} parent=27 // loop_footer_branch
              %97 = sbr.rel target = $region30
            $region35: #{custom-call.22} parent=27 // loop_exit
              _
          $region28: #{custom-call.22} parent=19 // pred_fallthru
            _
        $region20: #{custom-call.22} parent=15 // pred_fallthru
          _
        %120 = vnop
      $region16: #{custom-call.22} parent=5 // pred_fallthru
        _
      %p121 = scmp.le.s32.totalorder 1, %s9
      %p122 = scmp.lt.s32.totalorder %s9, 3
      %p123 = pnand %p121, %p122
      %p124 = pneg %p123
      // Predicated region
      $region47: #{custom-call.22} parent=5 // pred_check
        _
      $region48: #{custom-call.22} parent=5 // pred_check_branch
        %126 = sbr.rel (%p123) target = $region50
      $region49: #{custom-call.22} parent=5 // pred_region
        #allocation9 [shape = 's32[3,128]{1,0}', space=vmem, size = 0x1000, scoped, tag = 'scratch for permutations']
        %s127 = ssub.s32 %s9, 1
        %s128 = sand.u32 %s14, 1
        %s129 = sand.u32 %s14, 1
        %s130 = smul.addr %s129, 4
        %s131 = scalar_lea.vmem [#allocation1], %s130
        %s132 = sand.u32 %s14, 1
        %s133 = sand.u32 %s14, 1
        %s134 = smul.addr %s133, 4
        %s135 = scalar_lea.vmem [#allocation1], %s134
        %s136 = sand.u32 %s14, 1
        %s137 = sand.u32 %s14, 1
        %s138 = smul.addr %s137, 4
        %s139 = scalar_lea.vmem [#allocation3], %s138
        %p140 = pneg %p37
        %p141 = pneg %p34
        %s142 = sand.u32 %s24, 1
        %s143 = scalar_lea.sflag [#allocation6], %s142
        %s144 = sand.u32 %s24, 1
        %s145 = smul.addr %s144, 2
        %s146 = scalar_lea.vmem [#allocation5], %s145
        %p147 = pneg %p65
        %p148 = pneg %p62
        %s149 = sand.u32 %s52, 1
        %s150 = sand.u32 %s52, 1
        %s151 = smul.addr %s150, 2
        %s152 = scalar_lea.vmem [#allocation8], %s151
        %s154 = sshllo.u32 0, 4
        %v155 = vld [vmem:[%s135] sm:%s154]
        %156 = vst [vmem:[#allocation0] sm:%s154] %v155
        %s157 = sshrl.u32 %s14, 3
        %s158 = sshrl.u32 %s14, 3
        %v159 = vld [vmem:[#allocation0] sm:$0xff]
        %160 = vst [vmem:[#allocation2] sm:$0xff] %v159
        %s161 = sand.u32 %s14, 7
        %s162 = scalar_lea.vmem [#allocation4], %s161
        %s163 = sand.u32 %s14, 7
        %s164 = scalar_lea.vmem [#allocation7], %s163
        %165 = vst [vmem:[%s162] sm:$0x1] 0
        %v166 = vlaneseq
        %v167 = vshrl.u32 %v166, 7
        %v168 = vmov %v167
        %170 = vst [vmem:[#allocation9] sm:$0xff] %v168
        loop: start=0, step=1, limit=3
        $region52: #{custom-call.22} parent=49 // loop_pre_header
          _
        $region53: #{custom-call.22} parent=49 // loop_header
          %s172 = sphi 0, %s176
          %p173 = scmp.ge.s32.totalorder %s172, 3
        $region54: #{custom-call.22} parent=49 // loop_header_branch
          %175 = sbr.rel (%p173) target = $region58
        $region55: #{custom-call.22} parent=49 // loop_body
          %v177 = vstv %s172
          %v178 = vlaneseq
          %v179 = vshrl.u32 %v178, 7
          %v180 = vmov %v179
          %v181 = vld [vmem:[#allocation2] sm:$0xff]
          %v182 = vand.u32 2147483647, %v181
          %v184 = vstv %s172
          %vm185 = vcmp.ge.s32.totalorder %v180, %v184
          %vm186 = vcmp.lt.s32.totalorder %v180, 3
          %vm187 = vmand %vm185, %vm186
          %vm188 = vcmp.lt.f32.partialorder -inf, %v182
          %vm189 = vmand %vm187, %vm188
          %v190 = vsel %vm189, %v180, %v177
          %v191 = vsel %vm189, %v182, -inf
          %v192 = vrot.slane %v191, 1
          %v193 = vrot.slane %v190, 1
          %vm194 = vcmp.ge.f32.partialorder %v192, %v191
          %v195 = vsel %vm194, %v192, %v191
          %v196 = vsel %vm194, %v193, %v190
          %v197 = vrot.slane %v192, 1
          %v198 = vrot.slane %v193, 1
          %vm199 = vcmp.ge.f32.partialorder %v197, %v195
          %v200 = vsel %vm199, %v197, %v195
          %v201 = vsel %vm199, %v198, %v196
          %v202 = vrot.slane %v197, 1
          %v203 = vrot.slane %v198, 1
          %vm204 = vcmp.ge.f32.partialorder %v202, %v200
          %v205 = vsel %vm204, %v202, %v200
          %v206 = vsel %vm204, %v203, %v201
          %v207 = vrot.slane %v202, 1
          %v208 = vrot.slane %v203, 1
          %vm209 = vcmp.ge.f32.partialorder %v207, %v205
          %v210 = vsel %vm209, %v207, %v205
          %v211 = vsel %vm209, %v208, %v206
          %v212 = vrot.slane %v207, 1
          %v213 = vrot.slane %v208, 1
          %vm214 = vcmp.ge.f32.partialorder %v212, %v210
          %v215 = vsel %vm214, %v212, %v210
          %v216 = vsel %vm214, %v213, %v211
          %v217 = vrot.slane %v212, 1
          %v218 = vrot.slane %v213, 1
          %vm219 = vcmp.ge.f32.partialorder %v217, %v215
          %v220 = vsel %vm219, %v217, %v215
          %v221 = vsel %vm219, %v218, %v216
          %v222 = vrot.slane %v217, 1
          %v223 = vrot.slane %v218, 1
          %vm224 = vcmp.ge.f32.partialorder %v222, %v220
          %v225 = vsel %vm224, %v222, %v220
          %v226 = vsel %vm224, %v223, %v221
          %s227 = ssub.s32 128, %s172
          %228 = vrot.lane.b32.xlu0 %v226, %s227
          %v229 = vpop.permute.xlu0 %228
          %s230 = vtos %v229
          %v231 = vstv %s172
          %v232 = vlaneseq
          %v233 = vand.u32 %v232, 127
          %vm234 = vcmp.eq.s32.totalorder %v233, %v231
          %v235 = vstv %s230
          %v236 = vld [vmem:[%s162] ss:$0 sm:$0xff]
          %v237 = vsel %vm234, %v235, %v236
          %238 = vst [vmem:[%s162] sm:$0x1] %v237
          %s239 = scalar_lea.vmem [#allocation2], %s172
          %s240 = scalar_lea.vmem [#allocation2], %s230
          %v241 = vld [vmem:[%s239] ss:$0 sm:$0xff]
          %v242 = vld [vmem:[%s240] ss:$0 sm:$0xff]
          %243 = vst [vmem:[%s240] sm:$0x1] %v241
          %244 = vst [vmem:[%s239] sm:$0x1] %v242
          %s245 = scalar_lea.vmem [#allocation9], %s172
          %s246 = scalar_lea.vmem [#allocation9], %s230
          %v247 = vld [vmem:[%s245] ss:$0 sm:$0xff]
          %v248 = vld [vmem:[%s246] ss:$0 sm:$0xff]
          %249 = vst [vmem:[%s246] sm:$0x1] %v247
          %250 = vst [vmem:[%s245] sm:$0x1] %v248
          %vm251 = vcmp.ne.f32.partialorder %v242, 0.0
          %vm252 = vmand %vm234, %vm251
          %v253 = vsel %vm252, %v242, 1.0
          %v254 = vlaneseq
          %v255 = vand.u32 %v254, 127
          %v256 = vstv %s172
          %vm257 = vcmp.gt.s32.totalorder %v255, %v256
          %v258 = vsel %vm257, %v242, 0.0
          %v259 = vlaneseq
          %v260 = vshrl.u32 %v259, 7
          %v261 = vmov %v260
          %v262 = vld [vmem:[#allocation2] sm:$0xff]
          %v264 = vstv %s172
          %vm265 = vcmp.gt.s32.totalorder %v261, %v264
          %v266 = vsel %vm265, %v253, 1.0
          %v267 = vrcp.pop %v266
          %v268 = vmul.f32 %v262, %v267
          %vm269 = vmand %vm265, %vm234
          %v270 = vsel %vm269, %v268, 0.0
          %271 = vadd.xlane.f32.xlu0 %v270
          %v272 = vpop.xlane.xlu0 %271
          %v273 = vmul.f32 %v272, %v258
          %v274 = vsub.f32 %v268, %v273
          %275 = vst [vmem:[#allocation2] sm:$0xff] %v274
        $region56: #{custom-call.22} parent=49 // loop_footer
          %s176 = sadd.s32 1, %s172
        $region57: #{custom-call.22} parent=49 // loop_footer_branch
          %171 = sbr.rel target = $region53
        $region58: #{custom-call.22} parent=49 // loop_exit
          _
        %v276 = vld [vmem:[#allocation9] sm:$0xff]
        %s277 = scalar_lea.vmem [#allocation9], 8
        %s278 = scalar_lea.vmem [#allocation9], 16
        %s279 = scalar_lea.vmem [#allocation9], 24
        %s280 = scalar_lea.vmem [#allocation9], 32
        %s281 = scalar_lea.vmem [#allocation9], 40
        %s282 = scalar_lea.vmem [#allocation9], 48
        %s283 = scalar_lea.vmem [#allocation9], 56
        %s284 = scalar_lea.vmem [#allocation9], 64
        %s285 = scalar_lea.vmem [#allocation9], 72
        %s286 = scalar_lea.vmem [#allocation9], 80
        %s287 = scalar_lea.vmem [#allocation9], 88
        %s288 = scalar_lea.vmem [#allocation9], 96
        %s289 = scalar_lea.vmem [#allocation9], 104
        %s290 = scalar_lea.vmem [#allocation9], 112
        %s291 = scalar_lea.vmem [#allocation9], 120
        %292 = vxpose.xlu0.b32.start [1/16] %v276, 128
        %293 = vxpose.xlu0.b32.cont [2/16] 0, 128
        %294 = vxpose.xlu0.b32.cont [3/16] 0, 128
        %295 = vxpose.xlu0.b32.cont [4/16] 0, 128
        %296 = vxpose.xlu0.b32.cont [5/16] 0, 128
        %297 = vxpose.xlu0.b32.cont [6/16] 0, 128
        %298 = vxpose.xlu0.b32.cont [7/16] 0, 128
        %299 = vxpose.xlu0.b32.cont [8/16] 0, 128
        %300 = vxpose.xlu0.b32.cont [9/16] 0, 128
        %301 = vxpose.xlu0.b32.cont [10/16] 0, 128
        %302 = vxpose.xlu0.b32.cont [11/16] 0, 128
        %303 = vxpose.xlu0.b32.cont [12/16] 0, 128
        %304 = vxpose.xlu0.b32.cont [13/16] 0, 128
        %305 = vxpose.xlu0.b32.cont [14/16] 0, 128
        %306 = vxpose.xlu0.b32.cont [15/16] 0, 128
        %307 = vxpose.xlu0.b32.end [16/16] 0, 128
        %v308 = vpop.trf.xlu0
        %v309 = vpop.trf.xlu0
        %v310 = vpop.trf.xlu0
        %v311 = vpop.trf.xlu0
        %v312 = vpop.trf.xlu0
        %v313 = vpop.trf.xlu0
        %v314 = vpop.trf.xlu0
        %v315 = vpop.trf.xlu0
        %v316 = vpop.trf.xlu0
        %v317 = vpop.trf.xlu0
        %v318 = vpop.trf.xlu0
        %v319 = vpop.trf.xlu0
        %v320 = vpop.trf.xlu0
        %v321 = vpop.trf.xlu0
        %v322 = vpop.trf.xlu0
        %v323 = vpop.trf.xlu0
        %324 = vst [vmem:[%s164] sm:$0x1] %v308
        %s326 = sshllo.u32 0, 4
        %v328 = vld [vmem:[#allocation2] sm:%s326]
        %s329 = sshllo.u32 0, 4
        %330 = vst [vmem:[%s139] sm:%s329] %v328
        %s332 = sshllo.u32 0, 2
        %v334 = vld [vmem:[#allocation4] sm:%s332]
        %s335 = sshllo.u32 0, 2
        %336 = vst [vmem:[%s146] sm:%s335] %v334
        %s338 = sshllo.u32 0, 2
        %v340 = vld [vmem:[#allocation7] sm:%s338]
        %s341 = sshllo.u32 0, 2
        %342 = vst [vmem:[%s152] sm:%s341] %v340
        %s343 = sand.u32 %s14, 1
        %s344 = sand.u32 %s14, 1
        %s345 = smul.addr %s344, 4
        %s346 = scalar_lea.vmem [#allocation3], %s345
        %s347 = sand.u32 %s24, 1
        %s348 = scalar_lea.sflag [#allocation6], %s347
        %s349 = sand.u32 %s24, 1
        %s350 = smul.addr %s349, 2
        %s351 = scalar_lea.vmem [#allocation5], %s350
        %s352 = sand.u32 %s52, 1
        %s353 = sand.u32 %s52, 1
        %s354 = smul.addr %s353, 2
        %s355 = scalar_lea.vmem [#allocation8], %s354
        %s356 = smul.addr %s14, 4
        %s357 = scalar_lea.vmem %s1, %s356
        // Predicated region
        $region59: #{custom-call.22} parent=49 // pred_check
          _
        $region60: #{custom-call.22} parent=49 // pred_check_branch
          %359 = sbr.rel (0) target = $region62
        $region61: #{custom-call.22} parent=49 // pred_region
          // Predicated region
          $region63: #{custom-call.22} parent=61 // pred_check
            _
          $region64: #{custom-call.22} parent=61 // pred_check_branch
            %361 = sbr.rel target = $region66
          $region65: #{custom-call.22} parent=61 // pred_region
            // Predicated region
            $region78: #{custom-call.22} parent=65 // pred_check
              _
            $region79: #{custom-call.22} parent=65 // pred_check_branch
              %376 = sbr.rel (0) target = $region81
            $region80: #{custom-call.22} parent=65 // pred_region
              loop: start=0, step=1, limit=1
              $region82: #{custom-call.22} parent=80 // loop_pre_header
                _
              $region83: #{custom-call.22} parent=80 // loop_header
                %s379 = sphi 0, %s383
                %p380 = scmp.ge.s32.totalorder %s379, 1
                %s384 = sphi %s346, %s346
                %s385 = sphi %s357, %s357
              $region84: #{custom-call.22} parent=80 // loop_header_branch
                %382 = sbr.rel (%p380) target = $region88
              $region85: #{custom-call.22} parent=80 // loop_body
                %v386 = vld [vmem:[%s384] sm:$0xf]
                %387 = vst [vmem:[%s385] sm:$0xf] %v386
              $region86: #{custom-call.22} parent=80 // loop_footer
                %s383 = sadd.s32 1, %s379
              $region87: #{custom-call.22} parent=80 // loop_footer_branch
                %378 = sbr.rel target = $region83
              $region88: #{custom-call.22} parent=80 // loop_exit
                _
            $region81: #{custom-call.22} parent=65 // pred_fallthru
              _
          $region66: #{custom-call.22} parent=61 // pred_fallthru
            _
          // Predicated region
          $region67: #{custom-call.22} parent=61 // pred_check
            _
          $region68: #{custom-call.22} parent=61 // pred_check_branch
            %363 = sbr.rel (0) target = $region70
          $region69: #{custom-call.22} parent=61 // pred_region
            loop: start=0, step=1, limit=1
            $region71: #{custom-call.22} parent=69 // loop_pre_header
              _
            $region72: #{custom-call.22} parent=69 // loop_header
              %s366 = sphi 0, %s370
              %p367 = scmp.ge.s32.totalorder %s366, 1
              %s371 = sphi %s346, %s346
              %s372 = sphi %s357, %s357
            $region73: #{custom-call.22} parent=69 // loop_header_branch
              %369 = sbr.rel (%p367) target = $region77
            $region74: #{custom-call.22} parent=69 // loop_body
              %v373 = vld [vmem:[%s371] sm:$0xf]
              %374 = vst [vmem:[%s372] sm:$0xf] %v373
            $region75: #{custom-call.22} parent=69 // loop_footer
              %s370 = sadd.s32 1, %s366
            $region76: #{custom-call.22} parent=69 // loop_footer_branch
              %365 = sbr.rel target = $region72
            $region77: #{custom-call.22} parent=69 // loop_exit
              _
          $region70: #{custom-call.22} parent=61 // pred_fallthru
            _
        $region62: #{custom-call.22} parent=49 // pred_fallthru
          _
        %388 = vnop
        // Predicated region
        $region89: #{custom-call.22} parent=49 // pred_check
          %p389 = pneg %p34
        $region90: #{custom-call.22} parent=49 // pred_check_branch
          %391 = sbr.rel (%p389) target = $region92
        $region91: #{custom-call.22} parent=49 // pred_region
          %s392 = sshrl.u32 %s14, 3
          %s394 = ssub.s32 32, 32
          %395 = vsyncadd %s348, %s394
          %s396 = smul.addr %s392, 32
          %s397 = scalar_lea.hbm %s2, %s396
          %s399 = sshll.u32 %s351, 4
          %s400 = int_to_ptr.vmem [resolvable:$true] %s399
          %402 = dma.vmem_to_hbm [thread:$0]  %s400, 32, %s397, %s348
        $region92: #{custom-call.22} parent=49 // pred_fallthru
          _
        // Predicated region
        $region93: #{custom-call.22} parent=49 // pred_check
          %p403 = pneg %p62
        $region94: #{custom-call.22} parent=49 // pred_check_branch
          %405 = sbr.rel (%p403) target = $region96
        $region95: #{custom-call.22} parent=49 // pred_region
          %s406 = sshrl.u32 %s14, 3
          %s407 = smul.addr %s406, 2
          %s408 = scalar_lea.vmem %s3, %s407
          // Predicated region
          $region97: #{custom-call.22} parent=95 // pred_check
            _
          $region98: #{custom-call.22} parent=95 // pred_check_branch
            %410 = sbr.rel (0) target = $region100
          $region99: #{custom-call.22} parent=95 // pred_region
            // Predicated region
            $region101: #{custom-call.22} parent=99 // pred_check
              _
            $region102: #{custom-call.22} parent=99 // pred_check_branch
              %412 = sbr.rel target = $region104
            $region103: #{custom-call.22} parent=99 // pred_region
              // Predicated region
              $region116: #{custom-call.22} parent=103 // pred_check
                _
              $region117: #{custom-call.22} parent=103 // pred_check_branch
                %427 = sbr.rel (0) target = $region119
              $region118: #{custom-call.22} parent=103 // pred_region
                loop: start=0, step=1, limit=1
                $region120: #{custom-call.22} parent=118 // loop_pre_header
                  _
                $region121: #{custom-call.22} parent=118 // loop_header
                  %s430 = sphi 0, %s434
                  %p431 = scmp.ge.s32.totalorder %s430, 1
                  %s435 = sphi %s355, %s355
                  %s436 = sphi %s408, %s408
                $region122: #{custom-call.22} parent=118 // loop_header_branch
                  %433 = sbr.rel (%p431) target = $region126
                $region123: #{custom-call.22} parent=118 // loop_body
                  %v437 = vld [vmem:[%s435] sm:$0x3]
                  %438 = vst [vmem:[%s436] sm:$0x3] %v437
                $region124: #{custom-call.22} parent=118 // loop_footer
                  %s434 = sadd.s32 1, %s430
                $region125: #{custom-call.22} parent=118 // loop_footer_branch
                  %429 = sbr.rel target = $region121
                $region126: #{custom-call.22} parent=118 // loop_exit
                  _
              $region119: #{custom-call.22} parent=103 // pred_fallthru
                _
            $region104: #{custom-call.22} parent=99 // pred_fallthru
              _
            // Predicated region
            $region105: #{custom-call.22} parent=99 // pred_check
              _
            $region106: #{custom-call.22} parent=99 // pred_check_branch
              %414 = sbr.rel (0) target = $region108
            $region107: #{custom-call.22} parent=99 // pred_region
              loop: start=0, step=1, limit=1
              $region109: #{custom-call.22} parent=107 // loop_pre_header
                _
              $region110: #{custom-call.22} parent=107 // loop_header
                %s417 = sphi 0, %s421
                %p418 = scmp.ge.s32.totalorder %s417, 1
                %s422 = sphi %s355, %s355
                %s423 = sphi %s408, %s408
              $region111: #{custom-call.22} parent=107 // loop_header_branch
                %420 = sbr.rel (%p418) target = $region115
              $region112: #{custom-call.22} parent=107 // loop_body
                %v424 = vld [vmem:[%s422] sm:$0x3]
                %425 = vst [vmem:[%s423] sm:$0x3] %v424
              $region113: #{custom-call.22} parent=107 // loop_footer
                %s421 = sadd.s32 1, %s417
              $region114: #{custom-call.22} parent=107 // loop_footer_branch
                %416 = sbr.rel target = $region110
              $region115: #{custom-call.22} parent=107 // loop_exit
                _
            $region108: #{custom-call.22} parent=99 // pred_fallthru
              _
          $region100: #{custom-call.22} parent=95 // pred_fallthru
            _
          %439 = vnop
        $region96: #{custom-call.22} parent=49 // pred_fallthru
          _
      $region50: #{custom-call.22} parent=5 // pred_fallthru
        _
      %p440 = scmp.le.s32.totalorder 2, %s9
      // Predicated region
      $region127: #{custom-call.22} parent=5 // pred_check
        %p441 = pneg %p440
      $region128: #{custom-call.22} parent=5 // pred_check_branch
        %443 = sbr.rel (%p441) target = $region130
      $region129: #{custom-call.22} parent=5 // pred_region
        %s444 = ssub.s32 %s9, 2
        %s445 = sand.u32 %s15, 1
        %s446 = sand.u32 %s15, 1
        %s447 = smul.addr %s446, 4
        %s448 = scalar_lea.vmem [#allocation3], %s447
        // Predicated region
        $region131: #{custom-call.22} parent=129 // pred_check
          %p449 = pneg %p40
        $region132: #{custom-call.22} parent=129 // pred_check_branch
          %451 = sbr.rel (%p449) target = $region134
        $region133: #{custom-call.22} parent=129 // pred_region
          %s452 = sand.u32 %s25, 1
          %s453 = scalar_lea.sflag [#allocation6], %s452
          %s454 = sand.u32 %s25, 1
          %s455 = smul.addr %s454, 2
          %s456 = scalar_lea.vmem [#allocation5], %s455
          %457 = dma.done %s453, 32
        $region134: #{custom-call.22} parent=129 // pred_fallthru
          _
        // Predicated region
        $region135: #{custom-call.22} parent=129 // pred_check
          %p458 = pneg %p68
        $region136: #{custom-call.22} parent=129 // pred_check_branch
          %460 = sbr.rel (%p458) target = $region138
        $region137: #{custom-call.22} parent=129 // pred_region
          %s461 = sand.u32 %s53, 1
          %s462 = sand.u32 %s53, 1
          %s463 = smul.addr %s462, 2
          %s464 = scalar_lea.vmem [#allocation8], %s463
        $region138: #{custom-call.22} parent=129 // pred_fallthru
          _
      $region130: #{custom-call.22} parent=5 // pred_fallthru
        _
    $region6: #{custom-call.22} parent=1 // loop_footer
      %s13 = sadd.s32 1, %s9
    $region7: #{custom-call.22} parent=1 // loop_footer_branch
      %8 = sbr.rel target = $region3
    $region8: #{custom-call.22} parent=1 // loop_exit
      _
    %465 = vsyncpa [#allocation6], 1
    %s466 = scalar_lea.sflag [#allocation6], 1
    %467 = vsyncpa %s466, 1

// kernel: custom-call.24
$region0: #{custom-call.24}
  %s0 = inlined_call_operand.vmem [shape: f32[2,1,3,3], index: 0, kind: input, shape index: {}]
  %s1 = inlined_call_operand.vmem [shape: f32[2,1,3,3], index: 1, kind: output, shape index: {}]
  $region1: #{custom-call.24} parent=0
    #allocation0 [shape = 'u8[4096]{0}', space=vmem, size = 0x1000, scoped, tag = 'operand span for operand 0']
    #allocation1 [shape = 'u8[4096]{0}', space=vmem, size = 0x1000, scoped, tag = 'packed  for operand 0']
    #allocation2 [shape = 'u8[4096]{0}', space=vmem, size = 0x1000, scoped, tag = 'operand span for operand 1']
    #allocation3 [shape = 'u8[4096]{0}', space=vmem, size = 0x1000, scoped, tag = 'packed  for operand 1']
    loop: start=0, step=1, limit=4
    $region2: #{custom-call.24} parent=1 // loop_pre_header
      _
    $region3: #{custom-call.24} parent=1 // loop_header
      %s3 = sphi 0, %s7
      %p4 = scmp.ge.s32.totalorder %s3, 4
      %s10 = sphi 0, %s36
      %s11 = sphi 0, %s32
      %s12 = sphi 0, %s28
      %s13 = sphi 0, %s24
      %s14 = sphi 0, %s10
      %s15 = sphi 0, %s11
      %s16 = sphi 0, %s12
      %s17 = sphi 0, %s13
      %s18 = sphi 0, %s14
      %s19 = sphi 0, %s15
      %s20 = sphi 0, %s16
      %s21 = sphi 0, %s17
    $region4: #{custom-call.24} parent=1 // loop_header_branch
      %6 = sbr.rel (%p4) target = $region8
    $region5: #{custom-call.24} parent=1 // loop_body
      %s8 = ssub.s32 %s3, 1
      %s9 = ssub.s32 %s3, 2
      %s22 = sadd.s32 1, %s13
      %p23 = scmp.ge.s32.totalorder %s22, 1
      %s24 = scalar_select %p23, 0, %s22
      %s25 = sadd.s32 1, %s12
      %s26 = scalar_select %p23, %s25, %s12
      %p27 = scmp.ge.s32.totalorder %s26, 1
      %s28 = scalar_select %p27, 0, %s26
      %s29 = sadd.s32 1, %s11
      %s30 = scalar_select %p27, %s29, %s11
      %p31 = scmp.ge.s32.totalorder %s30, 1
      %s32 = scalar_select %p31, 0, %s30
      %s33 = sadd.s32 1, %s10
      %s34 = scalar_select %p31, %s33, %s10
      %p35 = scmp.ge.s32.totalorder %s34, 2
      %s36 = scalar_select %p35, 0, %s34
      %p37 = scmp.le.s32.totalorder 1, %s3
      %p38 = scmp.lt.s32.totalorder %s3, 3
      %p39 = pnand %p37, %p38
      %p40 = pneg %p39
      // Predicated region
      $region9: #{custom-call.24} parent=5 // pred_check
        _
      $region10: #{custom-call.24} parent=5 // pred_check_branch
        %42 = sbr.rel (%p39) target = $region12
      $region11: #{custom-call.24} parent=5 // pred_region
        %s43 = ssub.s32 %s3, 1
      $region12: #{custom-call.24} parent=5 // pred_fallthru
        _
      %p44 = scmp.lt.s32.totalorder %s3, 2
      // Predicated region
      $region13: #{custom-call.24} parent=5 // pred_check
        %p45 = pneg %p44
      $region14: #{custom-call.24} parent=5 // pred_check_branch
        %47 = sbr.rel (%p45) target = $region16
      $region15: #{custom-call.24} parent=5 // pred_region
        %s48 = sand.u32 %s3, 1
        %s49 = sand.u32 %s3, 1
        %s50 = smul.addr %s49, 4
        %s51 = scalar_lea.vmem [#allocation1], %s50
        %s52 = sadd.s32 %s13, %s12
        %s53 = sadd.s32 %s52, %s11
        %s54 = sadd.s32 %s53, %s10
        %s55 = smul.addr %s54, 4
        %s56 = scalar_lea.vmem %s0, %s55
        // Predicated region
        $region17: #{custom-call.24} parent=15 // pred_check
          _
        $region18: #{custom-call.24} parent=15 // pred_check_branch
          %58 = sbr.rel (0) target = $region20
        $region19: #{custom-call.24} parent=15 // pred_region
          // Predicated region
          $region21: #{custom-call.24} parent=19 // pred_check
            _
          $region22: #{custom-call.24} parent=19 // pred_check_branch
            %60 = sbr.rel target = $region24
          $region23: #{custom-call.24} parent=19 // pred_region
            // Predicated region
            $region36: #{custom-call.24} parent=23 // pred_check
              _
            $region37: #{custom-call.24} parent=23 // pred_check_branch
              %75 = sbr.rel (0) target = $region39
            $region38: #{custom-call.24} parent=23 // pred_region
              loop: start=0, step=1, limit=1
              $region40: #{custom-call.24} parent=38 // loop_pre_header
                _
              $region41: #{custom-call.24} parent=38 // loop_header
                %s78 = sphi 0, %s82
                %p79 = scmp.ge.s32.totalorder %s78, 1
                %s83 = sphi %s56, %s56
                %s84 = sphi %s51, %s51
              $region42: #{custom-call.24} parent=38 // loop_header_branch
                %81 = sbr.rel (%p79) target = $region46
              $region43: #{custom-call.24} parent=38 // loop_body
                %v85 = vld [vmem:[%s83] sm:$0xf]
                %86 = vst [vmem:[%s84] sm:$0xf] %v85
              $region44: #{custom-call.24} parent=38 // loop_footer
                %s82 = sadd.s32 1, %s78
              $region45: #{custom-call.24} parent=38 // loop_footer_branch
                %77 = sbr.rel target = $region41
              $region46: #{custom-call.24} parent=38 // loop_exit
                _
            $region39: #{custom-call.24} parent=23 // pred_fallthru
              _
          $region24: #{custom-call.24} parent=19 // pred_fallthru
            _
          // Predicated region
          $region25: #{custom-call.24} parent=19 // pred_check
            _
          $region26: #{custom-call.24} parent=19 // pred_check_branch
            %62 = sbr.rel (0) target = $region28
          $region27: #{custom-call.24} parent=19 // pred_region
            loop: start=0, step=1, limit=1
            $region29: #{custom-call.24} parent=27 // loop_pre_header
              _
            $region30: #{custom-call.24} parent=27 // loop_header
              %s65 = sphi 0, %s69
              %p66 = scmp.ge.s32.totalorder %s65, 1
              %s70 = sphi %s56, %s56
              %s71 = sphi %s51, %s51
            $region31: #{custom-call.24} parent=27 // loop_header_branch
              %68 = sbr.rel (%p66) target = $region35
            $region32: #{custom-call.24} parent=27 // loop_body
              %v72 = vld [vmem:[%s70] sm:$0xf]
              %73 = vst [vmem:[%s71] sm:$0xf] %v72
            $region33: #{custom-call.24} parent=27 // loop_footer
              %s69 = sadd.s32 1, %s65
            $region34: #{custom-call.24} parent=27 // loop_footer_branch
              %64 = sbr.rel target = $region30
            $region35: #{custom-call.24} parent=27 // loop_exit
              _
          $region28: #{custom-call.24} parent=19 // pred_fallthru
            _
        $region20: #{custom-call.24} parent=15 // pred_fallthru
          _
        %87 = vnop
      $region16: #{custom-call.24} parent=5 // pred_fallthru
        _
      %p88 = scmp.le.s32.totalorder 1, %s3
      %p89 = scmp.lt.s32.totalorder %s3, 3
      %p90 = pnand %p88, %p89
      %p91 = pneg %p90
      // Predicated region
      $region47: #{custom-call.24} parent=5 // pred_check
        _
      $region48: #{custom-call.24} parent=5 // pred_check_branch
        %93 = sbr.rel (%p90) target = $region50
      $region49: #{custom-call.24} parent=5 // pred_region
        #allocation4 [shape = 'f32[3,3]{1,0}', space=vmem, size = 0x1000, scoped, tag = 'rescaled input a']
        %s94 = ssub.s32 %s3, 1
        %s95 = sand.u32 %s8, 1
        %s96 = sand.u32 %s8, 1
        %s97 = smul.addr %s96, 4
        %s98 = scalar_lea.vmem [#allocation1], %s97
        %s99 = sand.u32 %s8, 1
        %s100 = sand.u32 %s8, 1
        %s101 = smul.addr %s100, 4
        %s102 = scalar_lea.vmem [#allocation1], %s101
        %s103 = sand.u32 %s8, 1
        %s104 = sand.u32 %s8, 1
        %s105 = smul.addr %s104, 4
        %s106 = scalar_lea.vmem [#allocation3], %s105
        %s108 = sshllo.u32 0, 4
        %v109 = vld [vmem:[%s102] sm:%s108]
        %110 = vst [vmem:[#allocation0] sm:%s108] %v109
        %v111 = vlaneseq
        %v112 = vand.u32 %v111, 127
        %vm113 = vcmp.lt.s32.totalorder %v112, 3
        %v114 = vlaneseq
        %v115 = vshrl.u32 %v114, 7
        %vm117 = vcmp.eq.s32.totalorder %v115, %v112
        %v118 = vld [vmem:[#allocation0] sm:$0xff]
        %v119 = vsel %vm117, %v118, 0.0
        %120 = vadd.xlane.f32.xlu0 %v119
        %v121 = vpop.xlane.xlu0 %120
        %vm122 = vcmp.ge.s32.totalorder %v115, %v112
        %vm123 = vmand %vm122, %vm113
        %v124 = vsel %vm123, %v118, 0.0
        %v125 = vrcp.pop %v121
        %v126 = vmul.f32 %v124, %v125
        %127 = vst [vmem:[#allocation4] sm:$0xff] %v126
        %v128 = vlaneseq
        %v129 = vand.u32 %v128, 127
        %v130 = vlaneseq
        %v131 = vshrl.u32 %v130, 7
        %vm133 = vcmp.eq.s32.totalorder %v129, %v131
        %v134 = vlaneseq
        %v135 = vand.u32 %v134, 127
        %vm136 = vcmp.eq.s32.totalorder %v135, 0
        %v137 = vsel %vm136, 1.0, -1.0
        %v138 = vsel %vm133, %v137, 0.0
        %s139 = scalar_lea.vmem [#allocation4], 1
        %v140 = vld [vmem:[%s139] ss:$0 sm:$0xff]
        %v141 = vxor.u32 %v140, 2147483648
        %v142 = vlaneseq
        %v143 = vand.u32 %v142, 127
        %vm144 = vcmp.eq.s32.totalorder %v143, 1
        %v145 = vmul.f32 %v141, %v138
        %146 = vadd.xlane.f32.xlu0 %v145
        %v147 = vpop.xlane.xlu0 %146
        %v148 = vsel %vm144, %v147, %v138
        %s149 = scalar_lea.vmem [#allocation4], 2
        %v150 = vld [vmem:[%s149] ss:$0 sm:$0xff]
        %v151 = vxor.u32 %v150, 2147483648
        %v152 = vlaneseq
        %v153 = vand.u32 %v152, 127
        %vm154 = vcmp.eq.s32.totalorder %v153, 2
        %v155 = vmul.f32 %v151, %v148
        %156 = vadd.xlane.f32.xlu0 %v155
        %v157 = vpop.xlane.xlu0 %156
        %v158 = vsel %vm154, %v157, %v148
        %v159 = vrcp.pop %v121
        %v160 = vmul.f32 %v158, %v159
        %vm161 = vweird.f32 %v121
        %v162 = vsel %vm161, %v158, %v160
        %163 = vst [vmem:[#allocation2] sm:$0xff] %v162
        %s165 = sshllo.u32 0, 4
        %v167 = vld [vmem:[#allocation2] sm:%s165]
        %s168 = sshllo.u32 0, 4
        %169 = vst [vmem:[%s106] sm:%s168] %v167
        %s170 = sand.u32 %s8, 1
        %s171 = sand.u32 %s8, 1
        %s172 = smul.addr %s171, 4
        %s173 = scalar_lea.vmem [#allocation3], %s172
        %s174 = sadd.s32 %s17, %s16
        %s175 = sadd.s32 %s174, %s15
        %s176 = sadd.s32 %s175, %s14
        %s177 = smul.addr %s176, 4
        %s178 = scalar_lea.vmem %s1, %s177
        // Predicated region
        $region51: #{custom-call.24} parent=49 // pred_check
          _
        $region52: #{custom-call.24} parent=49 // pred_check_branch
          %180 = sbr.rel (0) target = $region54
        $region53: #{custom-call.24} parent=49 // pred_region
          // Predicated region
          $region55: #{custom-call.24} parent=53 // pred_check
            _
          $region56: #{custom-call.24} parent=53 // pred_check_branch
            %182 = sbr.rel target = $region58
          $region57: #{custom-call.24} parent=53 // pred_region
            // Predicated region
            $region70: #{custom-call.24} parent=57 // pred_check
              _
            $region71: #{custom-call.24} parent=57 // pred_check_branch
              %197 = sbr.rel (0) target = $region73
            $region72: #{custom-call.24} parent=57 // pred_region
              loop: start=0, step=1, limit=1
              $region74: #{custom-call.24} parent=72 // loop_pre_header
                _
              $region75: #{custom-call.24} parent=72 // loop_header
                %s200 = sphi 0, %s204
                %p201 = scmp.ge.s32.totalorder %s200, 1
                %s205 = sphi %s173, %s173
                %s206 = sphi %s178, %s178
              $region76: #{custom-call.24} parent=72 // loop_header_branch
                %203 = sbr.rel (%p201) target = $region80
              $region77: #{custom-call.24} parent=72 // loop_body
                %v207 = vld [vmem:[%s205] sm:$0xf]
                %208 = vst [vmem:[%s206] sm:$0xf] %v207
              $region78: #{custom-call.24} parent=72 // loop_footer
                %s204 = sadd.s32 1, %s200
              $region79: #{custom-call.24} parent=72 // loop_footer_branch
                %199 = sbr.rel target = $region75
              $region80: #{custom-call.24} parent=72 // loop_exit
                _
            $region73: #{custom-call.24} parent=57 // pred_fallthru
              _
          $region58: #{custom-call.24} parent=53 // pred_fallthru
            _
          // Predicated region
          $region59: #{custom-call.24} parent=53 // pred_check
            _
          $region60: #{custom-call.24} parent=53 // pred_check_branch
            %184 = sbr.rel (0) target = $region62
          $region61: #{custom-call.24} parent=53 // pred_region
            loop: start=0, step=1, limit=1
            $region63: #{custom-call.24} parent=61 // loop_pre_header
              _
            $region64: #{custom-call.24} parent=61 // loop_header
              %s187 = sphi 0, %s191
              %p188 = scmp.ge.s32.totalorder %s187, 1
              %s192 = sphi %s173, %s173
              %s193 = sphi %s178, %s178
            $region65: #{custom-call.24} parent=61 // loop_header_branch
              %190 = sbr.rel (%p188) target = $region69
            $region66: #{custom-call.24} parent=61 // loop_body
              %v194 = vld [vmem:[%s192] sm:$0xf]
              %195 = vst [vmem:[%s193] sm:$0xf] %v194
            $region67: #{custom-call.24} parent=61 // loop_footer
              %s191 = sadd.s32 1, %s187
            $region68: #{custom-call.24} parent=61 // loop_footer_branch
              %186 = sbr.rel target = $region64
            $region69: #{custom-call.24} parent=61 // loop_exit
              _
          $region62: #{custom-call.24} parent=53 // pred_fallthru
            _
        $region54: #{custom-call.24} parent=49 // pred_fallthru
          _
        %209 = vnop
      $region50: #{custom-call.24} parent=5 // pred_fallthru
        _
      %p210 = scmp.le.s32.totalorder 2, %s3
      // Predicated region
      $region81: #{custom-call.24} parent=5 // pred_check
        %p211 = pneg %p210
      $region82: #{custom-call.24} parent=5 // pred_check_branch
        %213 = sbr.rel (%p211) target = $region84
      $region83: #{custom-call.24} parent=5 // pred_region
        %s214 = ssub.s32 %s3, 2
        %s215 = sand.u32 %s9, 1
        %s216 = sand.u32 %s9, 1
        %s217 = smul.addr %s216, 4
        %s218 = scalar_lea.vmem [#allocation3], %s217
      $region84: #{custom-call.24} parent=5 // pred_fallthru
        _
    $region6: #{custom-call.24} parent=1 // loop_footer
      %s7 = sadd.s32 1, %s3
    $region7: #{custom-call.24} parent=1 // loop_footer_branch
      %2 = sbr.rel target = $region3
    $region8: #{custom-call.24} parent=1 // loop_exit
      _

// kernel: custom-call.23
$region0: #{custom-call.23}
  %s0 = inlined_call_operand.vmem [shape: f32[2,1,3,3], index: 0, kind: input, shape index: {}]
  %s1 = inlined_call_operand.vmem [shape: f32[2,1,3,3], index: 1, kind: output, shape index: {}]
  $region1: #{custom-call.23} parent=0
    #allocation0 [shape = 'u8[4096]{0}', space=vmem, size = 0x1000, scoped, tag = 'operand span for operand 0']
    #allocation1 [shape = 'u8[4096]{0}', space=vmem, size = 0x1000, scoped, tag = 'packed  for operand 0']
    #allocation2 [shape = 'u8[4096]{0}', space=vmem, size = 0x1000, scoped, tag = 'operand span for operand 1']
    #allocation3 [shape = 'u8[4096]{0}', space=vmem, size = 0x1000, scoped, tag = 'packed  for operand 1']
    loop: start=0, step=1, limit=4
    $region2: #{custom-call.23} parent=1 // loop_pre_header
      _
    $region3: #{custom-call.23} parent=1 // loop_header
      %s3 = sphi 0, %s7
      %p4 = scmp.ge.s32.totalorder %s3, 4
      %s10 = sphi 0, %s36
      %s11 = sphi 0, %s32
      %s12 = sphi 0, %s28
      %s13 = sphi 0, %s24
      %s14 = sphi 0, %s10
      %s15 = sphi 0, %s11
      %s16 = sphi 0, %s12
      %s17 = sphi 0, %s13
      %s18 = sphi 0, %s14
      %s19 = sphi 0, %s15
      %s20 = sphi 0, %s16
      %s21 = sphi 0, %s17
    $region4: #{custom-call.23} parent=1 // loop_header_branch
      %6 = sbr.rel (%p4) target = $region8
    $region5: #{custom-call.23} parent=1 // loop_body
      %s8 = ssub.s32 %s3, 1
      %s9 = ssub.s32 %s3, 2
      %s22 = sadd.s32 1, %s13
      %p23 = scmp.ge.s32.totalorder %s22, 1
      %s24 = scalar_select %p23, 0, %s22
      %s25 = sadd.s32 1, %s12
      %s26 = scalar_select %p23, %s25, %s12
      %p27 = scmp.ge.s32.totalorder %s26, 1
      %s28 = scalar_select %p27, 0, %s26
      %s29 = sadd.s32 1, %s11
      %s30 = scalar_select %p27, %s29, %s11
      %p31 = scmp.ge.s32.totalorder %s30, 1
      %s32 = scalar_select %p31, 0, %s30
      %s33 = sadd.s32 1, %s10
      %s34 = scalar_select %p31, %s33, %s10
      %p35 = scmp.ge.s32.totalorder %s34, 2
      %s36 = scalar_select %p35, 0, %s34
      %p37 = scmp.le.s32.totalorder 1, %s3
      %p38 = scmp.lt.s32.totalorder %s3, 3
      %p39 = pnand %p37, %p38
      %p40 = pneg %p39
      // Predicated region
      $region9: #{custom-call.23} parent=5 // pred_check
        _
      $region10: #{custom-call.23} parent=5 // pred_check_branch
        %42 = sbr.rel (%p39) target = $region12
      $region11: #{custom-call.23} parent=5 // pred_region
        %s43 = ssub.s32 %s3, 1
      $region12: #{custom-call.23} parent=5 // pred_fallthru
        _
      %p44 = scmp.lt.s32.totalorder %s3, 2
      // Predicated region
      $region13: #{custom-call.23} parent=5 // pred_check
        %p45 = pneg %p44
      $region14: #{custom-call.23} parent=5 // pred_check_branch
        %47 = sbr.rel (%p45) target = $region16
      $region15: #{custom-call.23} parent=5 // pred_region
        %s48 = sand.u32 %s3, 1
        %s49 = sand.u32 %s3, 1
        %s50 = smul.addr %s49, 4
        %s51 = scalar_lea.vmem [#allocation1], %s50
        %s52 = sadd.s32 %s13, %s12
        %s53 = sadd.s32 %s52, %s11
        %s54 = sadd.s32 %s53, %s10
        %s55 = smul.addr %s54, 4
        %s56 = scalar_lea.vmem %s0, %s55
        // Predicated region
        $region17: #{custom-call.23} parent=15 // pred_check
          _
        $region18: #{custom-call.23} parent=15 // pred_check_branch
          %58 = sbr.rel (0) target = $region20
        $region19: #{custom-call.23} parent=15 // pred_region
          // Predicated region
          $region21: #{custom-call.23} parent=19 // pred_check
            _
          $region22: #{custom-call.23} parent=19 // pred_check_branch
            %60 = sbr.rel target = $region24
          $region23: #{custom-call.23} parent=19 // pred_region
            // Predicated region
            $region36: #{custom-call.23} parent=23 // pred_check
              _
            $region37: #{custom-call.23} parent=23 // pred_check_branch
              %75 = sbr.rel (0) target = $region39
            $region38: #{custom-call.23} parent=23 // pred_region
              loop: start=0, step=1, limit=1
              $region40: #{custom-call.23} parent=38 // loop_pre_header
                _
              $region41: #{custom-call.23} parent=38 // loop_header
                %s78 = sphi 0, %s82
                %p79 = scmp.ge.s32.totalorder %s78, 1
                %s83 = sphi %s56, %s56
                %s84 = sphi %s51, %s51
              $region42: #{custom-call.23} parent=38 // loop_header_branch
                %81 = sbr.rel (%p79) target = $region46
              $region43: #{custom-call.23} parent=38 // loop_body
                %v85 = vld [vmem:[%s83] sm:$0xf]
                %86 = vst [vmem:[%s84] sm:$0xf] %v85
              $region44: #{custom-call.23} parent=38 // loop_footer
                %s82 = sadd.s32 1, %s78
              $region45: #{custom-call.23} parent=38 // loop_footer_branch
                %77 = sbr.rel target = $region41
              $region46: #{custom-call.23} parent=38 // loop_exit
                _
            $region39: #{custom-call.23} parent=23 // pred_fallthru
              _
          $region24: #{custom-call.23} parent=19 // pred_fallthru
            _
          // Predicated region
          $region25: #{custom-call.23} parent=19 // pred_check
            _
          $region26: #{custom-call.23} parent=19 // pred_check_branch
            %62 = sbr.rel (0) target = $region28
          $region27: #{custom-call.23} parent=19 // pred_region
            loop: start=0, step=1, limit=1
            $region29: #{custom-call.23} parent=27 // loop_pre_header
              _
            $region30: #{custom-call.23} parent=27 // loop_header
              %s65 = sphi 0, %s69
              %p66 = scmp.ge.s32.totalorder %s65, 1
              %s70 = sphi %s56, %s56
              %s71 = sphi %s51, %s51
            $region31: #{custom-call.23} parent=27 // loop_header_branch
              %68 = sbr.rel (%p66) target = $region35
            $region32: #{custom-call.23} parent=27 // loop_body
              %v72 = vld [vmem:[%s70] sm:$0xf]
              %73 = vst [vmem:[%s71] sm:$0xf] %v72
            $region33: #{custom-call.23} parent=27 // loop_footer
              %s69 = sadd.s32 1, %s65
            $region34: #{custom-call.23} parent=27 // loop_footer_branch
              %64 = sbr.rel target = $region30
            $region35: #{custom-call.23} parent=27 // loop_exit
              _
          $region28: #{custom-call.23} parent=19 // pred_fallthru
            _
        $region20: #{custom-call.23} parent=15 // pred_fallthru
          _
        %87 = vnop
      $region16: #{custom-call.23} parent=5 // pred_fallthru
        _
      %p88 = scmp.le.s32.totalorder 1, %s3
      %p89 = scmp.lt.s32.totalorder %s3, 3
      %p90 = pnand %p88, %p89
      %p91 = pneg %p90
      // Predicated region
      $region47: #{custom-call.23} parent=5 // pred_check
        _
      $region48: #{custom-call.23} parent=5 // pred_check_branch
        %93 = sbr.rel (%p90) target = $region50
      $region49: #{custom-call.23} parent=5 // pred_region
        #allocation4 [shape = 'f32[3,3]{1,0}', space=vmem, size = 0x1000, scoped, tag = 'rescaled input a']
        %s94 = ssub.s32 %s3, 1
        %s95 = sand.u32 %s8, 1
        %s96 = sand.u32 %s8, 1
        %s97 = smul.addr %s96, 4
        %s98 = scalar_lea.vmem [#allocation1], %s97
        %s99 = sand.u32 %s8, 1
        %s100 = sand.u32 %s8, 1
        %s101 = smul.addr %s100, 4
        %s102 = scalar_lea.vmem [#allocation1], %s101
        %s103 = sand.u32 %s8, 1
        %s104 = sand.u32 %s8, 1
        %s105 = smul.addr %s104, 4
        %s106 = scalar_lea.vmem [#allocation3], %s105
        %s108 = sshllo.u32 0, 4
        %v109 = vld [vmem:[%s102] sm:%s108]
        %110 = vst [vmem:[#allocation0] sm:%s108] %v109
        %v111 = vlaneseq
        %v112 = vand.u32 %v111, 127
        %vm113 = vcmp.lt.s32.totalorder %v112, 3
        %v114 = vlaneseq
        %v115 = vshrl.u32 %v114, 7
        %vm117 = vcmp.eq.s32.totalorder %v115, %v112
        %v118 = vld [vmem:[#allocation0] sm:$0xff]
        %v119 = vsel %vm117, %v118, 0.0
        %120 = vadd.xlane.f32.xlu0 %v119
        %v121 = vpop.xlane.xlu0 %120
        %vm122 = vcmp.le.s32.totalorder %v115, %v112
        %vm123 = vmand %vm122, %vm113
        %v124 = vsel %vm123, %v118, 0.0
        %v125 = vrcp.pop %v121
        %v126 = vmul.f32 %v124, %v125
        %127 = vst [vmem:[#allocation4] sm:$0xff] %v126
        %v128 = vlaneseq
        %v129 = vand.u32 %v128, 127
        %v130 = vlaneseq
        %v131 = vshrl.u32 %v130, 7
        %vm133 = vcmp.eq.s32.totalorder %v129, %v131
        %v134 = vlaneseq
        %v135 = vand.u32 %v134, 127
        %vm136 = vcmp.eq.s32.totalorder %v135, 2
        %v137 = vsel %vm136, 1.0, -1.0
        %v138 = vsel %vm133, %v137, 0.0
        %s139 = scalar_lea.vmem [#allocation4], 1
        %v140 = vld [vmem:[%s139] ss:$0 sm:$0xff]
        %v141 = vxor.u32 %v140, 2147483648
        %v142 = vlaneseq
        %v143 = vand.u32 %v142, 127
        %vm144 = vcmp.eq.s32.totalorder %v143, 1
        %v145 = vmul.f32 %v141, %v138
        %146 = vadd.xlane.f32.xlu0 %v145
        %v147 = vpop.xlane.xlu0 %146
        %v148 = vsel %vm144, %v147, %v138
        %v149 = vld [vmem:[#allocation4] ss:$0 sm:$0xff]
        %v150 = vxor.u32 %v149, 2147483648
        %v151 = vlaneseq
        %v152 = vand.u32 %v151, 127
        %vm153 = vcmp.eq.s32.totalorder %v152, 0
        %v154 = vmul.f32 %v150, %v148
        %155 = vadd.xlane.f32.xlu0 %v154
        %v156 = vpop.xlane.xlu0 %155
        %v157 = vsel %vm153, %v156, %v148
        %v158 = vrcp.pop %v121
        %v159 = vmul.f32 %v157, %v158
        %vm160 = vweird.f32 %v121
        %v161 = vsel %vm160, %v157, %v159
        %162 = vst [vmem:[#allocation2] sm:$0xff] %v161
        %s164 = sshllo.u32 0, 4
        %v166 = vld [vmem:[#allocation2] sm:%s164]
        %s167 = sshllo.u32 0, 4
        %168 = vst [vmem:[%s106] sm:%s167] %v166
        %s169 = sand.u32 %s8, 1
        %s170 = sand.u32 %s8, 1
        %s171 = smul.addr %s170, 4
        %s172 = scalar_lea.vmem [#allocation3], %s171
        %s173 = sadd.s32 %s17, %s16
        %s174 = sadd.s32 %s173, %s15
        %s175 = sadd.s32 %s174, %s14
        %s176 = smul.addr %s175, 4
        %s177 = scalar_lea.vmem %s1, %s176
        // Predicated region
        $region51: #{custom-call.23} parent=49 // pred_check
          _
        $region52: #{custom-call.23} parent=49 // pred_check_branch
          %179 = sbr.rel (0) target = $region54
        $region53: #{custom-call.23} parent=49 // pred_region
          // Predicated region
          $region55: #{custom-call.23} parent=53 // pred_check
            _
          $region56: #{custom-call.23} parent=53 // pred_check_branch
            %181 = sbr.rel target = $region58
          $region57: #{custom-call.23} parent=53 // pred_region
            // Predicated region
            $region70: #{custom-call.23} parent=57 // pred_check
              _
            $region71: #{custom-call.23} parent=57 // pred_check_branch
              %196 = sbr.rel (0) target = $region73
            $region72: #{custom-call.23} parent=57 // pred_region
              loop: start=0, step=1, limit=1
              $region74: #{custom-call.23} parent=72 // loop_pre_header
                _
              $region75: #{custom-call.23} parent=72 // loop_header
                %s199 = sphi 0, %s203
                %p200 = scmp.ge.s32.totalorder %s199, 1
                %s204 = sphi %s172, %s172
                %s205 = sphi %s177, %s177
              $region76: #{custom-call.23} parent=72 // loop_header_branch
                %202 = sbr.rel (%p200) target = $region80
              $region77: #{custom-call.23} parent=72 // loop_body
                %v206 = vld [vmem:[%s204] sm:$0xf]
                %207 = vst [vmem:[%s205] sm:$0xf] %v206
              $region78: #{custom-call.23} parent=72 // loop_footer
                %s203 = sadd.s32 1, %s199
              $region79: #{custom-call.23} parent=72 // loop_footer_branch
                %198 = sbr.rel target = $region75
              $region80: #{custom-call.23} parent=72 // loop_exit
                _
            $region73: #{custom-call.23} parent=57 // pred_fallthru
              _
          $region58: #{custom-call.23} parent=53 // pred_fallthru
            _
          // Predicated region
          $region59: #{custom-call.23} parent=53 // pred_check
            _
          $region60: #{custom-call.23} parent=53 // pred_check_branch
            %183 = sbr.rel (0) target = $region62
          $region61: #{custom-call.23} parent=53 // pred_region
            loop: start=0, step=1, limit=1
            $region63: #{custom-call.23} parent=61 // loop_pre_header
              _
            $region64: #{custom-call.23} parent=61 // loop_header
              %s186 = sphi 0, %s190
              %p187 = scmp.ge.s32.totalorder %s186, 1
              %s191 = sphi %s172, %s172
              %s192 = sphi %s177, %s177
            $region65: #{custom-call.23} parent=61 // loop_header_branch
              %189 = sbr.rel (%p187) target = $region69
            $region66: #{custom-call.23} parent=61 // loop_body
              %v193 = vld [vmem:[%s191] sm:$0xf]
              %194 = vst [vmem:[%s192] sm:$0xf] %v193
            $region67: #{custom-call.23} parent=61 // loop_footer
              %s190 = sadd.s32 1, %s186
            $region68: #{custom-call.23} parent=61 // loop_footer_branch
              %185 = sbr.rel target = $region64
            $region69: #{custom-call.23} parent=61 // loop_exit
              _
          $region62: #{custom-call.23} parent=53 // pred_fallthru
            _
        $region54: #{custom-call.23} parent=49 // pred_fallthru
          _
        %208 = vnop
      $region50: #{custom-call.23} parent=5 // pred_fallthru
        _
      %p209 = scmp.le.s32.totalorder 2, %s3
      // Predicated region
      $region81: #{custom-call.23} parent=5 // pred_check
        %p210 = pneg %p209
      $region82: #{custom-call.23} parent=5 // pred_check_branch
        %212 = sbr.rel (%p210) target = $region84
      $region83: #{custom-call.23} parent=5 // pred_region
        %s213 = ssub.s32 %s3, 2
        %s214 = sand.u32 %s9, 1
        %s215 = sand.u32 %s9, 1
        %s216 = smul.addr %s215, 4
        %s217 = scalar_lea.vmem [#allocation3], %s216
      $region84: #{custom-call.23} parent=5 // pred_fallthru
        _
    $region6: #{custom-call.23} parent=1 // loop_footer
      %s7 = sadd.s32 1, %s3
    $region7: #{custom-call.23} parent=1 // loop_footer_branch
      %2 = sbr.rel target = $region3
    $region8: #{custom-call.23} parent=1 // loop_exit
      _

// kernel: render_model_forward.5
$region0: #{render_model_forward.5}
  #allocation0 [shape = 'u32[]', space=smem, size = 0x4, offset = 0x4, fixed_abs, tag = 'smem constant byte address 0x4 - core index']
  #allocation1 [shape = 'u32[144,128]{1,0:T(1,128)}', space=vmem, size = 0x12000, scoped, tag = 'internal scratch']
  %s0 = inlined_call_operand.vmem [shape: bf16[2,2,4,256], index: 0, kind: input, shape index: {}]
  %s1 = inlined_call_operand.vmem [shape: f32[2,4,256], index: 1, kind: input, shape index: {}]
  %s2 = inlined_call_operand.vmem [shape: bf16[2,6,4,256], index: 2, kind: input, shape index: {}]
  %s3 = inlined_call_operand.vmem [shape: bf16[2,2,4,256], index: 3, kind: input, shape index: {}]
  %s4 = inlined_call_operand.vmem [shape: f32[32,3], index: 4, kind: input, shape index: {}]
  %s5 = inlined_call_operand.vmem [shape: f32[32,3], index: 5, kind: input, shape index: {}]
  %s6 = inlined_call_operand.vmem [shape: f32[32,1], index: 6, kind: input, shape index: {}]
  %s7 = inlined_call_operand.vmem [shape: f32[4,32], index: 7, kind: input, shape index: {}]
  %s8 = inlined_call_operand.vmem [shape: f32[4,1], index: 8, kind: input, shape index: {}]
  %s9 = inlined_call_operand.vmem [shape: f32[2,3,256], index: 9, kind: output, shape index: {0}]
  %s10 = inlined_call_operand.vmem [shape: f32[2,2,3,256], index: 10, kind: output, shape index: {1}]
  %s11 = inlined_call_operand.vmem [shape: f32[2,3,256], index: 11, kind: output, shape index: {2}]
  %12 = xla_tuple %s9, %s10, %s11
  %s13 = sld [smem:[#allocation0]]
  $region85: #{render_model_forward.5} parent=0
    _
  %s15 = ssub.s32 1, %s13
  %s16 = scalar_select 0, %s15, %s13
  loop: start=0, step=1, limit=4
  $region2: #{render_model_forward.5} parent=0 // loop_pre_header
    _
  $region3: #{render_model_forward.5} parent=0 // loop_header
    %s18 = sphi 0, %s22
    %p19 = scmp.ge.s32.totalorder %s18, 4
    %s25 = sphi 0, %s37
    %s26 = sphi 0, %s33
    %s27 = sphi 0, %s25
    %s28 = sphi 0, %s26
    %s29 = sphi 0, %s27
    %s30 = sphi 0, %s28
    %s42 = sphi 0, %s44
    %s45 = sphi 0, %s42
    %s46 = sphi 0, %s45
    %s62 = sphi 0, %s46
    %s70 = sphi 0, %s72
    %s73 = sphi 0, %s70
    %s74 = sphi 0, %s73
    %s90 = sphi 0, %s74
    %s98 = sphi 0, %s100
    %s101 = sphi 0, %s98
    %s102 = sphi 0, %s101
    %s118 = sphi 0, %s102
    %s126 = sphi 0, %s128
    %s129 = sphi 0, %s126
    %s130 = sphi 0, %s129
    %s146 = sphi 0, %s130
    %s150 = sphi 0, %s150
    %s152 = sphi 0, %s150
    %s153 = sphi 0, %s152
    %s167 = sphi 0, %s153
    %s171 = sphi 0, %s171
    %s173 = sphi 0, %s171
    %s174 = sphi 0, %s173
    %s188 = sphi 0, %s174
    %s192 = sphi 0, %s192
    %s194 = sphi 0, %s192
    %s195 = sphi 0, %s194
    %s209 = sphi 0, %s195
    %s213 = sphi 0, %s213
    %s215 = sphi 0, %s213
    %s216 = sphi 0, %s215
    %s230 = sphi 0, %s216
    %s234 = sphi 0, %s234
    %s236 = sphi 0, %s234
    %s237 = sphi 0, %s236
    %s251 = sphi 0, %s237
    %s259 = sphi 0, %s261
    %s262 = sphi 0, %s259
    %s263 = sphi 0, %s262
    %s279 = sphi 0, %s263
    %s287 = sphi 0, %s289
    %s290 = sphi 0, %s287
    %s291 = sphi 0, %s290
    %s307 = sphi 0, %s291
    %s315 = sphi 0, %s317
    %s318 = sphi 0, %s315
    %s319 = sphi 0, %s318
    %s335 = sphi 0, %s319
  $region4: #{render_model_forward.5} parent=0 // loop_header_branch
    %21 = sbr.rel (%p19) target = $region8
  $region5: #{render_model_forward.5} parent=0 // loop_body
    %s23 = ssub.s32 %s18, 1
    %s24 = ssub.s32 %s18, 2
    %s31 = sadd.s32 1, %s26
    %p32 = scmp.ge.s32.totalorder %s31, 1
    %s33 = scalar_select %p32, 0, %s31
    %s34 = sadd.s32 1, %s25
    %s35 = scalar_select %p32, %s34, %s25
    %p36 = scmp.ge.s32.totalorder %s35, 2
    %s37 = scalar_select %p36, 0, %s35
    %s38 = ssub.s32 %s25, %s37
    %s39 = ssub.s32 %s26, %s33
    %s40 = sor.u32 %s38, %s39
    %p41 = scmp.eq.s32.totalorder %s40, 0
    %s43 = sadd.s32 %s42, 1
    %s44 = scalar_select %p41, %s42, %s43
    %p47 = pneg %p41
    %p48 = scmp.eq.s32.totalorder %s18, 1
    %p49 = por %p47, %p48
    %p50 = scmp.ne.s32.totalorder %s42, %s45
    %p51 = scmp.eq.s32.totalorder %s18, 0
    %p52 = por %p50, %p51
    %p53 = scmp.ne.s32.totalorder %s42, %s45
    %p54 = scmp.eq.s32.totalorder %s23, 1
    %p55 = por %p53, %p54
    %p56 = scmp.ne.s32.totalorder %s45, %s46
    %p57 = scmp.eq.s32.totalorder %s23, 0
    %p58 = por %p56, %p57
    %p59 = scmp.ne.s32.totalorder %s45, %s46
    %p60 = scmp.eq.s32.totalorder %s24, 1
    %p61 = por %p59, %p60
    %p63 = scmp.ne.s32.totalorder %s46, %s62
    %p64 = scmp.eq.s32.totalorder %s24, 0
    %p65 = por %p63, %p64
    %s66 = ssub.s32 %s25, %s37
    %s67 = ssub.s32 %s26, %s33
    %s68 = sor.u32 %s66, %s67
    %p69 = scmp.eq.s32.totalorder %s68, 0
    %s71 = sadd.s32 %s70, 1
    %s72 = scalar_select %p69, %s70, %s71
    %p75 = pneg %p69
    %p76 = scmp.eq.s32.totalorder %s18, 1
    %p77 = por %p75, %p76
    %p78 = scmp.ne.s32.totalorder %s70, %s73
    %p79 = scmp.eq.s32.totalorder %s18, 0
    %p80 = por %p78, %p79
    %p81 = scmp.ne.s32.totalorder %s70, %s73
    %p82 = scmp.eq.s32.totalorder %s23, 1
    %p83 = por %p81, %p82
    %p84 = scmp.ne.s32.totalorder %s73, %s74
    %p85 = scmp.eq.s32.totalorder %s23, 0
    %p86 = por %p84, %p85
    %p87 = scmp.ne.s32.totalorder %s73, %s74
    %p88 = scmp.eq.s32.totalorder %s24, 1
    %p89 = por %p87, %p88
    %p91 = scmp.ne.s32.totalorder %s74, %s90
    %p92 = scmp.eq.s32.totalorder %s24, 0
    %p93 = por %p91, %p92
    %s94 = ssub.s32 %s25, %s37
    %s95 = ssub.s32 %s26, %s33
    %s96 = sor.u32 %s94, %s95
    %p97 = scmp.eq.s32.totalorder %s96, 0
    %s99 = sadd.s32 %s98, 1
    %s100 = scalar_select %p97, %s98, %s99
    %p103 = pneg %p97
    %p104 = scmp.eq.s32.totalorder %s18, 1
    %p105 = por %p103, %p104
    %p106 = scmp.ne.s32.totalorder %s98, %s101
    %p107 = scmp.eq.s32.totalorder %s18, 0
    %p108 = por %p106, %p107
    %p109 = scmp.ne.s32.totalorder %s98, %s101
    %p110 = scmp.eq.s32.totalorder %s23, 1
    %p111 = por %p109, %p110
    %p112 = scmp.ne.s32.totalorder %s101, %s102
    %p113 = scmp.eq.s32.totalorder %s23, 0
    %p114 = por %p112, %p113
    %p115 = scmp.ne.s32.totalorder %s101, %s102
    %p116 = scmp.eq.s32.totalorder %s24, 1
    %p117 = por %p115, %p116
    %p119 = scmp.ne.s32.totalorder %s102, %s118
    %p120 = scmp.eq.s32.totalorder %s24, 0
    %p121 = por %p119, %p120
    %s122 = ssub.s32 %s25, %s37
    %s123 = ssub.s32 %s26, %s33
    %s124 = sor.u32 %s122, %s123
    %p125 = scmp.eq.s32.totalorder %s124, 0
    %s127 = sadd.s32 %s126, 1
    %s128 = scalar_select %p125, %s126, %s127
    %p131 = pneg %p125
    %p132 = scmp.eq.s32.totalorder %s18, 1
    %p133 = por %p131, %p132
    %p134 = scmp.ne.s32.totalorder %s126, %s129
    %p135 = scmp.eq.s32.totalorder %s18, 0
    %p136 = por %p134, %p135
    %p137 = scmp.ne.s32.totalorder %s126, %s129
    %p138 = scmp.eq.s32.totalorder %s23, 1
    %p139 = por %p137, %p138
    %p140 = scmp.ne.s32.totalorder %s129, %s130
    %p141 = scmp.eq.s32.totalorder %s23, 0
    %p142 = por %p140, %p141
    %p143 = scmp.ne.s32.totalorder %s129, %s130
    %p144 = scmp.eq.s32.totalorder %s24, 1
    %p145 = por %p143, %p144
    %p147 = scmp.ne.s32.totalorder %s130, %s146
    %p148 = scmp.eq.s32.totalorder %s24, 0
    %p149 = por %p147, %p148
    %s151 = sadd.s32 %s150, 1
    %p154 = scmp.eq.s32.totalorder %s18, 1
    %p155 = scmp.ne.s32.totalorder %s150, %s152
    %p156 = scmp.eq.s32.totalorder %s18, 0
    %p157 = por %p155, %p156
    %p158 = scmp.ne.s32.totalorder %s150, %s152
    %p159 = scmp.eq.s32.totalorder %s23, 1
    %p160 = por %p158, %p159
    %p161 = scmp.ne.s32.totalorder %s152, %s153
    %p162 = scmp.eq.s32.totalorder %s23, 0
    %p163 = por %p161, %p162
    %p164 = scmp.ne.s32.totalorder %s152, %s153
    %p165 = scmp.eq.s32.totalorder %s24, 1
    %p166 = por %p164, %p165
    %p168 = scmp.ne.s32.totalorder %s153, %s167
    %p169 = scmp.eq.s32.totalorder %s24, 0
    %p170 = por %p168, %p169
    %s172 = sadd.s32 %s171, 1
    %p175 = scmp.eq.s32.totalorder %s18, 1
    %p176 = scmp.ne.s32.totalorder %s171, %s173
    %p177 = scmp.eq.s32.totalorder %s18, 0
    %p178 = por %p176, %p177
    %p179 = scmp.ne.s32.totalorder %s171, %s173
    %p180 = scmp.eq.s32.totalorder %s23, 1
    %p181 = por %p179, %p180
    %p182 = scmp.ne.s32.totalorder %s173, %s174
    %p183 = scmp.eq.s32.totalorder %s23, 0
    %p184 = por %p182, %p183
    %p185 = scmp.ne.s32.totalorder %s173, %s174
    %p186 = scmp.eq.s32.totalorder %s24, 1
    %p187 = por %p185, %p186
    %p189 = scmp.ne.s32.totalorder %s174, %s188
    %p190 = scmp.eq.s32.totalorder %s24, 0
    %p191 = por %p189, %p190
    %s193 = sadd.s32 %s192, 1
    %p196 = scmp.eq.s32.totalorder %s18, 1
    %p197 = scmp.ne.s32.totalorder %s192, %s194
    %p198 = scmp.eq.s32.totalorder %s18, 0
    %p199 = por %p197, %p198
    %p200 = scmp.ne.s32.totalorder %s192, %s194
    %p201 = scmp.eq.s32.totalorder %s23, 1
    %p202 = por %p200, %p201
    %p203 = scmp.ne.s32.totalorder %s194, %s195
    %p204 = scmp.eq.s32.totalorder %s23, 0
    %p205 = por %p203, %p204
    %p206 = scmp.ne.s32.totalorder %s194, %s195
    %p207 = scmp.eq.s32.totalorder %s24, 1
    %p208 = por %p206, %p207
    %p210 = scmp.ne.s32.totalorder %s195, %s209
    %p211 = scmp.eq.s32.totalorder %s24, 0
    %p212 = por %p210, %p211
    %s214 = sadd.s32 %s213, 1
    %p217 = scmp.eq.s32.totalorder %s18, 1
    %p218 = scmp.ne.s32.totalorder %s213, %s215
    %p219 = scmp.eq.s32.totalorder %s18, 0
    %p220 = por %p218, %p219
    %p221 = scmp.ne.s32.totalorder %s213, %s215
    %p222 = scmp.eq.s32.totalorder %s23, 1
    %p223 = por %p221, %p222
    %p224 = scmp.ne.s32.totalorder %s215, %s216
    %p225 = scmp.eq.s32.totalorder %s23, 0
    %p226 = por %p224, %p225
    %p227 = scmp.ne.s32.totalorder %s215, %s216
    %p228 = scmp.eq.s32.totalorder %s24, 1
    %p229 = por %p227, %p228
    %p231 = scmp.ne.s32.totalorder %s216, %s230
    %p232 = scmp.eq.s32.totalorder %s24, 0
    %p233 = por %p231, %p232
    %s235 = sadd.s32 %s234, 1
    %p238 = scmp.eq.s32.totalorder %s18, 1
    %p239 = scmp.ne.s32.totalorder %s234, %s236
    %p240 = scmp.eq.s32.totalorder %s18, 0
    %p241 = por %p239, %p240
    %p242 = scmp.ne.s32.totalorder %s234, %s236
    %p243 = scmp.eq.s32.totalorder %s23, 1
    %p244 = por %p242, %p243
    %p245 = scmp.ne.s32.totalorder %s236, %s237
    %p246 = scmp.eq.s32.totalorder %s23, 0
    %p247 = por %p245, %p246
    %p248 = scmp.ne.s32.totalorder %s236, %s237
    %p249 = scmp.eq.s32.totalorder %s24, 1
    %p250 = por %p248, %p249
    %p252 = scmp.ne.s32.totalorder %s237, %s251
    %p253 = scmp.eq.s32.totalorder %s24, 0
    %p254 = por %p252, %p253
    %s255 = ssub.s32 %s25, %s37
    %s256 = ssub.s32 %s26, %s33
    %s257 = sor.u32 %s255, %s256
    %p258 = scmp.eq.s32.totalorder %s257, 0
    %s260 = sadd.s32 %s259, 1
    %s261 = scalar_select %p258, %s259, %s260
    %p264 = pneg %p258
    %p265 = scmp.eq.s32.totalorder %s18, 1
    %p266 = por %p264, %p265
    %p267 = scmp.ne.s32.totalorder %s259, %s262
    %p268 = scmp.eq.s32.totalorder %s18, 0
    %p269 = por %p267, %p268
    %p270 = scmp.ne.s32.totalorder %s259, %s262
    %p271 = scmp.eq.s32.totalorder %s23, 1
    %p272 = por %p270, %p271
    %p273 = scmp.ne.s32.totalorder %s262, %s263
    %p274 = scmp.eq.s32.totalorder %s23, 0
    %p275 = por %p273, %p274
    %p276 = scmp.ne.s32.totalorder %s262, %s263
    %p277 = scmp.eq.s32.totalorder %s24, 1
    %p278 = por %p276, %p277
    %p280 = scmp.ne.s32.totalorder %s263, %s279
    %p281 = scmp.eq.s32.totalorder %s24, 0
    %p282 = por %p280, %p281
    %s283 = ssub.s32 %s25, %s37
    %s284 = ssub.s32 %s26, %s33
    %s285 = sor.u32 %s283, %s284
    %p286 = scmp.eq.s32.totalorder %s285, 0
    %s288 = sadd.s32 %s287, 1
    %s289 = scalar_select %p286, %s287, %s288
    %p292 = pneg %p286
    %p293 = scmp.eq.s32.totalorder %s18, 1
    %p294 = por %p292, %p293
    %p295 = scmp.ne.s32.totalorder %s287, %s290
    %p296 = scmp.eq.s32.totalorder %s18, 0
    %p297 = por %p295, %p296
    %p298 = scmp.ne.s32.totalorder %s287, %s290
    %p299 = scmp.eq.s32.totalorder %s23, 1
    %p300 = por %p298, %p299
    %p301 = scmp.ne.s32.totalorder %s290, %s291
    %p302 = scmp.eq.s32.totalorder %s23, 0
    %p303 = por %p301, %p302
    %p304 = scmp.ne.s32.totalorder %s290, %s291
    %p305 = scmp.eq.s32.totalorder %s24, 1
    %p306 = por %p304, %p305
    %p308 = scmp.ne.s32.totalorder %s291, %s307
    %p309 = scmp.eq.s32.totalorder %s24, 0
    %p310 = por %p308, %p309
    %s311 = ssub.s32 %s25, %s37
    %s312 = ssub.s32 %s26, %s33
    %s313 = sor.u32 %s311, %s312
    %p314 = scmp.eq.s32.totalorder %s313, 0
    %s316 = sadd.s32 %s315, 1
    %s317 = scalar_select %p314, %s315, %s316
    %p320 = pneg %p314
    %p321 = scmp.eq.s32.totalorder %s18, 1
    %p322 = por %p320, %p321
    %p323 = scmp.ne.s32.totalorder %s315, %s318
    %p324 = scmp.eq.s32.totalorder %s18, 0
    %p325 = por %p323, %p324
    %p326 = scmp.ne.s32.totalorder %s315, %s318
    %p327 = scmp.eq.s32.totalorder %s23, 1
    %p328 = por %p326, %p327
    %p329 = scmp.ne.s32.totalorder %s318, %s319
    %p330 = scmp.eq.s32.totalorder %s23, 0
    %p331 = por %p329, %p330
    %p332 = scmp.ne.s32.totalorder %s318, %s319
    %p333 = scmp.eq.s32.totalorder %s24, 1
    %p334 = por %p332, %p333
    %p336 = scmp.ne.s32.totalorder %s319, %s335
    %p337 = scmp.eq.s32.totalorder %s24, 0
    %p338 = por %p336, %p337
    %p339 = scmp.le.s32.totalorder 1, %s18
    %p340 = scmp.lt.s32.totalorder %s18, 3
    %p341 = pnand %p339, %p340
    %p342 = pneg %p341
    // Predicated region
    $region9: #{render_model_forward.5} parent=5 // pred_check
      _
    $region10: #{render_model_forward.5} parent=5 // pred_check_branch
      %344 = sbr.rel (%p341) target = $region12
    $region11: #{render_model_forward.5} parent=5 // pred_region
      %s345 = ssub.s32 %s18, 1
      // Predicated region
      $region13: #{render_model_forward.5} parent=11 // pred_check
        %p346 = pneg %p163
      $region14: #{render_model_forward.5} parent=11 // pred_check_branch
        %348 = sbr.rel (%p346) target = $region16
      $region15: #{render_model_forward.5} parent=11 // pred_region
        _
      $region16: #{render_model_forward.5} parent=11 // pred_fallthru
        _
      // Predicated region
      $region17: #{render_model_forward.5} parent=11 // pred_check
        %p349 = pneg %p184
      $region18: #{render_model_forward.5} parent=11 // pred_check_branch
        %351 = sbr.rel (%p349) target = $region20
      $region19: #{render_model_forward.5} parent=11 // pred_region
        _
      $region20: #{render_model_forward.5} parent=11 // pred_fallthru
        _
      // Predicated region
      $region21: #{render_model_forward.5} parent=11 // pred_check
        %p352 = pneg %p205
      $region22: #{render_model_forward.5} parent=11 // pred_check_branch
        %354 = sbr.rel (%p352) target = $region24
      $region23: #{render_model_forward.5} parent=11 // pred_region
        _
      $region24: #{render_model_forward.5} parent=11 // pred_fallthru
        _
      // Predicated region
      $region25: #{render_model_forward.5} parent=11 // pred_check
        %p355 = pneg %p226
      $region26: #{render_model_forward.5} parent=11 // pred_check_branch
        %357 = sbr.rel (%p355) target = $region28
      $region27: #{render_model_forward.5} parent=11 // pred_region
        _
      $region28: #{render_model_forward.5} parent=11 // pred_fallthru
        _
      // Predicated region
      $region29: #{render_model_forward.5} parent=11 // pred_check
        %p358 = pneg %p247
      $region30: #{render_model_forward.5} parent=11 // pred_check_branch
        %360 = sbr.rel (%p358) target = $region32
      $region31: #{render_model_forward.5} parent=11 // pred_region
        _
      $region32: #{render_model_forward.5} parent=11 // pred_fallthru
        _
    $region12: #{render_model_forward.5} parent=5 // pred_fallthru
      _
    %p361 = scmp.lt.s32.totalorder %s18, 2
    // Predicated region
    $region33: #{render_model_forward.5} parent=5 // pred_check
      %p362 = pneg %p361
    $region34: #{render_model_forward.5} parent=5 // pred_check_branch
      %364 = sbr.rel (%p362) target = $region36
    $region35: #{render_model_forward.5} parent=5 // pred_region
      // Predicated region
      $region37: #{render_model_forward.5} parent=35 // pred_check
        %p365 = pneg %p52
      $region38: #{render_model_forward.5} parent=35 // pred_check_branch
        %367 = sbr.rel (%p365) target = $region40
      $region39: #{render_model_forward.5} parent=35 // pred_region
        %s368 = smul.u32 2, %s26
        %p369 = scmp.lt.s32.totalorder %s25, 1
        %s370 = scalar_select %p369, %s25, 1
        %p371 = scmp.lt.s32.totalorder %s368, 1
        %s372 = scalar_select %p371, %s368, 1
        %s373 = smul.addr %s370, 4
        %s374 = sadd.s32 %s372, %s373
        %s375 = smul.addr %s374, 2
        %s376 = scalar_lea.vmem %s0, %s375
        %s377 = smul.u32 2, %s26
      $region40: #{render_model_forward.5} parent=35 // pred_fallthru
        _
      // Predicated region
      $region41: #{render_model_forward.5} parent=35 // pred_check
        %p378 = pneg %p80
      $region42: #{render_model_forward.5} parent=35 // pred_check_branch
        %380 = sbr.rel (%p378) target = $region44
      $region43: #{render_model_forward.5} parent=35 // pred_region
        %s381 = smul.u32 2, %s26
        %p382 = scmp.lt.s32.totalorder %s25, 1
        %s383 = scalar_select %p382, %s25, 1
        %p384 = scmp.lt.s32.totalorder %s381, 1
        %s385 = scalar_select %p384, %s381, 1
        %s386 = smul.addr %s383, 2
        %s387 = sadd.s32 %s385, %s386
        %s388 = smul.addr %s387, 4
        %s389 = scalar_lea.vmem %s1, %s388
        %s390 = smul.u32 2, %s26
      $region44: #{render_model_forward.5} parent=35 // pred_fallthru
        _
      // Predicated region
      $region45: #{render_model_forward.5} parent=35 // pred_check
        %p391 = pneg %p108
      $region46: #{render_model_forward.5} parent=35 // pred_check_branch
        %393 = sbr.rel (%p391) target = $region48
      $region47: #{render_model_forward.5} parent=35 // pred_region
        %s394 = smul.u32 2, %s26
        %p395 = scmp.lt.s32.totalorder %s25, 1
        %s396 = scalar_select %p395, %s25, 1
        %p397 = scmp.lt.s32.totalorder %s394, 1
        %s398 = scalar_select %p397, %s394, 1
        %s399 = smul.addr %s396, 12
        %s400 = sadd.s32 %s398, %s399
        %s401 = smul.addr %s400, 2
        %s402 = scalar_lea.vmem %s2, %s401
        %s403 = smul.u32 2, %s26
      $region48: #{render_model_forward.5} parent=35 // pred_fallthru
        _
      // Predicated region
      $region49: #{render_model_forward.5} parent=35 // pred_check
        %p404 = pneg %p136
      $region50: #{render_model_forward.5} parent=35 // pred_check_branch
        %406 = sbr.rel (%p404) target = $region52
      $region51: #{render_model_forward.5} parent=35 // pred_region
        %s407 = smul.u32 2, %s26
        %p408 = scmp.lt.s32.totalorder %s25, 1
        %s409 = scalar_select %p408, %s25, 1
        %p410 = scmp.lt.s32.totalorder %s407, 1
        %s411 = scalar_select %p410, %s407, 1
        %s412 = smul.addr %s409, 4
        %s413 = sadd.s32 %s411, %s412
        %s414 = smul.addr %s413, 2
        %s415 = scalar_lea.vmem %s3, %s414
        %s416 = smul.u32 2, %s26
      $region52: #{render_model_forward.5} parent=35 // pred_fallthru
        _
    $region36: #{render_model_forward.5} parent=5 // pred_fallthru
      _
    %p417 = scmp.le.s32.totalorder 1, %s18
    %p418 = scmp.lt.s32.totalorder %s18, 3
    %p419 = pnand %p417, %p418
    %p420 = pneg %p419
    // Predicated region
    $region53: #{render_model_forward.5} parent=5 // pred_check
      _
    $region54: #{render_model_forward.5} parent=5 // pred_check_branch
      %422 = sbr.rel (%p419) target = $region56
    $region55: #{render_model_forward.5} parent=5 // pred_region
      %s423 = ssub.s32 %s18, 1
      %s424 = smul.u32 2, %s28
      %p425 = scmp.lt.s32.totalorder %s27, 1
      %s426 = scalar_select %p425, %s27, 1
      %p427 = scmp.lt.s32.totalorder %s424, 1
      %s428 = scalar_select %p427, %s424, 1
      %s429 = smul.addr %s426, 4
      %s430 = sadd.s32 %s428, %s429
      %s431 = smul.addr %s430, 2
      %s432 = scalar_lea.vmem %s0, %s431
      %p433 = pneg %p58
      %p434 = pneg %p55
      %s435 = smul.u32 2, %s28
      %p436 = scmp.lt.s32.totalorder %s27, 1
      %s437 = scalar_select %p436, %s27, 1
      %p438 = scmp.lt.s32.totalorder %s435, 1
      %s439 = scalar_select %p438, %s435, 1
      %s440 = smul.addr %s437, 2
      %s441 = sadd.s32 %s439, %s440
      %s442 = smul.addr %s441, 4
      %s443 = scalar_lea.vmem %s1, %s442
      %p444 = pneg %p86
      %p445 = pneg %p83
      %s446 = smul.u32 2, %s28
      %p447 = scmp.lt.s32.totalorder %s27, 1
      %s448 = scalar_select %p447, %s27, 1
      %p449 = scmp.lt.s32.totalorder %s446, 1
      %s450 = scalar_select %p449, %s446, 1
      %s451 = smul.addr %s448, 12
      %s452 = sadd.s32 %s450, %s451
      %s453 = smul.addr %s452, 2
      %s454 = scalar_lea.vmem %s2, %s453
      %p455 = pneg %p114
      %p456 = pneg %p111
      %s457 = smul.u32 2, %s28
      %p458 = scmp.lt.s32.totalorder %s27, 1
      %s459 = scalar_select %p458, %s27, 1
      %p460 = scmp.lt.s32.totalorder %s457, 1
      %s461 = scalar_select %p460, %s457, 1
      %s462 = smul.addr %s459, 4
      %s463 = sadd.s32 %s461, %s462
      %s464 = smul.addr %s463, 2
      %s465 = scalar_lea.vmem %s3, %s464
      %p466 = pneg %p142
      %p467 = pneg %p139
      %p468 = pneg %p163
      %p469 = pneg %p160
      %p470 = pneg %p184
      %p471 = pneg %p181
      %p472 = pneg %p205
      %p473 = pneg %p202
      %p474 = pneg %p226
      %p475 = pneg %p223
      %p476 = pneg %p247
      %p477 = pneg %p244
      %p478 = pneg %p275
      %p479 = pneg %p272
      %s480 = smul.u32 2, %s28
      %p481 = scmp.lt.s32.totalorder %s27, 1
      %s482 = scalar_select %p481, %s27, 1
      %p483 = scmp.lt.s32.totalorder %s480, 1
      %s484 = scalar_select %p483, %s480, 1
      %s485 = smul.addr %s482, 2
      %s486 = sadd.s32 %s484, %s485
      %s487 = smul.addr %s486, 4
      %s488 = scalar_lea.vmem %s9, %s487
      %p489 = pneg %p303
      %p490 = pneg %p300
      %s491 = smul.u32 2, %s28
      %p492 = scmp.lt.s32.totalorder %s27, 1
      %s493 = scalar_select %p492, %s27, 1
      %p494 = scmp.lt.s32.totalorder %s491, 1
      %s495 = scalar_select %p494, %s491, 1
      %s496 = smul.addr %s493, 4
      %s497 = sadd.s32 %s495, %s496
      %s498 = smul.addr %s497, 4
      %s499 = scalar_lea.vmem %s10, %s498
      %p500 = pneg %p331
      %p501 = pneg %p328
      %s502 = smul.u32 2, %s28
      %p503 = scmp.lt.s32.totalorder %s27, 1
      %s504 = scalar_select %p503, %s27, 1
      %p505 = scmp.lt.s32.totalorder %s502, 1
      %s506 = scalar_select %p505, %s502, 1
      %s507 = smul.addr %s504, 2
      %s508 = sadd.s32 %s506, %s507
      %s509 = smul.addr %s508, 4
      %s510 = scalar_lea.vmem %s11, %s509
      %s511 = smul.u32 2, %s28
      %p512 = scmp.lt.s32.totalorder %s27, 1
      %s513 = scalar_select %p512, %s27, 1
      %p514 = scmp.lt.s32.totalorder %s511, 1
      %s515 = scalar_select %p514, %s511, 1
      %s516 = smul.addr %s513, 4
      %s517 = sadd.s32 %s515, %s516
      %s518 = smul.addr %s517, 2
      %s519 = scalar_lea.vmem %s0, %s518
      %s520 = smul.u32 2, %s28
      %s521 = smul.u32 2, %s28
      %p522 = scmp.lt.s32.totalorder %s27, 1
      %s523 = scalar_select %p522, %s27, 1
      %p524 = scmp.lt.s32.totalorder %s521, 1
      %s525 = scalar_select %p524, %s521, 1
      %s526 = smul.addr %s523, 2
      %s527 = sadd.s32 %s525, %s526
      %s528 = smul.addr %s527, 4
      %s529 = scalar_lea.vmem %s1, %s528
      %s530 = smul.u32 2, %s28
      %s531 = smul.u32 2, %s28
      %p532 = scmp.lt.s32.totalorder %s27, 1
      %s533 = scalar_select %p532, %s27, 1
      %p534 = scmp.lt.s32.totalorder %s531, 1
      %s535 = scalar_select %p534, %s531, 1
      %s536 = smul.addr %s533, 12
      %s537 = sadd.s32 %s535, %s536
      %s538 = smul.addr %s537, 2
      %s539 = scalar_lea.vmem %s2, %s538
      %s540 = smul.u32 2, %s28
      %s541 = smul.u32 2, %s28
      %p542 = scmp.lt.s32.totalorder %s27, 1
      %s543 = scalar_select %p542, %s27, 1
      %p544 = scmp.lt.s32.totalorder %s541, 1
      %s545 = scalar_select %p544, %s541, 1
      %s546 = smul.addr %s543, 4
      %s547 = sadd.s32 %s545, %s546
      %s548 = smul.addr %s547, 2
      %s549 = scalar_lea.vmem %s3, %s548
      %s550 = smul.u32 2, %s28
      %s551 = smul.u32 2, %s28
      %p552 = scmp.lt.s32.totalorder %s27, 1
      %s553 = scalar_select %p552, %s27, 1
      %p554 = scmp.lt.s32.totalorder %s551, 1
      %s555 = scalar_select %p554, %s551, 1
      %s556 = smul.addr %s553, 2
      %s557 = sadd.s32 %s555, %s556
      %s558 = smul.addr %s557, 4
      %s559 = scalar_lea.vmem %s9, %s558
      %s560 = smul.u32 2, %s28
      %s561 = smul.u32 2, %s28
      %p562 = scmp.lt.s32.totalorder %s27, 1
      %s563 = scalar_select %p562, %s27, 1
      %p564 = scmp.lt.s32.totalorder %s561, 1
      %s565 = scalar_select %p564, %s561, 1
      %s566 = smul.addr %s563, 4
      %s567 = sadd.s32 %s565, %s566
      %s568 = smul.addr %s567, 4
      %s569 = scalar_lea.vmem %s10, %s568
      %s570 = smul.u32 2, %s28
      %s571 = smul.u32 2, %s28
      %p572 = scmp.lt.s32.totalorder %s27, 1
      %s573 = scalar_select %p572, %s27, 1
      %p574 = scmp.lt.s32.totalorder %s571, 1
      %s575 = scalar_select %p574, %s571, 1
      %s576 = smul.addr %s573, 2
      %s577 = sadd.s32 %s575, %s576
      %s578 = smul.addr %s577, 4
      %s579 = scalar_lea.vmem %s11, %s578
      %s580 = smul.u32 2, %s28
      %v581 = vld [vmem:[%s519] sm:$0xf]
      %v582 = vld [vmem:[%s519 + $0x4] sm:$0xf]
      %v583 = vunpack.c.l.bf16 %v581
      %v584 = vunpack.c.l.bf16 %v582
      %v585 = vld [vmem:[%s549] sm:$0xf]
      %v586 = vld [vmem:[%s549 + $0x4] sm:$0xf]
      %v587 = vunpack.c.l.bf16 %v585
      %v588 = vunpack.c.l.bf16 %v586
      %v589 = vld [vmem:[%s529] sm:$0xff]
      %v590 = vmax.f32 %v583, %v584
      %v591 = vsub.f32 %v583, %v590
      %v592 = vsub.f32 %v584, %v590
      %v593 = vmul.f32 %v591, 1.442695
      %v594 = vpow.pop %v593
      %v595 = vmul.f32 %v592, 1.442695
      %v596 = vpow.pop %v595
      %v597 = vmul.f32 %v594, %v587
      %v598 = vmul.f32 %v596, %v588
      %v601 = vcombine.high %v597, %v597
      %v602 = vcombine.high %v598, %v598
      %vm605 = vcmask 1043456
      %v606 = vsel %vm605, %v597, 0.0
      %v607 = vsel %vm605, %v598, 0.0
      %v608 = vadd.f32 %v606, %v607
      %v609 = vsel %vm605, %v601, 0.0
      %v610 = vsel %vm605, %v602, 0.0
      %v611 = vadd.f32 %v609, %v610
      %v612 = vadd.f32 %v608, 1e-08
      %v613 = vadd.f32 %v611, 1e-08
      %v614 = vrcp.pop %v612
      %v615 = vrcp.pop %v613
      %v617 = vcombine.high %v589, %v589
      %v619 = vsel %vm605, %v589, -inf
      %v620 = vrot.slane %v619, 4
      %v621 = vmax.f32 %v619, %v620
      %v622 = vrot.slane %v621, 2
      %v623 = vmax.f32 %v621, %v622
      %v624 = vrot.slane %v623, 1
      %v625 = vmax.f32 %v623, %v624
      %v626 = vsel %vm605, %v617, -inf
      %v627 = vrot.slane %v626, 4
      %v628 = vmax.f32 %v626, %v627
      %v629 = vrot.slane %v628, 2
      %v630 = vmax.f32 %v628, %v629
      %v631 = vrot.slane %v630, 1
      %v632 = vmax.f32 %v630, %v631
      %v635 = vcombine.low %v625, %v632
      %v637 = vsub.f32 %v589, %v635
      %v638 = vmul.f32 %v637, 1.442695
      %v639 = vpow.pop %v638
      %v641 = vcombine.high %v639, %v639
      %v643 = vsel %vm605, %v639, 0.0
      %v644 = vrot.slane %v643, 4
      %v645 = vadd.f32 %v643, %v644
      %v646 = vrot.slane %v645, 2
      %v647 = vadd.f32 %v645, %v646
      %v648 = vrot.slane %v647, 1
      %v649 = vadd.f32 %v647, %v648
      %v650 = vsel %vm605, %v641, 0.0
      %v651 = vrot.slane %v650, 4
      %v652 = vadd.f32 %v650, %v651
      %v653 = vrot.slane %v652, 2
      %v654 = vadd.f32 %v652, %v653
      %v655 = vrot.slane %v654, 1
      %v656 = vadd.f32 %v654, %v655
      %v657 = vrcp.pop %v649
      %v658 = vrcp.pop %v656
      %v661 = vcombine.low %v657, %v658
      %v663 = vmul.f32 %v639, %v661
      %v664 = vld [vmem:[%s539] sm:$0xf]
      %v665 = vld [vmem:[%s539 + $0x4] sm:$0xf]
      %v666 = vld [vmem:[%s539 + $0x8] sm:$0xf]
      %v667 = vunpack.c.l.bf16 %v664
      %v668 = vunpack.c.l.bf16 %v665
      %v669 = vunpack.c.l.bf16 %v666
      %v670 = vmul.f32 %v667, %v663
      %v671 = vmul.f32 %v668, %v663
      %v672 = vmul.f32 %v669, %v663
      %v676 = vcombine.high %v670, %v670
      %v677 = vcombine.high %v671, %v671
      %v678 = vcombine.high %v672, %v672
      %v682 = vsel %vm605, %v670, 0.0
      %v683 = vrot.slane %v682, 4
      %v684 = vadd.f32 %v682, %v683
      %v685 = vrot.slane %v684, 2
      %v686 = vadd.f32 %v684, %v685
      %v687 = vrot.slane %v686, 1
      %v688 = vadd.f32 %v686, %v687
      %v689 = vsel %vm605, %v676, 0.0
      %v690 = vrot.slane %v689, 4
      %v691 = vadd.f32 %v689, %v690
      %v692 = vrot.slane %v691, 2
      %v693 = vadd.f32 %v691, %v692
      %v694 = vrot.slane %v693, 1
      %v695 = vadd.f32 %v693, %v694
      %v696 = vsel %vm605, %v671, 0.0
      %v697 = vrot.slane %v696, 4
      %v698 = vadd.f32 %v696, %v697
      %v699 = vrot.slane %v698, 2
      %v700 = vadd.f32 %v698, %v699
      %v701 = vrot.slane %v700, 1
      %v702 = vadd.f32 %v700, %v701
      %v703 = vsel %vm605, %v677, 0.0
      %v704 = vrot.slane %v703, 4
      %v705 = vadd.f32 %v703, %v704
      %v706 = vrot.slane %v705, 2
      %v707 = vadd.f32 %v705, %v706
      %v708 = vrot.slane %v707, 1
      %v709 = vadd.f32 %v707, %v708
      %v710 = vsel %vm605, %v672, 0.0
      %v711 = vrot.slane %v710, 4
      %v712 = vadd.f32 %v710, %v711
      %v713 = vrot.slane %v712, 2
      %v714 = vadd.f32 %v712, %v713
      %v715 = vrot.slane %v714, 1
      %v716 = vadd.f32 %v714, %v715
      %v717 = vsel %vm605, %v678, 0.0
      %v718 = vrot.slane %v717, 4
      %v719 = vadd.f32 %v717, %v718
      %v720 = vrot.slane %v719, 2
      %v721 = vadd.f32 %v719, %v720
      %v722 = vrot.slane %v721, 1
      %v723 = vadd.f32 %v721, %v722
      %v726 = vcombine.low %v614, %v615
      %v728 = vmul.f32 %v597, %v726
      %v729 = vmul.f32 %v670, %v728
      %v730 = vmul.f32 %v671, %v728
      %v731 = vmul.f32 %v672, %v728
      %v735 = vcombine.high %v729, %v729
      %v736 = vcombine.high %v730, %v730
      %v737 = vcombine.high %v731, %v731
      %v741 = vsel %vm605, %v729, 0.0
      %v742 = vrot.slane %v741, 4
      %v743 = vadd.f32 %v741, %v742
      %v744 = vrot.slane %v743, 2
      %v745 = vadd.f32 %v743, %v744
      %v746 = vrot.slane %v745, 1
      %v747 = vadd.f32 %v745, %v746
      %v748 = vsel %vm605, %v735, 0.0
      %v749 = vrot.slane %v748, 4
      %v750 = vadd.f32 %v748, %v749
      %v751 = vrot.slane %v750, 2
      %v752 = vadd.f32 %v750, %v751
      %v753 = vrot.slane %v752, 1
      %v754 = vadd.f32 %v752, %v753
      %v755 = vsel %vm605, %v730, 0.0
      %v756 = vrot.slane %v755, 4
      %v757 = vadd.f32 %v755, %v756
      %v758 = vrot.slane %v757, 2
      %v759 = vadd.f32 %v757, %v758
      %v760 = vrot.slane %v759, 1
      %v761 = vadd.f32 %v759, %v760
      %v762 = vsel %vm605, %v736, 0.0
      %v763 = vrot.slane %v762, 4
      %v764 = vadd.f32 %v762, %v763
      %v765 = vrot.slane %v764, 2
      %v766 = vadd.f32 %v764, %v765
      %v767 = vrot.slane %v766, 1
      %v768 = vadd.f32 %v766, %v767
      %v769 = vsel %vm605, %v731, 0.0
      %v770 = vrot.slane %v769, 4
      %v771 = vadd.f32 %v769, %v770
      %v772 = vrot.slane %v771, 2
      %v773 = vadd.f32 %v771, %v772
      %v774 = vrot.slane %v773, 1
      %v775 = vadd.f32 %v773, %v774
      %v776 = vsel %vm605, %v737, 0.0
      %v777 = vrot.slane %v776, 4
      %v778 = vadd.f32 %v776, %v777
      %v779 = vrot.slane %v778, 2
      %v780 = vadd.f32 %v778, %v779
      %v781 = vrot.slane %v780, 1
      %v782 = vadd.f32 %v780, %v781
      %v783 = vadd.f32 %v747, 0.0
      %v784 = vadd.f32 %v754, 0.0
      %v785 = vadd.f32 %v761, 0.0
      %v786 = vadd.f32 %v768, 0.0
      %v787 = vadd.f32 %v775, 0.0
      %v788 = vadd.f32 %v782, 0.0
      %v795 = vcombine.low %v688, %v695
      %v796 = vcombine.low %v702, %v709
      %v797 = vcombine.low %v716, %v723
      %v798 = vrot.slane %v796, 7
      %vm799 = vcmask 1041409
      %v800 = vsel %vm799, %v798, %v795
      %vm801 = vcmask 1045509
      %v802 = vsel %vm801, %v798, %v800
      %v803 = vrot.slane %v797, 6
      %vm804 = vcmask 1042434
      %v805 = vsel %vm804, %v803, %v802
      %vm806 = vcmask 1046534
      %v807 = vsel %vm806, %v803, %v805
      %809 = vst [vmem:[%s569] sm:$0x77] %v807
      %s810 = scalar_lea.vmem %s539, 12
      %v811 = vld [vmem:[%s810] sm:$0xf]
      %v812 = vld [vmem:[%s810 + $0x4] sm:$0xf]
      %v813 = vld [vmem:[%s810 + $0x8] sm:$0xf]
      %v814 = vunpack.c.l.bf16 %v811
      %v815 = vunpack.c.l.bf16 %v812
      %v816 = vunpack.c.l.bf16 %v813
      %v817 = vmul.f32 %v814, %v663
      %v818 = vmul.f32 %v815, %v663
      %v819 = vmul.f32 %v816, %v663
      %v823 = vcombine.high %v817, %v817
      %v824 = vcombine.high %v818, %v818
      %v825 = vcombine.high %v819, %v819
      %v829 = vsel %vm605, %v817, 0.0
      %v830 = vrot.slane %v829, 4
      %v831 = vadd.f32 %v829, %v830
      %v832 = vrot.slane %v831, 2
      %v833 = vadd.f32 %v831, %v832
      %v834 = vrot.slane %v833, 1
      %v835 = vadd.f32 %v833, %v834
      %v836 = vsel %vm605, %v823, 0.0
      %v837 = vrot.slane %v836, 4
      %v838 = vadd.f32 %v836, %v837
      %v839 = vrot.slane %v838, 2
      %v840 = vadd.f32 %v838, %v839
      %v841 = vrot.slane %v840, 1
      %v842 = vadd.f32 %v840, %v841
      %v843 = vsel %vm605, %v818, 0.0
      %v844 = vrot.slane %v843, 4
      %v845 = vadd.f32 %v843, %v844
      %v846 = vrot.slane %v845, 2
      %v847 = vadd.f32 %v845, %v846
      %v848 = vrot.slane %v847, 1
      %v849 = vadd.f32 %v847, %v848
      %v850 = vsel %vm605, %v824, 0.0
      %v851 = vrot.slane %v850, 4
      %v852 = vadd.f32 %v850, %v851
      %v853 = vrot.slane %v852, 2
      %v854 = vadd.f32 %v852, %v853
      %v855 = vrot.slane %v854, 1
      %v856 = vadd.f32 %v854, %v855
      %v857 = vsel %vm605, %v819, 0.0
      %v858 = vrot.slane %v857, 4
      %v859 = vadd.f32 %v857, %v858
      %v860 = vrot.slane %v859, 2
      %v861 = vadd.f32 %v859, %v860
      %v862 = vrot.slane %v861, 1
      %v863 = vadd.f32 %v861, %v862
      %v864 = vsel %vm605, %v825, 0.0
      %v865 = vrot.slane %v864, 4
      %v866 = vadd.f32 %v864, %v865
      %v867 = vrot.slane %v866, 2
      %v868 = vadd.f32 %v866, %v867
      %v869 = vrot.slane %v868, 1
      %v870 = vadd.f32 %v868, %v869
      %v871 = vmul.f32 %v598, %v726
      %v872 = vmul.f32 %v817, %v871
      %v873 = vmul.f32 %v818, %v871
      %v874 = vmul.f32 %v819, %v871
      %v878 = vcombine.high %v872, %v872
      %v879 = vcombine.high %v873, %v873
      %v880 = vcombine.high %v874, %v874
      %v884 = vsel %vm605, %v872, 0.0
      %v885 = vrot.slane %v884, 4
      %v886 = vadd.f32 %v884, %v885
      %v887 = vrot.slane %v886, 2
      %v888 = vadd.f32 %v886, %v887
      %v889 = vrot.slane %v888, 1
      %v890 = vadd.f32 %v888, %v889
      %v891 = vsel %vm605, %v878, 0.0
      %v892 = vrot.slane %v891, 4
      %v893 = vadd.f32 %v891, %v892
      %v894 = vrot.slane %v893, 2
      %v895 = vadd.f32 %v893, %v894
      %v896 = vrot.slane %v895, 1
      %v897 = vadd.f32 %v895, %v896
      %v898 = vsel %vm605, %v873, 0.0
      %v899 = vrot.slane %v898, 4
      %v900 = vadd.f32 %v898, %v899
      %v901 = vrot.slane %v900, 2
      %v902 = vadd.f32 %v900, %v901
      %v903 = vrot.slane %v902, 1
      %v904 = vadd.f32 %v902, %v903
      %v905 = vsel %vm605, %v879, 0.0
      %v906 = vrot.slane %v905, 4
      %v907 = vadd.f32 %v905, %v906
      %v908 = vrot.slane %v907, 2
      %v909 = vadd.f32 %v907, %v908
      %v910 = vrot.slane %v909, 1
      %v911 = vadd.f32 %v909, %v910
      %v912 = vsel %vm605, %v874, 0.0
      %v913 = vrot.slane %v912, 4
      %v914 = vadd.f32 %v912, %v913
      %v915 = vrot.slane %v914, 2
      %v916 = vadd.f32 %v914, %v915
      %v917 = vrot.slane %v916, 1
      %v918 = vadd.f32 %v916, %v917
      %v919 = vsel %vm605, %v880, 0.0
      %v920 = vrot.slane %v919, 4
      %v921 = vadd.f32 %v919, %v920
      %v922 = vrot.slane %v921, 2
      %v923 = vadd.f32 %v921, %v922
      %v924 = vrot.slane %v923, 1
      %v925 = vadd.f32 %v923, %v924
      %v926 = vadd.f32 %v783, %v890
      %v927 = vadd.f32 %v784, %v897
      %v928 = vadd.f32 %v785, %v904
      %v929 = vadd.f32 %v786, %v911
      %v930 = vadd.f32 %v787, %v918
      %v931 = vadd.f32 %v788, %v925
      %v938 = vcombine.low %v835, %v842
      %v939 = vcombine.low %v849, %v856
      %v940 = vcombine.low %v863, %v870
      %v941 = vrot.slane %v939, 7
      %v942 = vsel %vm799, %v941, %v938
      %v943 = vsel %vm801, %v941, %v942
      %v944 = vrot.slane %v940, 6
      %v945 = vsel %vm804, %v944, %v943
      %v946 = vsel %vm806, %v944, %v945
      %s948 = scalar_lea.vmem %s569, 8
      %949 = vst [vmem:[%s948] sm:$0x77] %v946
      %v956 = vcombine.low %v926, %v927
      %v957 = vcombine.low %v928, %v929
      %v958 = vcombine.low %v930, %v931
      %v959 = vrot.slane %v957, 7
      %v960 = vsel %vm799, %v959, %v956
      %v961 = vsel %vm801, %v959, %v960
      %v962 = vrot.slane %v958, 6
      %v963 = vsel %vm804, %v962, %v961
      %v964 = vsel %vm806, %v962, %v963
      %966 = vst [vmem:[%s559] sm:$0x77] %v964
      %v967 = vld [vmem:[%s4] sm:$0xff]
      %v968 = vld [vmem:[%s4 + $0x8] sm:$0xff]
      %v969 = vld [vmem:[%s4 + $0x10] sm:$0xff]
      %v970 = vld [vmem:[%s4 + $0x18] sm:$0xff]
      %v971 = vld [vmem:[%s6] sm:$0xff]
      %v972 = vld [vmem:[%s6 + $0x8] sm:$0xff]
      %v973 = vld [vmem:[%s6 + $0x10] sm:$0xff]
      %v974 = vld [vmem:[%s6 + $0x18] sm:$0xff]
      %976 = vset.pattern.permute.xlu0 0
      %977 = vperm.xlu0 %976, %v971
      %v978 = vpop.permute.xlu0 %977
      %981 = vset.pattern.permute.xlu0 0
      %982 = vperm.xlu0 %981, %v972
      %v983 = vpop.permute.xlu0 %982
      %986 = vset.pattern.permute.xlu0 0
      %987 = vperm.xlu0 %986, %v973
      %v988 = vpop.permute.xlu0 %987
      %991 = vset.pattern.permute.xlu0 0
      %992 = vperm.xlu0 %991, %v974
      %v993 = vpop.permute.xlu0 %992
      %v995 = vsel %vm799, %v928, %v926
      %v996 = vsel %vm804, %v930, %v995
      %v997 = vsel %vm799, %v929, %v927
      %v998 = vsel %vm804, %v931, %v997
      %vm999 = vcmask 23552
      %v1001 = vsel %vm999, %v967, 0
      %v1004 = vsel %vm999, %v968, 0
      %v1007 = vsel %vm999, %v969, 0
      %v1010 = vsel %vm999, %v970, 0
      %vm1012 = vcmask 1042432
      %v1013 = vsel %vm1012, %v996, 0
      %v1015 = vsel %vm1012, %v998, 0
      %1017 = vmatprep.subr.mxu0 %v1015
      %1018 = vmatpush1.msra.mxu0 %v1013
      %1019 = vmatprep.subr.mxu0 0.0
      %1020 = vmatpush1.msra.mxu0 0.0
      %1021 = vmatprep.subr.mxu0 0.0
      %1022 = vmatpush1.msra.mxu0 0.0
      %1023 = vmatprep.subr.mxu0 0.0
      %1024 = vmatpush1.msra.mxu0 0.0
      %1025 = vmatprep.subr.mxu0 0.0
      %1026 = vmatpush1.msra.mxu0 0.0
      %1027 = vmatprep.subr.mxu0 0.0
      %1028 = vmatpush1.msra.mxu0 0.0
      %1029 = vmatprep.subr.mxu0 0.0
      %1030 = vmatpush1.msra.mxu0 0.0
      %1031 = vmatprep.subr.mxu0 0.0
      %1032 = vmatpush1.msra.mxu0 0.0
      %1033 = vmatprep.subr.mxu0 0.0
      %1034 = vmatpush1.msra.mxu0 0.0
      %1035 = vmatprep.subr.mxu0 0.0
      %1036 = vmatpush1.msra.mxu0 0.0
      %1037 = vmatprep.subr.mxu0 0.0
      %1038 = vmatpush1.msra.mxu0 0.0
      %1039 = vmatprep.subr.mxu0 0.0
      %1040 = vmatpush1.msra.mxu0 0.0
      %1041 = vmatprep.subr.mxu0 0.0
      %1042 = vmatpush1.msra.mxu0 0.0
      %1043 = vmatprep.subr.mxu0 0.0
      %1044 = vmatpush1.msra.mxu0 0.0
      %1045 = vmatprep.subr.mxu0 0.0
      %1046 = vmatpush1.msra.mxu0 0.0
      %1047 = vmatprep.subr.mxu0 0.0
      %1048 = vmatpush1.msra.mxu0 0.0
      %1049 = vmatprep.subr.mxu0 0.0
      %1050 = vmatpush1.msra.mxu0 0.0
      %1051 = vmatprep.subr.mxu0 0.0
      %1052 = vmatpush1.msra.mxu0 0.0
      %1053 = vmatprep.subr.mxu0 0.0
      %1054 = vmatpush1.msra.mxu0 0.0
      %1055 = vmatprep.subr.mxu0 0.0
      %1056 = vmatpush1.msra.mxu0 0.0
      %1057 = vmatprep.subr.mxu0 0.0
      %1058 = vmatpush1.msra.mxu0 0.0
      %1059 = vmatprep.subr.mxu0 0.0
      %1060 = vmatpush1.msra.mxu0 0.0
      %1061 = vmatprep.subr.mxu0 0.0
      %1062 = vmatpush1.msra.mxu0 0.0
      %1063 = vmatprep.subr.mxu0 0.0
      %1064 = vmatpush1.msra.mxu0 0.0
      %1065 = vmatprep.subr.mxu0 0.0
      %1066 = vmatpush1.msra.mxu0 0.0
      %1067 = vmatprep.subr.mxu0 0.0
      %1068 = vmatpush1.msra.mxu0 0.0
      %1069 = vmatprep.subr.mxu0 0.0
      %1070 = vmatpush1.msra.mxu0 0.0
      %1071 = vmatprep.subr.mxu0 0.0
      %1072 = vmatpush1.msra.mxu0 0.0
      %1073 = vmatprep.subr.mxu0 0.0
      %1074 = vmatpush1.msra.mxu0 0.0
      %1075 = vmatprep.subr.mxu0 0.0
      %1076 = vmatpush1.msra.mxu0 0.0
      %1077 = vmatprep.subr.mxu0 0.0
      %1078 = vmatpush1.msra.mxu0 0.0
      %1079 = vmatprep.subr.mxu0 0.0
      %1080 = vmatpush1.msra.mxu0 0.0
      %1081 = vmatprep.mubr.f32.mxu0 0.0
      %1082 = vmatmul.mubr.f32.gmra.mrb[0].mxu0 %v1001
      %v1083 = vpop.f32.mrb[0].mxu0
      %v1084 = vadd.f32 %v978, %v1083
      %v1085 = vpop.f32.mrb[0].mxu0
      %v1086 = vadd.f32 %v978, %v1085
      %1087 = vmatprep.mubr.f32.mxu0 0.0
      %1088 = vmatmul.mubr.f32.gmra.mrb[0].mxu0 %v1004
      %v1089 = vpop.f32.mrb[0].mxu0
      %v1090 = vadd.f32 %v983, %v1089
      %v1091 = vpop.f32.mrb[0].mxu0
      %v1092 = vadd.f32 %v983, %v1091
      %1093 = vmatprep.mubr.f32.mxu0 0.0
      %1094 = vmatmul.mubr.f32.gmra.mrb[0].mxu0 %v1007
      %v1095 = vpop.f32.mrb[0].mxu0
      %v1096 = vadd.f32 %v988, %v1095
      %v1097 = vpop.f32.mrb[0].mxu0
      %v1098 = vadd.f32 %v988, %v1097
      %1099 = vmatprep.mubr.f32.mxu0 0.0
      %1100 = vmatmul.mubr.f32.gmra.mrb[0].mxu0 %v1010
      %v1101 = vpop.f32.mrb[0].mxu0
      %v1102 = vadd.f32 %v993, %v1101
      %v1103 = vpop.f32.mrb[0].mxu0
      %v1104 = vadd.f32 %v993, %v1103
      %1105 = vdwg.mxu0
      %v1106 = vld [vmem:[%s5] sm:$0xff]
      %v1107 = vld [vmem:[%s5 + $0x8] sm:$0xff]
      %v1108 = vld [vmem:[%s5 + $0x10] sm:$0xff]
      %v1109 = vld [vmem:[%s5 + $0x18] sm:$0xff]
      %v1110 = vsel %vm799, %v702, %v688
      %v1111 = vsel %vm804, %v716, %v1110
      %v1112 = vsel %vm799, %v709, %v695
      %v1113 = vsel %vm804, %v723, %v1112
      %v1115 = vsel %vm999, %v1106, 0
      %v1118 = vsel %vm999, %v1107, 0
      %v1121 = vsel %vm999, %v1108, 0
      %v1124 = vsel %vm999, %v1109, 0
      %v1126 = vsel %vm1012, %v1111, 0
      %v1128 = vsel %vm1012, %v1113, 0
      %1130 = vmatprep.subr.mxu0 %v1128
      %1131 = vmatpush1.msra.mxu0 %v1126
      %1132 = vmatprep.subr.mxu0 0.0
      %1133 = vmatpush1.msra.mxu0 0.0
      %1134 = vmatprep.subr.mxu0 0.0
      %1135 = vmatpush1.msra.mxu0 0.0
      %1136 = vmatprep.subr.mxu0 0.0
      %1137 = vmatpush1.msra.mxu0 0.0
      %1138 = vmatprep.subr.mxu0 0.0
      %1139 = vmatpush1.msra.mxu0 0.0
      %1140 = vmatprep.subr.mxu0 0.0
      %1141 = vmatpush1.msra.mxu0 0.0
      %1142 = vmatprep.subr.mxu0 0.0
      %1143 = vmatpush1.msra.mxu0 0.0
      %1144 = vmatprep.subr.mxu0 0.0
      %1145 = vmatpush1.msra.mxu0 0.0
      %1146 = vmatprep.subr.mxu0 0.0
      %1147 = vmatpush1.msra.mxu0 0.0
      %1148 = vmatprep.subr.mxu0 0.0
      %1149 = vmatpush1.msra.mxu0 0.0
      %1150 = vmatprep.subr.mxu0 0.0
      %1151 = vmatpush1.msra.mxu0 0.0
      %1152 = vmatprep.subr.mxu0 0.0
      %1153 = vmatpush1.msra.mxu0 0.0
      %1154 = vmatprep.subr.mxu0 0.0
      %1155 = vmatpush1.msra.mxu0 0.0
      %1156 = vmatprep.subr.mxu0 0.0
      %1157 = vmatpush1.msra.mxu0 0.0
      %1158 = vmatprep.subr.mxu0 0.0
      %1159 = vmatpush1.msra.mxu0 0.0
      %1160 = vmatprep.subr.mxu0 0.0
      %1161 = vmatpush1.msra.mxu0 0.0
      %1162 = vmatprep.subr.mxu0 0.0
      %1163 = vmatpush1.msra.mxu0 0.0
      %1164 = vmatprep.subr.mxu0 0.0
      %1165 = vmatpush1.msra.mxu0 0.0
      %1166 = vmatprep.subr.mxu0 0.0
      %1167 = vmatpush1.msra.mxu0 0.0
      %1168 = vmatprep.subr.mxu0 0.0
      %1169 = vmatpush1.msra.mxu0 0.0
      %1170 = vmatprep.subr.mxu0 0.0
      %1171 = vmatpush1.msra.mxu0 0.0
      %1172 = vmatprep.subr.mxu0 0.0
      %1173 = vmatpush1.msra.mxu0 0.0
      %1174 = vmatprep.subr.mxu0 0.0
      %1175 = vmatpush1.msra.mxu0 0.0
      %1176 = vmatprep.subr.mxu0 0.0
      %1177 = vmatpush1.msra.mxu0 0.0
      %1178 = vmatprep.subr.mxu0 0.0
      %1179 = vmatpush1.msra.mxu0 0.0
      %1180 = vmatprep.subr.mxu0 0.0
      %1181 = vmatpush1.msra.mxu0 0.0
      %1182 = vmatprep.subr.mxu0 0.0
      %1183 = vmatpush1.msra.mxu0 0.0
      %1184 = vmatprep.subr.mxu0 0.0
      %1185 = vmatpush1.msra.mxu0 0.0
      %1186 = vmatprep.subr.mxu0 0.0
      %1187 = vmatpush1.msra.mxu0 0.0
      %1188 = vmatprep.subr.mxu0 0.0
      %1189 = vmatpush1.msra.mxu0 0.0
      %1190 = vmatprep.subr.mxu0 0.0
      %1191 = vmatpush1.msra.mxu0 0.0
      %1192 = vmatprep.subr.mxu0 0.0
      %1193 = vmatpush1.msra.mxu0 0.0
      %1194 = vmatprep.mubr.f32.mxu0 0.0
      %1195 = vmatmul.mubr.f32.gmra.mrb[0].mxu0 %v1115
      %v1196 = vpop.f32.mrb[0].mxu0
      %v1197 = vadd.f32 0.0, %v1196
      %v1198 = vpop.f32.mrb[0].mxu0
      %v1199 = vadd.f32 0.0, %v1198
      %1200 = vmatprep.mubr.f32.mxu0 0.0
      %1201 = vmatmul.mubr.f32.gmra.mrb[0].mxu0 %v1118
      %v1202 = vpop.f32.mrb[0].mxu0
      %v1203 = vadd.f32 0.0, %v1202
      %v1204 = vpop.f32.mrb[0].mxu0
      %v1205 = vadd.f32 0.0, %v1204
      %1206 = vmatprep.mubr.f32.mxu0 0.0
      %1207 = vmatmul.mubr.f32.gmra.mrb[0].mxu0 %v1121
      %v1208 = vpop.f32.mrb[0].mxu0
      %v1209 = vadd.f32 0.0, %v1208
      %v1210 = vpop.f32.mrb[0].mxu0
      %v1211 = vadd.f32 0.0, %v1210
      %1212 = vmatprep.mubr.f32.mxu0 0.0
      %1213 = vmatmul.mubr.f32.gmra.mrb[0].mxu0 %v1124
      %v1214 = vpop.f32.mrb[0].mxu0
      %v1215 = vadd.f32 0.0, %v1214
      %v1216 = vpop.f32.mrb[0].mxu0
      %v1217 = vadd.f32 0.0, %v1216
      %1218 = vdwg.mxu0
      %v1219 = vadd.f32 %v1084, %v1197
      %v1220 = vadd.f32 %v1086, %v1199
      %v1221 = vadd.f32 %v1090, %v1203
      %v1222 = vadd.f32 %v1092, %v1205
      %v1223 = vadd.f32 %v1096, %v1209
      %v1224 = vadd.f32 %v1098, %v1211
      %v1225 = vadd.f32 %v1102, %v1215
      %v1226 = vadd.f32 %v1104, %v1217
      %v1227 = vmax.f32 %v1219, 0.0
      %v1228 = vmax.f32 %v1220, 0.0
      %v1229 = vmax.f32 %v1221, 0.0
      %v1230 = vmax.f32 %v1222, 0.0
      %v1231 = vmax.f32 %v1223, 0.0
      %v1232 = vmax.f32 %v1224, 0.0
      %v1233 = vmax.f32 %v1225, 0.0
      %v1234 = vmax.f32 %v1226, 0.0
      %v1235 = vld [vmem:[%s7] sm:$0xf]
      %v1236 = vld [vmem:[%s8] sm:$0xf]
      %1238 = vset.pattern.permute.xlu0 0
      %1239 = vperm.xlu0 %1238, %v1236
      %v1240 = vpop.permute.xlu0 %1239
      %vm1242 = vcmask 261120
      %v1244 = vsel %vm1242, %v1235, 0
      %1246 = vmatprep.subr.mxu0 %v1228
      %1247 = vmatpush1.msra.mxu0 %v1227
      %1248 = vmatprep.subr.mxu0 %v1230
      %1249 = vmatpush1.msra.mxu0 %v1229
      %1250 = vmatprep.subr.mxu0 %v1232
      %1251 = vmatpush1.msra.mxu0 %v1231
      %1252 = vmatprep.subr.mxu0 %v1234
      %1253 = vmatpush1.msra.mxu0 %v1233
      %1254 = vmatprep.subr.mxu0 0.0
      %1255 = vmatpush1.msra.mxu0 0.0
      %1256 = vmatprep.subr.mxu0 0.0
      %1257 = vmatpush1.msra.mxu0 0.0
      %1258 = vmatprep.subr.mxu0 0.0
      %1259 = vmatpush1.msra.mxu0 0.0
      %1260 = vmatprep.subr.mxu0 0.0
      %1261 = vmatpush1.msra.mxu0 0.0
      %1262 = vmatprep.subr.mxu0 0.0
      %1263 = vmatpush1.msra.mxu0 0.0
      %1264 = vmatprep.subr.mxu0 0.0
      %1265 = vmatpush1.msra.mxu0 0.0
      %1266 = vmatprep.subr.mxu0 0.0
      %1267 = vmatpush1.msra.mxu0 0.0
      %1268 = vmatprep.subr.mxu0 0.0
      %1269 = vmatpush1.msra.mxu0 0.0
      %1270 = vmatprep.subr.mxu0 0.0
      %1271 = vmatpush1.msra.mxu0 0.0
      %1272 = vmatprep.subr.mxu0 0.0
      %1273 = vmatpush1.msra.mxu0 0.0
      %1274 = vmatprep.subr.mxu0 0.0
      %1275 = vmatpush1.msra.mxu0 0.0
      %1276 = vmatprep.subr.mxu0 0.0
      %1277 = vmatpush1.msra.mxu0 0.0
      %1278 = vmatprep.subr.mxu0 0.0
      %1279 = vmatpush1.msra.mxu0 0.0
      %1280 = vmatprep.subr.mxu0 0.0
      %1281 = vmatpush1.msra.mxu0 0.0
      %1282 = vmatprep.subr.mxu0 0.0
      %1283 = vmatpush1.msra.mxu0 0.0
      %1284 = vmatprep.subr.mxu0 0.0
      %1285 = vmatpush1.msra.mxu0 0.0
      %1286 = vmatprep.subr.mxu0 0.0
      %1287 = vmatpush1.msra.mxu0 0.0
      %1288 = vmatprep.subr.mxu0 0.0
      %1289 = vmatpush1.msra.mxu0 0.0
      %1290 = vmatprep.subr.mxu0 0.0
      %1291 = vmatpush1.msra.mxu0 0.0
      %1292 = vmatprep.subr.mxu0 0.0
      %1293 = vmatpush1.msra.mxu0 0.0
      %1294 = vmatprep.subr.mxu0 0.0
      %1295 = vmatpush1.msra.mxu0 0.0
      %1296 = vmatprep.subr.mxu0 0.0
      %1297 = vmatpush1.msra.mxu0 0.0
      %1298 = vmatprep.subr.mxu0 0.0
      %1299 = vmatpush1.msra.mxu0 0.0
      %1300 = vmatprep.subr.mxu0 0.0
      %1301 = vmatpush1.msra.mxu0 0.0
      %1302 = vmatprep.subr.mxu0 0.0
      %1303 = vmatpush1.msra.mxu0 0.0
      %1304 = vmatprep.subr.mxu0 0.0
      %1305 = vmatpush1.msra.mxu0 0.0
      %1306 = vmatprep.subr.mxu0 0.0
      %1307 = vmatpush1.msra.mxu0 0.0
      %1308 = vmatprep.subr.mxu0 0.0
      %1309 = vmatpush1.msra.mxu0 0.0
      %1310 = vmatprep.mubr.f32.mxu0 0.0
      %1311 = vmatmul.mubr.f32.gmra.mrb[0].mxu0 %v1244
      %v1312 = vpop.f32.mrb[0].mxu0
      %v1313 = vadd.f32 %v1240, %v1312
      %v1314 = vpop.f32.mrb[0].mxu0
      %v1315 = vadd.f32 %v1240, %v1314
      %1316 = vdwg.mxu0
      %v1317 = vxor.u32 %v1313, 2147483648
      %v1318 = vxor.u32 %v1315, 2147483648
      %v1319 = vmul.f32 %v1317, 1.442695
      %v1320 = vpow.pop %v1319
      %v1321 = vmul.f32 %v1318, 1.442695
      %v1322 = vpow.pop %v1321
      %v1323 = vadd.f32 %v1320, 1.0
      %v1324 = vadd.f32 %v1322, 1.0
      %v1325 = vrcp.pop %v1323
      %v1326 = vmul.f32 1.0, %v1325
      %v1327 = vrcp.pop %v1324
      %v1328 = vmul.f32 1.0, %v1327
      %v1329 = vlaneseq
      %v1330 = vshrl.u32 %v1329, 7
      %v1331 = vsub.s32 3, %v1330
      %v1332 = vrot.slane %v1326, %v1331
      %v1333 = vlaneseq
      %v1334 = vshrl.u32 %v1333, 7
      %v1335 = vsub.s32 3, %v1334
      %v1336 = vrot.slane %v1328, %v1335
      %v1337 = vmul.f32 %v1313, %v1332
      %v1338 = vmul.f32 %v1315, %v1336
      %v1339 = vadd.f32 %v1337, 0.0
      %v1340 = vadd.f32 %v1338, 0.0
      %v1341 = vadd.f32 %v1326, 0.0
      %v1342 = vadd.f32 %v1328, 0.0
      %v1343 = vsel %vm799, %v849, %v835
      %v1344 = vsel %vm804, %v863, %v1343
      %v1345 = vsel %vm799, %v856, %v842
      %v1346 = vsel %vm804, %v870, %v1345
      %v1347 = vsel %vm1012, %v1344, 0
      %v1349 = vsel %vm1012, %v1346, 0
      %1351 = vmatprep.subr.mxu0 %v1349
      %1352 = vmatpush1.msra.mxu0 %v1347
      %1353 = vmatprep.subr.mxu0 0.0
      %1354 = vmatpush1.msra.mxu0 0.0
      %1355 = vmatprep.subr.mxu0 0.0
      %1356 = vmatpush1.msra.mxu0 0.0
      %1357 = vmatprep.subr.mxu0 0.0
      %1358 = vmatpush1.msra.mxu0 0.0
      %1359 = vmatprep.subr.mxu0 0.0
      %1360 = vmatpush1.msra.mxu0 0.0
      %1361 = vmatprep.subr.mxu0 0.0
      %1362 = vmatpush1.msra.mxu0 0.0
      %1363 = vmatprep.subr.mxu0 0.0
      %1364 = vmatpush1.msra.mxu0 0.0
      %1365 = vmatprep.subr.mxu0 0.0
      %1366 = vmatpush1.msra.mxu0 0.0
      %1367 = vmatprep.subr.mxu0 0.0
      %1368 = vmatpush1.msra.mxu0 0.0
      %1369 = vmatprep.subr.mxu0 0.0
      %1370 = vmatpush1.msra.mxu0 0.0
      %1371 = vmatprep.subr.mxu0 0.0
      %1372 = vmatpush1.msra.mxu0 0.0
      %1373 = vmatprep.subr.mxu0 0.0
      %1374 = vmatpush1.msra.mxu0 0.0
      %1375 = vmatprep.subr.mxu0 0.0
      %1376 = vmatpush1.msra.mxu0 0.0
      %1377 = vmatprep.subr.mxu0 0.0
      %1378 = vmatpush1.msra.mxu0 0.0
      %1379 = vmatprep.subr.mxu0 0.0
      %1380 = vmatpush1.msra.mxu0 0.0
      %1381 = vmatprep.subr.mxu0 0.0
      %1382 = vmatpush1.msra.mxu0 0.0
      %1383 = vmatprep.subr.mxu0 0.0
      %1384 = vmatpush1.msra.mxu0 0.0
      %1385 = vmatprep.subr.mxu0 0.0
      %1386 = vmatpush1.msra.mxu0 0.0
      %1387 = vmatprep.subr.mxu0 0.0
      %1388 = vmatpush1.msra.mxu0 0.0
      %1389 = vmatprep.subr.mxu0 0.0
      %1390 = vmatpush1.msra.mxu0 0.0
      %1391 = vmatprep.subr.mxu0 0.0
      %1392 = vmatpush1.msra.mxu0 0.0
      %1393 = vmatprep.subr.mxu0 0.0
      %1394 = vmatpush1.msra.mxu0 0.0
      %1395 = vmatprep.subr.mxu0 0.0
      %1396 = vmatpush1.msra.mxu0 0.0
      %1397 = vmatprep.subr.mxu0 0.0
      %1398 = vmatpush1.msra.mxu0 0.0
      %1399 = vmatprep.subr.mxu0 0.0
      %1400 = vmatpush1.msra.mxu0 0.0
      %1401 = vmatprep.subr.mxu0 0.0
      %1402 = vmatpush1.msra.mxu0 0.0
      %1403 = vmatprep.subr.mxu0 0.0
      %1404 = vmatpush1.msra.mxu0 0.0
      %1405 = vmatprep.subr.mxu0 0.0
      %1406 = vmatpush1.msra.mxu0 0.0
      %1407 = vmatprep.subr.mxu0 0.0
      %1408 = vmatpush1.msra.mxu0 0.0
      %1409 = vmatprep.subr.mxu0 0.0
      %1410 = vmatpush1.msra.mxu0 0.0
      %1411 = vmatprep.subr.mxu0 0.0
      %1412 = vmatpush1.msra.mxu0 0.0
      %1413 = vmatprep.subr.mxu0 0.0
      %1414 = vmatpush1.msra.mxu0 0.0
      %1415 = vmatprep.mubr.f32.mxu0 0.0
      %1416 = vmatmul.mubr.f32.gmra.mrb[0].mxu0 %v1115
      %v1417 = vpop.f32.mrb[0].mxu0
      %v1418 = vadd.f32 0.0, %v1417
      %v1419 = vpop.f32.mrb[0].mxu0
      %v1420 = vadd.f32 0.0, %v1419
      %1421 = vmatprep.mubr.f32.mxu0 0.0
      %1422 = vmatmul.mubr.f32.gmra.mrb[0].mxu0 %v1118
      %v1423 = vpop.f32.mrb[0].mxu0
      %v1424 = vadd.f32 0.0, %v1423
      %v1425 = vpop.f32.mrb[0].mxu0
      %v1426 = vadd.f32 0.0, %v1425
      %1427 = vmatprep.mubr.f32.mxu0 0.0
      %1428 = vmatmul.mubr.f32.gmra.mrb[0].mxu0 %v1121
      %v1429 = vpop.f32.mrb[0].mxu0
      %v1430 = vadd.f32 0.0, %v1429
      %v1431 = vpop.f32.mrb[0].mxu0
      %v1432 = vadd.f32 0.0, %v1431
      %1433 = vmatprep.mubr.f32.mxu0 0.0
      %1434 = vmatmul.mubr.f32.gmra.mrb[0].mxu0 %v1124
      %v1435 = vpop.f32.mrb[0].mxu0
      %v1436 = vadd.f32 0.0, %v1435
      %v1437 = vpop.f32.mrb[0].mxu0
      %v1438 = vadd.f32 0.0, %v1437
      %1439 = vdwg.mxu0
      %v1440 = vadd.f32 %v1084, %v1418
      %v1441 = vadd.f32 %v1086, %v1420
      %v1442 = vadd.f32 %v1090, %v1424
      %v1443 = vadd.f32 %v1092, %v1426
      %v1444 = vadd.f32 %v1096, %v1430
      %v1445 = vadd.f32 %v1098, %v1432
      %v1446 = vadd.f32 %v1102, %v1436
      %v1447 = vadd.f32 %v1104, %v1438
      %v1448 = vmax.f32 %v1440, 0.0
      %v1449 = vmax.f32 %v1441, 0.0
      %v1450 = vmax.f32 %v1442, 0.0
      %v1451 = vmax.f32 %v1443, 0.0
      %v1452 = vmax.f32 %v1444, 0.0
      %v1453 = vmax.f32 %v1445, 0.0
      %v1454 = vmax.f32 %v1446, 0.0
      %v1455 = vmax.f32 %v1447, 0.0
      %1456 = vmatprep.subr.mxu0 %v1449
      %1457 = vmatpush1.msra.mxu0 %v1448
      %1458 = vmatprep.subr.mxu0 %v1451
      %1459 = vmatpush1.msra.mxu0 %v1450
      %1460 = vmatprep.subr.mxu0 %v1453
      %1461 = vmatpush1.msra.mxu0 %v1452
      %1462 = vmatprep.subr.mxu0 %v1455
      %1463 = vmatpush1.msra.mxu0 %v1454
      %1464 = vmatprep.subr.mxu0 0.0
      %1465 = vmatpush1.msra.mxu0 0.0
      %1466 = vmatprep.subr.mxu0 0.0
      %1467 = vmatpush1.msra.mxu0 0.0
      %1468 = vmatprep.subr.mxu0 0.0
      %1469 = vmatpush1.msra.mxu0 0.0
      %1470 = vmatprep.subr.mxu0 0.0
      %1471 = vmatpush1.msra.mxu0 0.0
      %1472 = vmatprep.subr.mxu0 0.0
      %1473 = vmatpush1.msra.mxu0 0.0
      %1474 = vmatprep.subr.mxu0 0.0
      %1475 = vmatpush1.msra.mxu0 0.0
      %1476 = vmatprep.subr.mxu0 0.0
      %1477 = vmatpush1.msra.mxu0 0.0
      %1478 = vmatprep.subr.mxu0 0.0
      %1479 = vmatpush1.msra.mxu0 0.0
      %1480 = vmatprep.subr.mxu0 0.0
      %1481 = vmatpush1.msra.mxu0 0.0
      %1482 = vmatprep.subr.mxu0 0.0
      %1483 = vmatpush1.msra.mxu0 0.0
      %1484 = vmatprep.subr.mxu0 0.0
      %1485 = vmatpush1.msra.mxu0 0.0
      %1486 = vmatprep.subr.mxu0 0.0
      %1487 = vmatpush1.msra.mxu0 0.0
      %1488 = vmatprep.subr.mxu0 0.0
      %1489 = vmatpush1.msra.mxu0 0.0
      %1490 = vmatprep.subr.mxu0 0.0
      %1491 = vmatpush1.msra.mxu0 0.0
      %1492 = vmatprep.subr.mxu0 0.0
      %1493 = vmatpush1.msra.mxu0 0.0
      %1494 = vmatprep.subr.mxu0 0.0
      %1495 = vmatpush1.msra.mxu0 0.0
      %1496 = vmatprep.subr.mxu0 0.0
      %1497 = vmatpush1.msra.mxu0 0.0
      %1498 = vmatprep.subr.mxu0 0.0
      %1499 = vmatpush1.msra.mxu0 0.0
      %1500 = vmatprep.subr.mxu0 0.0
      %1501 = vmatpush1.msra.mxu0 0.0
      %1502 = vmatprep.subr.mxu0 0.0
      %1503 = vmatpush1.msra.mxu0 0.0
      %1504 = vmatprep.subr.mxu0 0.0
      %1505 = vmatpush1.msra.mxu0 0.0
      %1506 = vmatprep.subr.mxu0 0.0
      %1507 = vmatpush1.msra.mxu0 0.0
      %1508 = vmatprep.subr.mxu0 0.0
      %1509 = vmatpush1.msra.mxu0 0.0
      %1510 = vmatprep.subr.mxu0 0.0
      %1511 = vmatpush1.msra.mxu0 0.0
      %1512 = vmatprep.subr.mxu0 0.0
      %1513 = vmatpush1.msra.mxu0 0.0
      %1514 = vmatprep.subr.mxu0 0.0
      %1515 = vmatpush1.msra.mxu0 0.0
      %1516 = vmatprep.subr.mxu0 0.0
      %1517 = vmatpush1.msra.mxu0 0.0
      %1518 = vmatprep.subr.mxu0 0.0
      %1519 = vmatpush1.msra.mxu0 0.0
      %1520 = vmatprep.mubr.f32.mxu0 0.0
      %1521 = vmatmul.mubr.f32.gmra.mrb[0].mxu0 %v1244
      %v1522 = vpop.f32.mrb[0].mxu0
      %v1523 = vadd.f32 %v1240, %v1522
      %v1524 = vpop.f32.mrb[0].mxu0
      %v1525 = vadd.f32 %v1240, %v1524
      %1526 = vdwg.mxu0
      %v1527 = vxor.u32 %v1523, 2147483648
      %v1528 = vxor.u32 %v1525, 2147483648
      %v1529 = vmul.f32 %v1527, 1.442695
      %v1530 = vpow.pop %v1529
      %v1531 = vmul.f32 %v1528, 1.442695
      %v1532 = vpow.pop %v1531
      %v1533 = vadd.f32 %v1530, 1.0
      %v1534 = vadd.f32 %v1532, 1.0
      %v1535 = vrcp.pop %v1533
      %v1536 = vmul.f32 1.0, %v1535
      %v1537 = vrcp.pop %v1534
      %v1538 = vmul.f32 1.0, %v1537
      %v1539 = vlaneseq
      %v1540 = vshrl.u32 %v1539, 7
      %v1541 = vsub.s32 3, %v1540
      %v1542 = vrot.slane %v1536, %v1541
      %v1543 = vlaneseq
      %v1544 = vshrl.u32 %v1543, 7
      %v1545 = vsub.s32 3, %v1544
      %v1546 = vrot.slane %v1538, %v1545
      %v1547 = vmul.f32 %v1523, %v1542
      %v1548 = vmul.f32 %v1525, %v1546
      %v1549 = vadd.f32 %v1339, %v1547
      %v1550 = vadd.f32 %v1340, %v1548
      %v1551 = vadd.f32 %v1341, %v1536
      %v1552 = vadd.f32 %v1342, %v1538
      %v1553 = vadd.f32 %v1551, 1e-08
      %v1554 = vadd.f32 %v1552, 1e-08
      %v1555 = vrcp.pop %v1553
      %v1556 = vrcp.pop %v1554
      %v1557 = vlaneseq
      %v1558 = vshrl.u32 %v1557, 7
      %v1559 = vsub.s32 3, %v1558
      %v1560 = vrot.slane %v1555, %v1559
      %v1561 = vlaneseq
      %v1562 = vshrl.u32 %v1561, 7
      %v1563 = vsub.s32 3, %v1562
      %v1564 = vrot.slane %v1556, %v1563
      %v1565 = vmul.f32 %v1549, %v1560
      %v1566 = vmul.f32 %v1550, %v1564
      %v1569 = vcombine.low %v1565, %v1566
      %1571 = vst [vmem:[%s579] sm:$0x77] %v1569
      %s1572 = smul.u32 2, %s28
      %p1573 = scmp.lt.s32.totalorder %s27, 1
      %s1574 = scalar_select %p1573, %s27, 1
      %p1575 = scmp.lt.s32.totalorder %s1572, 1
      %s1576 = scalar_select %p1575, %s1572, 1
      %s1577 = smul.addr %s1574, 2
      %s1578 = sadd.s32 %s1576, %s1577
      %s1579 = smul.addr %s1578, 4
      %s1580 = scalar_lea.vmem %s9, %s1579
      %s1581 = smul.u32 2, %s28
      %p1582 = scmp.lt.s32.totalorder %s27, 1
      %s1583 = scalar_select %p1582, %s27, 1
      %p1584 = scmp.lt.s32.totalorder %s1581, 1
      %s1585 = scalar_select %p1584, %s1581, 1
      %s1586 = smul.addr %s1583, 4
      %s1587 = sadd.s32 %s1585, %s1586
      %s1588 = smul.addr %s1587, 4
      %s1589 = scalar_lea.vmem %s10, %s1588
      %s1590 = smul.u32 2, %s28
      %p1591 = scmp.lt.s32.totalorder %s27, 1
      %s1592 = scalar_select %p1591, %s27, 1
      %p1593 = scmp.lt.s32.totalorder %s1590, 1
      %s1594 = scalar_select %p1593, %s1590, 1
      %s1595 = smul.addr %s1592, 2
      %s1596 = sadd.s32 %s1594, %s1595
      %s1597 = smul.addr %s1596, 4
      %s1598 = scalar_lea.vmem %s11, %s1597
      // Predicated region
      $region57: #{render_model_forward.5} parent=55 // pred_check
        %p1599 = pneg %p272
      $region58: #{render_model_forward.5} parent=55 // pred_check_branch
        %1601 = sbr.rel (%p1599) target = $region60
      $region59: #{render_model_forward.5} parent=55 // pred_region
        %s1602 = smul.u32 2, %s28
      $region60: #{render_model_forward.5} parent=55 // pred_fallthru
        _
      // Predicated region
      $region61: #{render_model_forward.5} parent=55 // pred_check
        %p1603 = pneg %p300
      $region62: #{render_model_forward.5} parent=55 // pred_check_branch
        %1605 = sbr.rel (%p1603) target = $region64
      $region63: #{render_model_forward.5} parent=55 // pred_region
        %s1606 = smul.u32 2, %s28
      $region64: #{render_model_forward.5} parent=55 // pred_fallthru
        _
      // Predicated region
      $region65: #{render_model_forward.5} parent=55 // pred_check
        %p1607 = pneg %p328
      $region66: #{render_model_forward.5} parent=55 // pred_check_branch
        %1609 = sbr.rel (%p1607) target = $region68
      $region67: #{render_model_forward.5} parent=55 // pred_region
        %s1610 = smul.u32 2, %s28
      $region68: #{render_model_forward.5} parent=55 // pred_fallthru
        _
    $region56: #{render_model_forward.5} parent=5 // pred_fallthru
      _
    %p1611 = scmp.le.s32.totalorder 2, %s18
    // Predicated region
    $region69: #{render_model_forward.5} parent=5 // pred_check
      %p1612 = pneg %p1611
    $region70: #{render_model_forward.5} parent=5 // pred_check_branch
      %1614 = sbr.rel (%p1612) target = $region72
    $region71: #{render_model_forward.5} parent=5 // pred_region
      %s1615 = ssub.s32 %s18, 2
      // Predicated region
      $region73: #{render_model_forward.5} parent=71 // pred_check
        %p1616 = pneg %p278
      $region74: #{render_model_forward.5} parent=71 // pred_check_branch
        %1618 = sbr.rel (%p1616) target = $region76
      $region75: #{render_model_forward.5} parent=71 // pred_region
        %s1619 = smul.u32 2, %s30
        %p1620 = scmp.lt.s32.totalorder %s29, 1
        %s1621 = scalar_select %p1620, %s29, 1
        %p1622 = scmp.lt.s32.totalorder %s1619, 1
        %s1623 = scalar_select %p1622, %s1619, 1
        %s1624 = smul.addr %s1621, 2
        %s1625 = sadd.s32 %s1623, %s1624
        %s1626 = smul.addr %s1625, 4
        %s1627 = scalar_lea.vmem %s9, %s1626
      $region76: #{render_model_forward.5} parent=71 // pred_fallthru
        _
      // Predicated region
      $region77: #{render_model_forward.5} parent=71 // pred_check
        %p1628 = pneg %p306
      $region78: #{render_model_forward.5} parent=71 // pred_check_branch
        %1630 = sbr.rel (%p1628) target = $region80
      $region79: #{render_model_forward.5} parent=71 // pred_region
        %s1631 = smul.u32 2, %s30
        %p1632 = scmp.lt.s32.totalorder %s29, 1
        %s1633 = scalar_select %p1632, %s29, 1
        %p1634 = scmp.lt.s32.totalorder %s1631, 1
        %s1635 = scalar_select %p1634, %s1631, 1
        %s1636 = smul.addr %s1633, 4
        %s1637 = sadd.s32 %s1635, %s1636
        %s1638 = smul.addr %s1637, 4
        %s1639 = scalar_lea.vmem %s10, %s1638
      $region80: #{render_model_forward.5} parent=71 // pred_fallthru
        _
      // Predicated region
      $region81: #{render_model_forward.5} parent=71 // pred_check
        %p1640 = pneg %p334
      $region82: #{render_model_forward.5} parent=71 // pred_check_branch
        %1642 = sbr.rel (%p1640) target = $region84
      $region83: #{render_model_forward.5} parent=71 // pred_region
        %s1643 = smul.u32 2, %s30
        %p1644 = scmp.lt.s32.totalorder %s29, 1
        %s1645 = scalar_select %p1644, %s29, 1
        %p1646 = scmp.lt.s32.totalorder %s1643, 1
        %s1647 = scalar_select %p1646, %s1643, 1
        %s1648 = smul.addr %s1645, 2
        %s1649 = sadd.s32 %s1647, %s1648
        %s1650 = smul.addr %s1649, 4
        %s1651 = scalar_lea.vmem %s11, %s1650
      $region84: #{render_model_forward.5} parent=71 // pred_fallthru
        _
    $region72: #{render_model_forward.5} parent=5 // pred_fallthru
      _
  $region6: #{render_model_forward.5} parent=0 // loop_footer
    %s22 = sadd.s32 1, %s18
  $region7: #{render_model_forward.5} parent=0 // loop_footer_branch
    %17 = sbr.rel target = $region3
  $region8: #{render_model_forward.5} parent=0 // loop_exit
    _

</llo_original>
